<compile_context>
chip_gen: v7x
topology: tpu7x:2x2x1
jax: 0.10.0
libtpu: 0.0.40
codegen_flags: <defaults>
</compile_context>

<pallas_src>
import functools
import math

import jax
import jax.numpy as jnp
from jax.experimental import pallas as pl
from jax.experimental.pallas import tpu as pltpu


# ----------------------------- Pallas kernel ------------------------------

def mha_fused_kernel(q_ref, k_ref, v_ref,
                     wq_ref, wk_ref, wv_ref, wo_ref,
                     bq_ref, bk_ref, bv_ref, bo_ref,
                     o_ref, *, heads):
    bt, s, d = q_ref.shape          # (Bt, S, D) block — Bt batch elems / step
    dk = d // heads
    rows = bt * s

    # Static K-tile size for the flash-style online softmax.
    if s <= 512:
        kv_tile = s
    elif s % 512 == 0:
        kv_tile = 512
    else:
        kv_tile = s                 # TODO(synk): ragged K tiles
    num_kt = s // kv_tile

    # ---- Fused projections on a flattened (Bt*S, D) slab (MXU fill) ----
    # Activations cast to bf16 for the MXU; weights arrive bf16 from the
    # wrapper; accumulation + all softmax/distance math stays fp32.
    x_q = q_ref[...].reshape(rows, d).astype(jnp.bfloat16)
    x_k = k_ref[...].reshape(rows, d).astype(jnp.bfloat16)
    x_v = v_ref[...].reshape(rows, d).astype(jnp.bfloat16)

    qp = jnp.dot(x_q, wq_ref[...], preferred_element_type=jnp.float32) + bq_ref[...]
    kp = jnp.dot(x_k, wk_ref[...], preferred_element_type=jnp.float32) + bk_ref[...]
    vp = jnp.dot(x_v, wv_ref[...], preferred_element_type=jnp.float32) + bv_ref[...]

    wo = wo_ref[...]                # (D, D) bf16, resident
    bo = bo_ref[...]                # (1, D) fp32

    # ---- Per-(batch, head) Euclidean-distance attention ----
    for b in range(bt):
        r0 = b * s
        out_b = jnp.zeros((s, d), jnp.float32)
        for h in range(heads):
            lo = h * dk
            hi = lo + dk
            # NOTE: dk should be a multiple of 128 in real configs so these
            # lane slices are tile-aligned; unavoidable masking at toy dk.
            qh = qp[r0:r0 + s, lo:hi]           # (S, dk) fp32
            kh = kp[r0:r0 + s, lo:hi]
            vh = vp[r0:r0 + s, lo:hi]

            q_norm = jnp.sum(qh * qh, axis=-1, keepdims=True)    # (S, 1)

            # Online softmax over scores = -dist  ==  track running MIN dist.
            m = jnp.full((s, 1), jnp.inf, jnp.float32)           # running min
            denom = jnp.zeros((s, 1), jnp.float32)
            acc = jnp.zeros((s, dk), jnp.float32)

            for t in range(num_kt):
                c0 = t * kv_tile
                kt = kh[c0:c0 + kv_tile, :]                      # (Kt, dk)
                vt = vh[c0:c0 + kv_tile, :]
                k_norm = jnp.sum(kt * kt, axis=-1, keepdims=True)  # (Kt, 1)

                # fp32 cross term: avoids catastrophic cancellation in
                # ||q||^2 + ||k||^2 - 2 q.k (matches torch fp32 cdist).
                qk = jnp.dot(qh, kt.T, preferred_element_type=jnp.float32)
                d2 = q_norm + k_norm.T - 2.0 * qk
                # Clamp kept for parity with torch.clamp(min=0) + NaN safety.
                dist = jnp.sqrt(jnp.maximum(d2, 0.0))            # (S, Kt)

                m_new = jnp.minimum(m, jnp.min(dist, axis=-1, keepdims=True))
                rescale = jnp.exp(m_new - m)        # exp(-inf)=0 on 1st tile
                p = jnp.exp(m_new - dist)           # one subtract, one exp
                denom = denom * rescale + jnp.sum(p, axis=-1, keepdims=True)
                acc = acc * rescale + jnp.dot(p, vt,
                                              preferred_element_type=jnp.float32)
                m = m_new

            head_out = acc / denom                   # exact normalization

            # Output projection folded into the head loop: sublane-aligned
            # Wo row-slice per head; no lane-axis concatenate.
            out_b = out_b + jnp.dot(head_out.astype(jnp.bfloat16), wo[lo:hi, :],
                                    preferred_element_type=jnp.float32)

        o_ref[b] = (out_b + bo).astype(o_ref.dtype)  # lane-dense (S, D) store


# ----------------------------- Wrapper -------------------------------------

def _pick_batch_tile(batch, seq, target_rows=256):
    """Smallest divisor of `batch` whose Bt*S fills the 256-row MXU, else B."""
    for cand in range(1, batch + 1):
        if batch % cand == 0 and cand * seq >= target_rows:
            return cand
    return batch


def multi_head_attention_forward(q, k, v, params, heads, mask=None):
    """q/k/v: (B, S, d_model) fp32. Returns (B, S, d_model) fp32."""
    B, S, D = q.shape
    assert D % heads == 0, "d_model must be divisible by heads"
    if mask is not None:
        # TODO(synk): attention mask not implemented (module default is None).
        raise NotImplementedError("mask is not supported")

    bt = _pick_batch_tile(B, S)

    # Weights cast to bf16 ONCE here (halves weight DMA + resident VMEM);
    # biases stay fp32 and are added post-accumulation.
    wq = params["Wq"].astype(jnp.bfloat16)
    wk = params["Wk"].astype(jnp.bfloat16)
    wv = params["Wv"].astype(jnp.bfloat16)
    wo = params["Wo"].astype(jnp.bfloat16)
    bq = params["bq"].reshape(1, D).astype(jnp.float32)
    bk = params["bk"].reshape(1, D).astype(jnp.float32)
    bv = params["bv"].reshape(1, D).astype(jnp.float32)
    bo = params["bo"].reshape(1, D).astype(jnp.float32)

    kernel = functools.partial(mha_fused_kernel, heads=heads)

    # Resident (constant across the grid) weights/biases live in VMEM for the
    # whole kernel — no per-step re-DMA / no double-buffer churn.
    resident = pl.BlockSpec(memory_space=pltpu.MemorySpace.VMEM)
    io_spec = pl.BlockSpec((bt, S, D), lambda b: (b, 0, 0))

    return pl.pallas_call(
        kernel,
        out_shape=jax.ShapeDtypeStruct((B, S, D), jnp.float32),
        grid=(B // bt,),
        in_specs=[
            io_spec, io_spec, io_spec,                  # q, k, v
            resident, resident, resident, resident,     # Wq, Wk, Wv, Wo (bf16)
            resident, resident, resident, resident,     # bq, bk, bv, bo (f32)
        ],
        out_specs=io_spec,
        compiler_params=pltpu.CompilerParams(
            dimension_semantics=("parallel",),          # megacore over batch tiles
            vmem_limit_bytes=48 * 1024 * 1024,          # fits v5e/v6e/v7x
        ),
    )(q, k, v, wq, wk, wv, wo, bq, bk, bv, bo)


# ----------------------------- Reference ------------------------------------

def mha_reference(q, k, v, params, heads):
    """Pure-JAX reference (same bf16 weight rounding as the kernel)."""
    B, S, D = q.shape
    dk = D // heads

    def lin(x, w, b):
        return jnp.dot(x.astype(jnp.bfloat16), w.astype(jnp.bfloat16),
                       preferred_element_type=jnp.float32) + b

    qp = lin(q, params["Wq"], params["bq"])
    kp = lin(k, params["Wk"], params["bk"])
    vp = lin(v, params["Wv"], params["bv"])

    def split(x):
        return x.reshape(B, S, heads, dk).transpose(0, 2, 1, 3)

    qh, kh, vh = split(qp), split(kp), split(vp)
    q_norm = jnp.sum(qh * qh, axis=-1, keepdims=True)
    k_norm = jnp.sum(kh * kh, axis=-1, keepdims=True)
    qk = jnp.einsum("bhqd,bhkd->bhqk", qh, kh)
    d2 = q_norm + jnp.swapaxes(k_norm, -1, -2) - 2.0 * qk
    dist = jnp.sqrt(jnp.maximum(d2, 0.0))
    p = jax.nn.softmax(-dist, axis=-1)
    o = jnp.einsum("bhqk,bhkd->bhqd", p, vh)
    concat = o.transpose(0, 2, 1, 3).reshape(B, S, D)
    return jnp.dot(concat.astype(jnp.bfloat16),
                   params["Wo"].astype(jnp.bfloat16),
                   preferred_element_type=jnp.float32) + params["bo"]


# ----------------------------- Main ----------------------------------------

if __name__ == "__main__":
    B, S, H, D = 2, 8, 4, 32  # batch, seq, heads, d_model
    key = jax.random.PRNGKey(0)
    ks = jax.random.split(key, 12)

    bound = 1.0 / math.sqrt(D)  # nn.Linear default-style uniform init

    params = {
        "Wq": jax.random.uniform(ks[0], (D, D), jnp.float32, -bound, bound),
        "bq": jax.random.uniform(ks[1], (D,), jnp.float32, -bound, bound),
        "Wk": jax.random.uniform(ks[2], (D, D), jnp.float32, -bound, bound),
        "bk": jax.random.uniform(ks[3], (D,), jnp.float32, -bound, bound),
        "Wv": jax.random.uniform(ks[4], (D, D), jnp.float32, -bound, bound),
        "bv": jax.random.uniform(ks[5], (D,), jnp.float32, -bound, bound),
        "Wo": jax.random.uniform(ks[6], (D, D), jnp.float32, -bound, bound),
        "bo": jax.random.uniform(ks[7], (D,), jnp.float32, -bound, bound),
    }

    q = jax.random.normal(ks[8], (B, S, D), jnp.float32)
    k = jax.random.normal(ks[9], (B, S, D), jnp.float32)
    v = jax.random.normal(ks[10], (B, S, D), jnp.float32)

    out = multi_head_attention_forward(q, k, v, params, heads=H)
    out = jax.block_until_ready(out)
    assert out.shape == (B, S, D)
    assert bool(jnp.all(jnp.isfinite(out)))

    ref = jax.block_until_ready(mha_reference(q, k, v, params, heads=H))
    assert bool(jnp.allclose(out, ref, rtol=2e-2, atol=2e-2)), (
        "kernel does not match pure-JAX reference")

    print("KERNEL_OK")
</pallas_src>

<mosaic_0001>
module attributes {stable_mosaic.version = 11 : i64} {
  func.func @mha_fused_kernel(%arg0: i32, %arg1: memref<2x8x32xf32, #tpu.memory_space<vmem>>, %arg2: memref<2x8x32xf32, #tpu.memory_space<vmem>>, %arg3: memref<2x8x32xf32, #tpu.memory_space<vmem>>, %arg4: memref<32x32xbf16, #tpu.memory_space<vmem>>, %arg5: memref<32x32xbf16, #tpu.memory_space<vmem>>, %arg6: memref<32x32xbf16, #tpu.memory_space<vmem>>, %arg7: memref<32x32xbf16, #tpu.memory_space<vmem>>, %arg8: memref<1x32xf32, #tpu.memory_space<vmem>>, %arg9: memref<1x32xf32, #tpu.memory_space<vmem>>, %arg10: memref<1x32xf32, #tpu.memory_space<vmem>>, %arg11: memref<1x32xf32, #tpu.memory_space<vmem>>, %arg12: memref<2x8x32xf32, #tpu.memory_space<vmem>>) attributes {dimension_semantics = [#tpu.dimension_semantics<parallel>], iteration_bounds = array<i64: 1>, scalar_prefetch = 0 : i64, scratch_operands = 0 : i64, tpu.core_type = #tpu.core_type<tc>, window_params = [{transform_indices = @transform_0, window_bounds = array<i64: 2, 8, 32>}, {transform_indices = @transform_1, window_bounds = array<i64: 2, 8, 32>}, {transform_indices = @transform_2, window_bounds = array<i64: 2, 8, 32>}, {pipeline_mode = #tpu.pipeline_mode<synchronous>, transform_indices = @transform_3, window_bounds = array<i64: 32, 32>}, {pipeline_mode = #tpu.pipeline_mode<synchronous>, transform_indices = @transform_4, window_bounds = array<i64: 32, 32>}, {pipeline_mode = #tpu.pipeline_mode<synchronous>, transform_indices = @transform_5, window_bounds = array<i64: 32, 32>}, {pipeline_mode = #tpu.pipeline_mode<synchronous>, transform_indices = @transform_6, window_bounds = array<i64: 32, 32>}, {pipeline_mode = #tpu.pipeline_mode<synchronous>, transform_indices = @transform_7, window_bounds = array<i64: 1, 32>}, {pipeline_mode = #tpu.pipeline_mode<synchronous>, transform_indices = @transform_8, window_bounds = array<i64: 1, 32>}, {pipeline_mode = #tpu.pipeline_mode<synchronous>, transform_indices = @transform_9, window_bounds = array<i64: 1, 32>}, {pipeline_mode = #tpu.pipeline_mode<synchronous>, transform_indices = @transform_10, window_bounds = array<i64: 1, 32>}, {transform_indices = @transform_11, window_bounds = array<i64: 2, 8, 32>}]} {
    %c0 = arith.constant 0 : index
    %c0_0 = arith.constant 0 : index
    %c0_1 = arith.constant 0 : index
    %0 = vector.load %arg1[%c0, %c0_0, %c0_1] : memref<2x8x32xf32, #tpu.memory_space<vmem>>, vector<2x8x32xf32>
    %1 = vector.shape_cast %0 : vector<2x8x32xf32> to vector<16x32xf32>
    %2 = arith.truncf %1 : vector<16x32xf32> to vector<16x32xbf16>
    %c0_2 = arith.constant 0 : index
    %c0_3 = arith.constant 0 : index
    %c0_4 = arith.constant 0 : index
    %3 = vector.load %arg2[%c0_2, %c0_3, %c0_4] : memref<2x8x32xf32, #tpu.memory_space<vmem>>, vector<2x8x32xf32>
    %4 = vector.shape_cast %3 : vector<2x8x32xf32> to vector<16x32xf32>
    %5 = arith.truncf %4 : vector<16x32xf32> to vector<16x32xbf16>
    %c0_5 = arith.constant 0 : index
    %c0_6 = arith.constant 0 : index
    %c0_7 = arith.constant 0 : index
    %6 = vector.load %arg3[%c0_5, %c0_6, %c0_7] : memref<2x8x32xf32, #tpu.memory_space<vmem>>, vector<2x8x32xf32>
    %7 = vector.shape_cast %6 : vector<2x8x32xf32> to vector<16x32xf32>
    %8 = arith.truncf %7 : vector<16x32xf32> to vector<16x32xbf16>
    %c0_8 = arith.constant 0 : index
    %c0_9 = arith.constant 0 : index
    %9 = vector.load %arg4[%c0_8, %c0_9] : memref<32x32xbf16, #tpu.memory_space<vmem>>, vector<32x32xbf16>
    %cst = arith.constant dense<0.000000e+00> : vector<16x32xf32>
    %10 = tpu.matmul %2, %9, %cst {dimension_numbers = #tpu.dot_dimension_numbers<[1], [0], [0], [1], [0, 0, 1, 1], [], []>} : vector<16x32xbf16>, vector<32x32xbf16>, vector<16x32xf32> -> vector<16x32xf32>
    %c0_10 = arith.constant 0 : index
    %c0_11 = arith.constant 0 : index
    %11 = vector.load %arg8[%c0_10, %c0_11] : memref<1x32xf32, #tpu.memory_space<vmem>>, vector<1x32xf32>
    %12 = vector.broadcast %11 : vector<1x32xf32> to vector<16x32xf32>
    %13 = arith.addf %10, %12 : vector<16x32xf32>
    %c0_12 = arith.constant 0 : index
    %c0_13 = arith.constant 0 : index
    %14 = vector.load %arg5[%c0_12, %c0_13] : memref<32x32xbf16, #tpu.memory_space<vmem>>, vector<32x32xbf16>
    %cst_14 = arith.constant dense<0.000000e+00> : vector<16x32xf32>
    %15 = tpu.matmul %5, %14, %cst_14 {dimension_numbers = #tpu.dot_dimension_numbers<[1], [0], [0], [1], [0, 0, 1, 1], [], []>} : vector<16x32xbf16>, vector<32x32xbf16>, vector<16x32xf32> -> vector<16x32xf32>
    %c0_15 = arith.constant 0 : index
    %c0_16 = arith.constant 0 : index
    %16 = vector.load %arg9[%c0_15, %c0_16] : memref<1x32xf32, #tpu.memory_space<vmem>>, vector<1x32xf32>
    %17 = vector.broadcast %16 : vector<1x32xf32> to vector<16x32xf32>
    %18 = arith.addf %15, %17 : vector<16x32xf32>
    %c0_17 = arith.constant 0 : index
    %c0_18 = arith.constant 0 : index
    %19 = vector.load %arg6[%c0_17, %c0_18] : memref<32x32xbf16, #tpu.memory_space<vmem>>, vector<32x32xbf16>
    %cst_19 = arith.constant dense<0.000000e+00> : vector<16x32xf32>
    %20 = tpu.matmul %8, %19, %cst_19 {dimension_numbers = #tpu.dot_dimension_numbers<[1], [0], [0], [1], [0, 0, 1, 1], [], []>} : vector<16x32xbf16>, vector<32x32xbf16>, vector<16x32xf32> -> vector<16x32xf32>
    %c0_20 = arith.constant 0 : index
    %c0_21 = arith.constant 0 : index
    %21 = vector.load %arg10[%c0_20, %c0_21] : memref<1x32xf32, #tpu.memory_space<vmem>>, vector<1x32xf32>
    %22 = vector.broadcast %21 : vector<1x32xf32> to vector<16x32xf32>
    %23 = arith.addf %20, %22 : vector<16x32xf32>
    %c0_22 = arith.constant 0 : index
    %c0_23 = arith.constant 0 : index
    %24 = vector.load %arg7[%c0_22, %c0_23] : memref<32x32xbf16, #tpu.memory_space<vmem>>, vector<32x32xbf16>
    %c0_24 = arith.constant 0 : index
    %c0_25 = arith.constant 0 : index
    %25 = vector.load %arg11[%c0_24, %c0_25] : memref<1x32xf32, #tpu.memory_space<vmem>>, vector<1x32xf32>
    %cst_26 = arith.constant 0.000000e+00 : f32
    %26 = vector.broadcast %cst_26 : f32 to vector<8x32xf32>
    %27 = vector.extract_strided_slice %13 {offsets = [0, 0], sizes = [8, 8], strides = [1, 1]} : vector<16x32xf32> to vector<8x8xf32>
    %28 = vector.extract_strided_slice %18 {offsets = [0, 0], sizes = [8, 8], strides = [1, 1]} : vector<16x32xf32> to vector<8x8xf32>
    %29 = vector.extract_strided_slice %23 {offsets = [0, 0], sizes = [8, 8], strides = [1, 1]} : vector<16x32xf32> to vector<8x8xf32>
    %30 = arith.mulf %27, %27 : vector<8x8xf32>
    %cst_27 = arith.constant dense<0.000000e+00> : vector<8xf32>
    %31 = vector.multi_reduction <add>, %30, %cst_27 [1] : vector<8x8xf32> to vector<8xf32>
    %32 = vector.shape_cast %31 : vector<8xf32> to vector<8x1xf32>
    %cst_28 = arith.constant 0x7F800000 : f32
    %33 = vector.broadcast %cst_28 : f32 to vector<8x1xf32>
    %cst_29 = arith.constant 0.000000e+00 : f32
    %34 = vector.broadcast %cst_29 : f32 to vector<8x1xf32>
    %cst_30 = arith.constant 0.000000e+00 : f32
    %35 = vector.broadcast %cst_30 : f32 to vector<8x8xf32>
    %36 = arith.mulf %28, %28 : vector<8x8xf32>
    %cst_31 = arith.constant dense<0.000000e+00> : vector<8xf32>
    %37 = vector.multi_reduction <add>, %36, %cst_31 [1] : vector<8x8xf32> to vector<8xf32>
    %38 = vector.shape_cast %37 : vector<8xf32> to vector<8x1xf32>
    %39 = tpu.transpose %28, [1, 0] : vector<8x8xf32> -> vector<8x8xf32>
    %cst_32 = arith.constant dense<0.000000e+00> : vector<8x8xf32>
    %40 = tpu.matmul %27, %39, %cst_32 {dimension_numbers = #tpu.dot_dimension_numbers<[1], [0], [0], [1], [0, 0, 1, 1], [], []>} : vector<8x8xf32>, vector<8x8xf32>, vector<8x8xf32> -> vector<8x8xf32>
    %41 = tpu.transpose %38, [1, 0] : vector<8x1xf32> -> vector<1x8xf32>
    %42 = vector.broadcast %32 : vector<8x1xf32> to vector<8x8xf32>
    %43 = vector.broadcast %41 : vector<1x8xf32> to vector<8x8xf32>
    %44 = arith.addf %42, %43 : vector<8x8xf32>
    %cst_33 = arith.constant 2.000000e+00 : f32
    %45 = vector.broadcast %cst_33 : f32 to vector<8x8xf32>
    %46 = arith.mulf %45, %40 : vector<8x8xf32>
    %47 = arith.subf %44, %46 : vector<8x8xf32>
    %cst_34 = arith.constant 0.000000e+00 : f32
    %48 = vector.broadcast %cst_34 : f32 to vector<8x8xf32>
    %49 = arith.maximumf %47, %48 : vector<8x8xf32>
    %50 = math.sqrt %49 : vector<8x8xf32>
    %cst_35 = arith.constant dense<0x7F800000> : vector<8xf32>
    %51 = vector.multi_reduction <minimumf>, %50, %cst_35 [1] : vector<8x8xf32> to vector<8xf32>
    %52 = vector.shape_cast %51 : vector<8xf32> to vector<8x1xf32>
    %53 = arith.minimumf %33, %52 : vector<8x1xf32>
    %54 = arith.subf %53, %33 : vector<8x1xf32>
    %55 = math.exp %54 : vector<8x1xf32>
    %56 = vector.broadcast %53 : vector<8x1xf32> to vector<8x8xf32>
    %57 = arith.subf %56, %50 : vector<8x8xf32>
    %58 = math.exp %57 : vector<8x8xf32>
    %59 = arith.mulf %34, %55 : vector<8x1xf32>
    %cst_36 = arith.constant dense<0.000000e+00> : vector<8xf32>
    %60 = vector.multi_reduction <add>, %58, %cst_36 [1] : vector<8x8xf32> to vector<8xf32>
    %61 = vector.shape_cast %60 : vector<8xf32> to vector<8x1xf32>
    %62 = arith.addf %59, %61 : vector<8x1xf32>
    %63 = vector.broadcast %55 : vector<8x1xf32> to vector<8x8xf32>
    %64 = arith.mulf %35, %63 : vector<8x8xf32>
    %cst_37 = arith.constant dense<0.000000e+00> : vector<8x8xf32>
    %65 = tpu.matmul %58, %29, %cst_37 {dimension_numbers = #tpu.dot_dimension_numbers<[1], [0], [0], [1], [0, 0, 1, 1], [], []>} : vector<8x8xf32>, vector<8x8xf32>, vector<8x8xf32> -> vector<8x8xf32>
    %66 = arith.addf %64, %65 : vector<8x8xf32>
    %67 = vector.broadcast %62 : vector<8x1xf32> to vector<8x8xf32>
    %68 = arith.divf %66, %67 : vector<8x8xf32>
    %69 = arith.truncf %68 : vector<8x8xf32> to vector<8x8xbf16>
    %70 = vector.extract_strided_slice %24 {offsets = [0, 0], sizes = [8, 32], strides = [1, 1]} : vector<32x32xbf16> to vector<8x32xbf16>
    %cst_38 = arith.constant dense<0.000000e+00> : vector<8x32xf32>
    %71 = tpu.matmul %69, %70, %cst_38 {dimension_numbers = #tpu.dot_dimension_numbers<[1], [0], [0], [1], [0, 0, 1, 1], [], []>} : vector<8x8xbf16>, vector<8x32xbf16>, vector<8x32xf32> -> vector<8x32xf32>
    %72 = arith.addf %26, %71 : vector<8x32xf32>
    %73 = vector.extract_strided_slice %13 {offsets = [0, 8], sizes = [8, 8], strides = [1, 1]} : vector<16x32xf32> to vector<8x8xf32>
    %74 = vector.extract_strided_slice %18 {offsets = [0, 8], sizes = [8, 8], strides = [1, 1]} : vector<16x32xf32> to vector<8x8xf32>
    %75 = vector.extract_strided_slice %23 {offsets = [0, 8], sizes = [8, 8], strides = [1, 1]} : vector<16x32xf32> to vector<8x8xf32>
    %76 = arith.mulf %73, %73 : vector<8x8xf32>
    %cst_39 = arith.constant dense<0.000000e+00> : vector<8xf32>
    %77 = vector.multi_reduction <add>, %76, %cst_39 [1] : vector<8x8xf32> to vector<8xf32>
    %78 = vector.shape_cast %77 : vector<8xf32> to vector<8x1xf32>
    %cst_40 = arith.constant 0x7F800000 : f32
    %79 = vector.broadcast %cst_40 : f32 to vector<8x1xf32>
    %cst_41 = arith.constant 0.000000e+00 : f32
    %80 = vector.broadcast %cst_41 : f32 to vector<8x1xf32>
    %cst_42 = arith.constant 0.000000e+00 : f32
    %81 = vector.broadcast %cst_42 : f32 to vector<8x8xf32>
    %82 = arith.mulf %74, %74 : vector<8x8xf32>
    %cst_43 = arith.constant dense<0.000000e+00> : vector<8xf32>
    %83 = vector.multi_reduction <add>, %82, %cst_43 [1] : vector<8x8xf32> to vector<8xf32>
    %84 = vector.shape_cast %83 : vector<8xf32> to vector<8x1xf32>
    %85 = tpu.transpose %74, [1, 0] : vector<8x8xf32> -> vector<8x8xf32>
    %cst_44 = arith.constant dense<0.000000e+00> : vector<8x8xf32>
    %86 = tpu.matmul %73, %85, %cst_44 {dimension_numbers = #tpu.dot_dimension_numbers<[1], [0], [0], [1], [0, 0, 1, 1], [], []>} : vector<8x8xf32>, vector<8x8xf32>, vector<8x8xf32> -> vector<8x8xf32>
    %87 = tpu.transpose %84, [1, 0] : vector<8x1xf32> -> vector<1x8xf32>
    %88 = vector.broadcast %78 : vector<8x1xf32> to vector<8x8xf32>
    %89 = vector.broadcast %87 : vector<1x8xf32> to vector<8x8xf32>
    %90 = arith.addf %88, %89 : vector<8x8xf32>
    %cst_45 = arith.constant 2.000000e+00 : f32
    %91 = vector.broadcast %cst_45 : f32 to vector<8x8xf32>
    %92 = arith.mulf %91, %86 : vector<8x8xf32>
    %93 = arith.subf %90, %92 : vector<8x8xf32>
    %cst_46 = arith.constant 0.000000e+00 : f32
    %94 = vector.broadcast %cst_46 : f32 to vector<8x8xf32>
    %95 = arith.maximumf %93, %94 : vector<8x8xf32>
    %96 = math.sqrt %95 : vector<8x8xf32>
    %cst_47 = arith.constant dense<0x7F800000> : vector<8xf32>
    %97 = vector.multi_reduction <minimumf>, %96, %cst_47 [1] : vector<8x8xf32> to vector<8xf32>
    %98 = vector.shape_cast %97 : vector<8xf32> to vector<8x1xf32>
    %99 = arith.minimumf %79, %98 : vector<8x1xf32>
    %100 = arith.subf %99, %79 : vector<8x1xf32>
    %101 = math.exp %100 : vector<8x1xf32>
    %102 = vector.broadcast %99 : vector<8x1xf32> to vector<8x8xf32>
    %103 = arith.subf %102, %96 : vector<8x8xf32>
    %104 = math.exp %103 : vector<8x8xf32>
    %105 = arith.mulf %80, %101 : vector<8x1xf32>
    %cst_48 = arith.constant dense<0.000000e+00> : vector<8xf32>
    %106 = vector.multi_reduction <add>, %104, %cst_48 [1] : vector<8x8xf32> to vector<8xf32>
    %107 = vector.shape_cast %106 : vector<8xf32> to vector<8x1xf32>
    %108 = arith.addf %105, %107 : vector<8x1xf32>
    %109 = vector.broadcast %101 : vector<8x1xf32> to vector<8x8xf32>
    %110 = arith.mulf %81, %109 : vector<8x8xf32>
    %cst_49 = arith.constant dense<0.000000e+00> : vector<8x8xf32>
    %111 = tpu.matmul %104, %75, %cst_49 {dimension_numbers = #tpu.dot_dimension_numbers<[1], [0], [0], [1], [0, 0, 1, 1], [], []>} : vector<8x8xf32>, vector<8x8xf32>, vector<8x8xf32> -> vector<8x8xf32>
    %112 = arith.addf %110, %111 : vector<8x8xf32>
    %113 = vector.broadcast %108 : vector<8x1xf32> to vector<8x8xf32>
    %114 = arith.divf %112, %113 : vector<8x8xf32>
    %115 = arith.truncf %114 : vector<8x8xf32> to vector<8x8xbf16>
    %116 = vector.extract_strided_slice %24 {offsets = [8, 0], sizes = [8, 32], strides = [1, 1]} : vector<32x32xbf16> to vector<8x32xbf16>
    %cst_50 = arith.constant dense<0.000000e+00> : vector<8x32xf32>
    %117 = tpu.matmul %115, %116, %cst_50 {dimension_numbers = #tpu.dot_dimension_numbers<[1], [0], [0], [1], [0, 0, 1, 1], [], []>} : vector<8x8xbf16>, vector<8x32xbf16>, vector<8x32xf32> -> vector<8x32xf32>
    %118 = arith.addf %72, %117 : vector<8x32xf32>
    %119 = vector.extract_strided_slice %13 {offsets = [0, 16], sizes = [8, 8], strides = [1, 1]} : vector<16x32xf32> to vector<8x8xf32>
    %120 = vector.extract_strided_slice %18 {offsets = [0, 16], sizes = [8, 8], strides = [1, 1]} : vector<16x32xf32> to vector<8x8xf32>
    %121 = vector.extract_strided_slice %23 {offsets = [0, 16], sizes = [8, 8], strides = [1, 1]} : vector<16x32xf32> to vector<8x8xf32>
    %122 = arith.mulf %119, %119 : vector<8x8xf32>
    %cst_51 = arith.constant dense<0.000000e+00> : vector<8xf32>
    %123 = vector.multi_reduction <add>, %122, %cst_51 [1] : vector<8x8xf32> to vector<8xf32>
    %124 = vector.shape_cast %123 : vector<8xf32> to vector<8x1xf32>
    %cst_52 = arith.constant 0x7F800000 : f32
    %125 = vector.broadcast %cst_52 : f32 to vector<8x1xf32>
    %cst_53 = arith.constant 0.000000e+00 : f32
    %126 = vector.broadcast %cst_53 : f32 to vector<8x1xf32>
    %cst_54 = arith.constant 0.000000e+00 : f32
    %127 = vector.broadcast %cst_54 : f32 to vector<8x8xf32>
    %128 = arith.mulf %120, %120 : vector<8x8xf32>
    %cst_55 = arith.constant dense<0.000000e+00> : vector<8xf32>
    %129 = vector.multi_reduction <add>, %128, %cst_55 [1] : vector<8x8xf32> to vector<8xf32>
    %130 = vector.shape_cast %129 : vector<8xf32> to vector<8x1xf32>
    %131 = tpu.transpose %120, [1, 0] : vector<8x8xf32> -> vector<8x8xf32>
    %cst_56 = arith.constant dense<0.000000e+00> : vector<8x8xf32>
    %132 = tpu.matmul %119, %131, %cst_56 {dimension_numbers = #tpu.dot_dimension_numbers<[1], [0], [0], [1], [0, 0, 1, 1], [], []>} : vector<8x8xf32>, vector<8x8xf32>, vector<8x8xf32> -> vector<8x8xf32>
    %133 = tpu.transpose %130, [1, 0] : vector<8x1xf32> -> vector<1x8xf32>
    %134 = vector.broadcast %124 : vector<8x1xf32> to vector<8x8xf32>
    %135 = vector.broadcast %133 : vector<1x8xf32> to vector<8x8xf32>
    %136 = arith.addf %134, %135 : vector<8x8xf32>
    %cst_57 = arith.constant 2.000000e+00 : f32
    %137 = vector.broadcast %cst_57 : f32 to vector<8x8xf32>
    %138 = arith.mulf %137, %132 : vector<8x8xf32>
    %139 = arith.subf %136, %138 : vector<8x8xf32>
    %cst_58 = arith.constant 0.000000e+00 : f32
    %140 = vector.broadcast %cst_58 : f32 to vector<8x8xf32>
    %141 = arith.maximumf %139, %140 : vector<8x8xf32>
    %142 = math.sqrt %141 : vector<8x8xf32>
    %cst_59 = arith.constant dense<0x7F800000> : vector<8xf32>
    %143 = vector.multi_reduction <minimumf>, %142, %cst_59 [1] : vector<8x8xf32> to vector<8xf32>
    %144 = vector.shape_cast %143 : vector<8xf32> to vector<8x1xf32>
    %145 = arith.minimumf %125, %144 : vector<8x1xf32>
    %146 = arith.subf %145, %125 : vector<8x1xf32>
    %147 = math.exp %146 : vector<8x1xf32>
    %148 = vector.broadcast %145 : vector<8x1xf32> to vector<8x8xf32>
    %149 = arith.subf %148, %142 : vector<8x8xf32>
    %150 = math.exp %149 : vector<8x8xf32>
    %151 = arith.mulf %126, %147 : vector<8x1xf32>
    %cst_60 = arith.constant dense<0.000000e+00> : vector<8xf32>
    %152 = vector.multi_reduction <add>, %150, %cst_60 [1] : vector<8x8xf32> to vector<8xf32>
    %153 = vector.shape_cast %152 : vector<8xf32> to vector<8x1xf32>
    %154 = arith.addf %151, %153 : vector<8x1xf32>
    %155 = vector.broadcast %147 : vector<8x1xf32> to vector<8x8xf32>
    %156 = arith.mulf %127, %155 : vector<8x8xf32>
    %cst_61 = arith.constant dense<0.000000e+00> : vector<8x8xf32>
    %157 = tpu.matmul %150, %121, %cst_61 {dimension_numbers = #tpu.dot_dimension_numbers<[1], [0], [0], [1], [0, 0, 1, 1], [], []>} : vector<8x8xf32>, vector<8x8xf32>, vector<8x8xf32> -> vector<8x8xf32>
    %158 = arith.addf %156, %157 : vector<8x8xf32>
    %159 = vector.broadcast %154 : vector<8x1xf32> to vector<8x8xf32>
    %160 = arith.divf %158, %159 : vector<8x8xf32>
    %161 = arith.truncf %160 : vector<8x8xf32> to vector<8x8xbf16>
    %162 = vector.extract_strided_slice %24 {offsets = [16, 0], sizes = [8, 32], strides = [1, 1]} : vector<32x32xbf16> to vector<8x32xbf16>
    %cst_62 = arith.constant dense<0.000000e+00> : vector<8x32xf32>
    %163 = tpu.matmul %161, %162, %cst_62 {dimension_numbers = #tpu.dot_dimension_numbers<[1], [0], [0], [1], [0, 0, 1, 1], [], []>} : vector<8x8xbf16>, vector<8x32xbf16>, vector<8x32xf32> -> vector<8x32xf32>
    %164 = arith.addf %118, %163 : vector<8x32xf32>
    %165 = vector.extract_strided_slice %13 {offsets = [0, 24], sizes = [8, 8], strides = [1, 1]} : vector<16x32xf32> to vector<8x8xf32>
    %166 = vector.extract_strided_slice %18 {offsets = [0, 24], sizes = [8, 8], strides = [1, 1]} : vector<16x32xf32> to vector<8x8xf32>
    %167 = vector.extract_strided_slice %23 {offsets = [0, 24], sizes = [8, 8], strides = [1, 1]} : vector<16x32xf32> to vector<8x8xf32>
    %168 = arith.mulf %165, %165 : vector<8x8xf32>
    %cst_63 = arith.constant dense<0.000000e+00> : vector<8xf32>
    %169 = vector.multi_reduction <add>, %168, %cst_63 [1] : vector<8x8xf32> to vector<8xf32>
    %170 = vector.shape_cast %169 : vector<8xf32> to vector<8x1xf32>
    %cst_64 = arith.constant 0x7F800000 : f32
    %171 = vector.broadcast %cst_64 : f32 to vector<8x1xf32>
    %cst_65 = arith.constant 0.000000e+00 : f32
    %172 = vector.broadcast %cst_65 : f32 to vector<8x1xf32>
    %cst_66 = arith.constant 0.000000e+00 : f32
    %173 = vector.broadcast %cst_66 : f32 to vector<8x8xf32>
    %174 = arith.mulf %166, %166 : vector<8x8xf32>
    %cst_67 = arith.constant dense<0.000000e+00> : vector<8xf32>
    %175 = vector.multi_reduction <add>, %174, %cst_67 [1] : vector<8x8xf32> to vector<8xf32>
    %176 = vector.shape_cast %175 : vector<8xf32> to vector<8x1xf32>
    %177 = tpu.transpose %166, [1, 0] : vector<8x8xf32> -> vector<8x8xf32>
    %cst_68 = arith.constant dense<0.000000e+00> : vector<8x8xf32>
    %178 = tpu.matmul %165, %177, %cst_68 {dimension_numbers = #tpu.dot_dimension_numbers<[1], [0], [0], [1], [0, 0, 1, 1], [], []>} : vector<8x8xf32>, vector<8x8xf32>, vector<8x8xf32> -> vector<8x8xf32>
    %179 = tpu.transpose %176, [1, 0] : vector<8x1xf32> -> vector<1x8xf32>
    %180 = vector.broadcast %170 : vector<8x1xf32> to vector<8x8xf32>
    %181 = vector.broadcast %179 : vector<1x8xf32> to vector<8x8xf32>
    %182 = arith.addf %180, %181 : vector<8x8xf32>
    %cst_69 = arith.constant 2.000000e+00 : f32
    %183 = vector.broadcast %cst_69 : f32 to vector<8x8xf32>
    %184 = arith.mulf %183, %178 : vector<8x8xf32>
    %185 = arith.subf %182, %184 : vector<8x8xf32>
    %cst_70 = arith.constant 0.000000e+00 : f32
    %186 = vector.broadcast %cst_70 : f32 to vector<8x8xf32>
    %187 = arith.maximumf %185, %186 : vector<8x8xf32>
    %188 = math.sqrt %187 : vector<8x8xf32>
    %cst_71 = arith.constant dense<0x7F800000> : vector<8xf32>
    %189 = vector.multi_reduction <minimumf>, %188, %cst_71 [1] : vector<8x8xf32> to vector<8xf32>
    %190 = vector.shape_cast %189 : vector<8xf32> to vector<8x1xf32>
    %191 = arith.minimumf %171, %190 : vector<8x1xf32>
    %192 = arith.subf %191, %171 : vector<8x1xf32>
    %193 = math.exp %192 : vector<8x1xf32>
    %194 = vector.broadcast %191 : vector<8x1xf32> to vector<8x8xf32>
    %195 = arith.subf %194, %188 : vector<8x8xf32>
    %196 = math.exp %195 : vector<8x8xf32>
    %197 = arith.mulf %172, %193 : vector<8x1xf32>
    %cst_72 = arith.constant dense<0.000000e+00> : vector<8xf32>
    %198 = vector.multi_reduction <add>, %196, %cst_72 [1] : vector<8x8xf32> to vector<8xf32>
    %199 = vector.shape_cast %198 : vector<8xf32> to vector<8x1xf32>
    %200 = arith.addf %197, %199 : vector<8x1xf32>
    %201 = vector.broadcast %193 : vector<8x1xf32> to vector<8x8xf32>
    %202 = arith.mulf %173, %201 : vector<8x8xf32>
    %cst_73 = arith.constant dense<0.000000e+00> : vector<8x8xf32>
    %203 = tpu.matmul %196, %167, %cst_73 {dimension_numbers = #tpu.dot_dimension_numbers<[1], [0], [0], [1], [0, 0, 1, 1], [], []>} : vector<8x8xf32>, vector<8x8xf32>, vector<8x8xf32> -> vector<8x8xf32>
    %204 = arith.addf %202, %203 : vector<8x8xf32>
    %205 = vector.broadcast %200 : vector<8x1xf32> to vector<8x8xf32>
    %206 = arith.divf %204, %205 : vector<8x8xf32>
    %207 = arith.truncf %206 : vector<8x8xf32> to vector<8x8xbf16>
    %208 = vector.extract_strided_slice %24 {offsets = [24, 0], sizes = [8, 32], strides = [1, 1]} : vector<32x32xbf16> to vector<8x32xbf16>
    %cst_74 = arith.constant dense<0.000000e+00> : vector<8x32xf32>
    %209 = tpu.matmul %207, %208, %cst_74 {dimension_numbers = #tpu.dot_dimension_numbers<[1], [0], [0], [1], [0, 0, 1, 1], [], []>} : vector<8x8xbf16>, vector<8x32xbf16>, vector<8x32xf32> -> vector<8x32xf32>
    %210 = arith.addf %164, %209 : vector<8x32xf32>
    %211 = vector.broadcast %25 : vector<1x32xf32> to vector<8x32xf32>
    %212 = arith.addf %210, %211 : vector<8x32xf32>
    %c0_75 = arith.constant 0 : index
    %c0_76 = arith.constant 0 : index
    %c0_77 = arith.constant 0 : index
    %213 = vector.load %arg12[%c0_75, %c0_76, %c0_77] : memref<2x8x32xf32, #tpu.memory_space<vmem>>, vector<1x8x32xf32>
    %214 = vector.shape_cast %213 : vector<1x8x32xf32> to vector<8x32xf32>
    %215 = vector.shape_cast %212 : vector<8x32xf32> to vector<1x8x32xf32>
    tpu.vector_store %arg12[%c0_75, %c0_76, %c0_77], %215 {strides = array<i32>} : memref<2x8x32xf32, #tpu.memory_space<vmem>>, vector<1x8x32xf32>,
    %cst_78 = arith.constant 0.000000e+00 : f32
    %216 = vector.broadcast %cst_78 : f32 to vector<8x32xf32>
    %217 = vector.extract_strided_slice %13 {offsets = [8, 0], sizes = [8, 8], strides = [1, 1]} : vector<16x32xf32> to vector<8x8xf32>
    %218 = vector.extract_strided_slice %18 {offsets = [8, 0], sizes = [8, 8], strides = [1, 1]} : vector<16x32xf32> to vector<8x8xf32>
    %219 = vector.extract_strided_slice %23 {offsets = [8, 0], sizes = [8, 8], strides = [1, 1]} : vector<16x32xf32> to vector<8x8xf32>
    %220 = arith.mulf %217, %217 : vector<8x8xf32>
    %cst_79 = arith.constant dense<0.000000e+00> : vector<8xf32>
    %221 = vector.multi_reduction <add>, %220, %cst_79 [1] : vector<8x8xf32> to vector<8xf32>
    %222 = vector.shape_cast %221 : vector<8xf32> to vector<8x1xf32>
    %cst_80 = arith.constant 0x7F800000 : f32
    %223 = vector.broadcast %cst_80 : f32 to vector<8x1xf32>
    %cst_81 = arith.constant 0.000000e+00 : f32
    %224 = vector.broadcast %cst_81 : f32 to vector<8x1xf32>
    %cst_82 = arith.constant 0.000000e+00 : f32
    %225 = vector.broadcast %cst_82 : f32 to vector<8x8xf32>
    %226 = arith.mulf %218, %218 : vector<8x8xf32>
    %cst_83 = arith.constant dense<0.000000e+00> : vector<8xf32>
    %227 = vector.multi_reduction <add>, %226, %cst_83 [1] : vector<8x8xf32> to vector<8xf32>
    %228 = vector.shape_cast %227 : vector<8xf32> to vector<8x1xf32>
    %229 = tpu.transpose %218, [1, 0] : vector<8x8xf32> -> vector<8x8xf32>
    %cst_84 = arith.constant dense<0.000000e+00> : vector<8x8xf32>
    %230 = tpu.matmul %217, %229, %cst_84 {dimension_numbers = #tpu.dot_dimension_numbers<[1], [0], [0], [1], [0, 0, 1, 1], [], []>} : vector<8x8xf32>, vector<8x8xf32>, vector<8x8xf32> -> vector<8x8xf32>
    %231 = tpu.transpose %228, [1, 0] : vector<8x1xf32> -> vector<1x8xf32>
    %232 = vector.broadcast %222 : vector<8x1xf32> to vector<8x8xf32>
    %233 = vector.broadcast %231 : vector<1x8xf32> to vector<8x8xf32>
    %234 = arith.addf %232, %233 : vector<8x8xf32>
    %cst_85 = arith.constant 2.000000e+00 : f32
    %235 = vector.broadcast %cst_85 : f32 to vector<8x8xf32>
    %236 = arith.mulf %235, %230 : vector<8x8xf32>
    %237 = arith.subf %234, %236 : vector<8x8xf32>
    %cst_86 = arith.constant 0.000000e+00 : f32
    %238 = vector.broadcast %cst_86 : f32 to vector<8x8xf32>
    %239 = arith.maximumf %237, %238 : vector<8x8xf32>
    %240 = math.sqrt %239 : vector<8x8xf32>
    %cst_87 = arith.constant dense<0x7F800000> : vector<8xf32>
    %241 = vector.multi_reduction <minimumf>, %240, %cst_87 [1] : vector<8x8xf32> to vector<8xf32>
    %242 = vector.shape_cast %241 : vector<8xf32> to vector<8x1xf32>
    %243 = arith.minimumf %223, %242 : vector<8x1xf32>
    %244 = arith.subf %243, %223 : vector<8x1xf32>
    %245 = math.exp %244 : vector<8x1xf32>
    %246 = vector.broadcast %243 : vector<8x1xf32> to vector<8x8xf32>
    %247 = arith.subf %246, %240 : vector<8x8xf32>
    %248 = math.exp %247 : vector<8x8xf32>
    %249 = arith.mulf %224, %245 : vector<8x1xf32>
    %cst_88 = arith.constant dense<0.000000e+00> : vector<8xf32>
    %250 = vector.multi_reduction <add>, %248, %cst_88 [1] : vector<8x8xf32> to vector<8xf32>
    %251 = vector.shape_cast %250 : vector<8xf32> to vector<8x1xf32>
    %252 = arith.addf %249, %251 : vector<8x1xf32>
    %253 = vector.broadcast %245 : vector<8x1xf32> to vector<8x8xf32>
    %254 = arith.mulf %225, %253 : vector<8x8xf32>
    %cst_89 = arith.constant dense<0.000000e+00> : vector<8x8xf32>
    %255 = tpu.matmul %248, %219, %cst_89 {dimension_numbers = #tpu.dot_dimension_numbers<[1], [0], [0], [1], [0, 0, 1, 1], [], []>} : vector<8x8xf32>, vector<8x8xf32>, vector<8x8xf32> -> vector<8x8xf32>
    %256 = arith.addf %254, %255 : vector<8x8xf32>
    %257 = vector.broadcast %252 : vector<8x1xf32> to vector<8x8xf32>
    %258 = arith.divf %256, %257 : vector<8x8xf32>
    %259 = arith.truncf %258 : vector<8x8xf32> to vector<8x8xbf16>
    %260 = vector.extract_strided_slice %24 {offsets = [0, 0], sizes = [8, 32], strides = [1, 1]} : vector<32x32xbf16> to vector<8x32xbf16>
    %cst_90 = arith.constant dense<0.000000e+00> : vector<8x32xf32>
    %261 = tpu.matmul %259, %260, %cst_90 {dimension_numbers = #tpu.dot_dimension_numbers<[1], [0], [0], [1], [0, 0, 1, 1], [], []>} : vector<8x8xbf16>, vector<8x32xbf16>, vector<8x32xf32> -> vector<8x32xf32>
    %262 = arith.addf %216, %261 : vector<8x32xf32>
    %263 = vector.extract_strided_slice %13 {offsets = [8, 8], sizes = [8, 8], strides = [1, 1]} : vector<16x32xf32> to vector<8x8xf32>
    %264 = vector.extract_strided_slice %18 {offsets = [8, 8], sizes = [8, 8], strides = [1, 1]} : vector<16x32xf32> to vector<8x8xf32>
    %265 = vector.extract_strided_slice %23 {offsets = [8, 8], sizes = [8, 8], strides = [1, 1]} : vector<16x32xf32> to vector<8x8xf32>
    %266 = arith.mulf %263, %263 : vector<8x8xf32>
    %cst_91 = arith.constant dense<0.000000e+00> : vector<8xf32>
    %267 = vector.multi_reduction <add>, %266, %cst_91 [1] : vector<8x8xf32> to vector<8xf32>
    %268 = vector.shape_cast %267 : vector<8xf32> to vector<8x1xf32>
    %cst_92 = arith.constant 0x7F800000 : f32
    %269 = vector.broadcast %cst_92 : f32 to vector<8x1xf32>
    %cst_93 = arith.constant 0.000000e+00 : f32
    %270 = vector.broadcast %cst_93 : f32 to vector<8x1xf32>
    %cst_94 = arith.constant 0.000000e+00 : f32
    %271 = vector.broadcast %cst_94 : f32 to vector<8x8xf32>
    %272 = arith.mulf %264, %264 : vector<8x8xf32>
    %cst_95 = arith.constant dense<0.000000e+00> : vector<8xf32>
    %273 = vector.multi_reduction <add>, %272, %cst_95 [1] : vector<8x8xf32> to vector<8xf32>
    %274 = vector.shape_cast %273 : vector<8xf32> to vector<8x1xf32>
    %275 = tpu.transpose %264, [1, 0] : vector<8x8xf32> -> vector<8x8xf32>
    %cst_96 = arith.constant dense<0.000000e+00> : vector<8x8xf32>
    %276 = tpu.matmul %263, %275, %cst_96 {dimension_numbers = #tpu.dot_dimension_numbers<[1], [0], [0], [1], [0, 0, 1, 1], [], []>} : vector<8x8xf32>, vector<8x8xf32>, vector<8x8xf32> -> vector<8x8xf32>
    %277 = tpu.transpose %274, [1, 0] : vector<8x1xf32> -> vector<1x8xf32>
    %278 = vector.broadcast %268 : vector<8x1xf32> to vector<8x8xf32>
    %279 = vector.broadcast %277 : vector<1x8xf32> to vector<8x8xf32>
    %280 = arith.addf %278, %279 : vector<8x8xf32>
    %cst_97 = arith.constant 2.000000e+00 : f32
    %281 = vector.broadcast %cst_97 : f32 to vector<8x8xf32>
    %282 = arith.mulf %281, %276 : vector<8x8xf32>
    %283 = arith.subf %280, %282 : vector<8x8xf32>
    %cst_98 = arith.constant 0.000000e+00 : f32
    %284 = vector.broadcast %cst_98 : f32 to vector<8x8xf32>
    %285 = arith.maximumf %283, %284 : vector<8x8xf32>
    %286 = math.sqrt %285 : vector<8x8xf32>
    %cst_99 = arith.constant dense<0x7F800000> : vector<8xf32>
    %287 = vector.multi_reduction <minimumf>, %286, %cst_99 [1] : vector<8x8xf32> to vector<8xf32>
    %288 = vector.shape_cast %287 : vector<8xf32> to vector<8x1xf32>
    %289 = arith.minimumf %269, %288 : vector<8x1xf32>
    %290 = arith.subf %289, %269 : vector<8x1xf32>
    %291 = math.exp %290 : vector<8x1xf32>
    %292 = vector.broadcast %289 : vector<8x1xf32> to vector<8x8xf32>
    %293 = arith.subf %292, %286 : vector<8x8xf32>
    %294 = math.exp %293 : vector<8x8xf32>
    %295 = arith.mulf %270, %291 : vector<8x1xf32>
    %cst_100 = arith.constant dense<0.000000e+00> : vector<8xf32>
    %296 = vector.multi_reduction <add>, %294, %cst_100 [1] : vector<8x8xf32> to vector<8xf32>
    %297 = vector.shape_cast %296 : vector<8xf32> to vector<8x1xf32>
    %298 = arith.addf %295, %297 : vector<8x1xf32>
    %299 = vector.broadcast %291 : vector<8x1xf32> to vector<8x8xf32>
    %300 = arith.mulf %271, %299 : vector<8x8xf32>
    %cst_101 = arith.constant dense<0.000000e+00> : vector<8x8xf32>
    %301 = tpu.matmul %294, %265, %cst_101 {dimension_numbers = #tpu.dot_dimension_numbers<[1], [0], [0], [1], [0, 0, 1, 1], [], []>} : vector<8x8xf32>, vector<8x8xf32>, vector<8x8xf32> -> vector<8x8xf32>
    %302 = arith.addf %300, %301 : vector<8x8xf32>
    %303 = vector.broadcast %298 : vector<8x1xf32> to vector<8x8xf32>
    %304 = arith.divf %302, %303 : vector<8x8xf32>
    %305 = arith.truncf %304 : vector<8x8xf32> to vector<8x8xbf16>
    %306 = vector.extract_strided_slice %24 {offsets = [8, 0], sizes = [8, 32], strides = [1, 1]} : vector<32x32xbf16> to vector<8x32xbf16>
    %cst_102 = arith.constant dense<0.000000e+00> : vector<8x32xf32>
    %307 = tpu.matmul %305, %306, %cst_102 {dimension_numbers = #tpu.dot_dimension_numbers<[1], [0], [0], [1], [0, 0, 1, 1], [], []>} : vector<8x8xbf16>, vector<8x32xbf16>, vector<8x32xf32> -> vector<8x32xf32>
    %308 = arith.addf %262, %307 : vector<8x32xf32>
    %309 = vector.extract_strided_slice %13 {offsets = [8, 16], sizes = [8, 8], strides = [1, 1]} : vector<16x32xf32> to vector<8x8xf32>
    %310 = vector.extract_strided_slice %18 {offsets = [8, 16], sizes = [8, 8], strides = [1, 1]} : vector<16x32xf32> to vector<8x8xf32>
    %311 = vector.extract_strided_slice %23 {offsets = [8, 16], sizes = [8, 8], strides = [1, 1]} : vector<16x32xf32> to vector<8x8xf32>
    %312 = arith.mulf %309, %309 : vector<8x8xf32>
    %cst_103 = arith.constant dense<0.000000e+00> : vector<8xf32>
    %313 = vector.multi_reduction <add>, %312, %cst_103 [1] : vector<8x8xf32> to vector<8xf32>
    %314 = vector.shape_cast %313 : vector<8xf32> to vector<8x1xf32>
    %cst_104 = arith.constant 0x7F800000 : f32
    %315 = vector.broadcast %cst_104 : f32 to vector<8x1xf32>
    %cst_105 = arith.constant 0.000000e+00 : f32
    %316 = vector.broadcast %cst_105 : f32 to vector<8x1xf32>
    %cst_106 = arith.constant 0.000000e+00 : f32
    %317 = vector.broadcast %cst_106 : f32 to vector<8x8xf32>
    %318 = arith.mulf %310, %310 : vector<8x8xf32>
    %cst_107 = arith.constant dense<0.000000e+00> : vector<8xf32>
    %319 = vector.multi_reduction <add>, %318, %cst_107 [1] : vector<8x8xf32> to vector<8xf32>
    %320 = vector.shape_cast %319 : vector<8xf32> to vector<8x1xf32>
    %321 = tpu.transpose %310, [1, 0] : vector<8x8xf32> -> vector<8x8xf32>
    %cst_108 = arith.constant dense<0.000000e+00> : vector<8x8xf32>
    %322 = tpu.matmul %309, %321, %cst_108 {dimension_numbers = #tpu.dot_dimension_numbers<[1], [0], [0], [1], [0, 0, 1, 1], [], []>} : vector<8x8xf32>, vector<8x8xf32>, vector<8x8xf32> -> vector<8x8xf32>
    %323 = tpu.transpose %320, [1, 0] : vector<8x1xf32> -> vector<1x8xf32>
    %324 = vector.broadcast %314 : vector<8x1xf32> to vector<8x8xf32>
    %325 = vector.broadcast %323 : vector<1x8xf32> to vector<8x8xf32>
    %326 = arith.addf %324, %325 : vector<8x8xf32>
    %cst_109 = arith.constant 2.000000e+00 : f32
    %327 = vector.broadcast %cst_109 : f32 to vector<8x8xf32>
    %328 = arith.mulf %327, %322 : vector<8x8xf32>
    %329 = arith.subf %326, %328 : vector<8x8xf32>
    %cst_110 = arith.constant 0.000000e+00 : f32
    %330 = vector.broadcast %cst_110 : f32 to vector<8x8xf32>
    %331 = arith.maximumf %329, %330 : vector<8x8xf32>
    %332 = math.sqrt %331 : vector<8x8xf32>
    %cst_111 = arith.constant dense<0x7F800000> : vector<8xf32>
    %333 = vector.multi_reduction <minimumf>, %332, %cst_111 [1] : vector<8x8xf32> to vector<8xf32>
    %334 = vector.shape_cast %333 : vector<8xf32> to vector<8x1xf32>
    %335 = arith.minimumf %315, %334 : vector<8x1xf32>
    %336 = arith.subf %335, %315 : vector<8x1xf32>
    %337 = math.exp %336 : vector<8x1xf32>
    %338 = vector.broadcast %335 : vector<8x1xf32> to vector<8x8xf32>
    %339 = arith.subf %338, %332 : vector<8x8xf32>
    %340 = math.exp %339 : vector<8x8xf32>
    %341 = arith.mulf %316, %337 : vector<8x1xf32>
    %cst_112 = arith.constant dense<0.000000e+00> : vector<8xf32>
    %342 = vector.multi_reduction <add>, %340, %cst_112 [1] : vector<8x8xf32> to vector<8xf32>
    %343 = vector.shape_cast %342 : vector<8xf32> to vector<8x1xf32>
    %344 = arith.addf %341, %343 : vector<8x1xf32>
    %345 = vector.broadcast %337 : vector<8x1xf32> to vector<8x8xf32>
    %346 = arith.mulf %317, %345 : vector<8x8xf32>
    %cst_113 = arith.constant dense<0.000000e+00> : vector<8x8xf32>
    %347 = tpu.matmul %340, %311, %cst_113 {dimension_numbers = #tpu.dot_dimension_numbers<[1], [0], [0], [1], [0, 0, 1, 1], [], []>} : vector<8x8xf32>, vector<8x8xf32>, vector<8x8xf32> -> vector<8x8xf32>
    %348 = arith.addf %346, %347 : vector<8x8xf32>
    %349 = vector.broadcast %344 : vector<8x1xf32> to vector<8x8xf32>
    %350 = arith.divf %348, %349 : vector<8x8xf32>
    %351 = arith.truncf %350 : vector<8x8xf32> to vector<8x8xbf16>
    %352 = vector.extract_strided_slice %24 {offsets = [16, 0], sizes = [8, 32], strides = [1, 1]} : vector<32x32xbf16> to vector<8x32xbf16>
    %cst_114 = arith.constant dense<0.000000e+00> : vector<8x32xf32>
    %353 = tpu.matmul %351, %352, %cst_114 {dimension_numbers = #tpu.dot_dimension_numbers<[1], [0], [0], [1], [0, 0, 1, 1], [], []>} : vector<8x8xbf16>, vector<8x32xbf16>, vector<8x32xf32> -> vector<8x32xf32>
    %354 = arith.addf %308, %353 : vector<8x32xf32>
    %355 = vector.extract_strided_slice %13 {offsets = [8, 24], sizes = [8, 8], strides = [1, 1]} : vector<16x32xf32> to vector<8x8xf32>
    %356 = vector.extract_strided_slice %18 {offsets = [8, 24], sizes = [8, 8], strides = [1, 1]} : vector<16x32xf32> to vector<8x8xf32>
    %357 = vector.extract_strided_slice %23 {offsets = [8, 24], sizes = [8, 8], strides = [1, 1]} : vector<16x32xf32> to vector<8x8xf32>
    %358 = arith.mulf %355, %355 : vector<8x8xf32>
    %cst_115 = arith.constant dense<0.000000e+00> : vector<8xf32>
    %359 = vector.multi_reduction <add>, %358, %cst_115 [1] : vector<8x8xf32> to vector<8xf32>
    %360 = vector.shape_cast %359 : vector<8xf32> to vector<8x1xf32>
    %cst_116 = arith.constant 0x7F800000 : f32
    %361 = vector.broadcast %cst_116 : f32 to vector<8x1xf32>
    %cst_117 = arith.constant 0.000000e+00 : f32
    %362 = vector.broadcast %cst_117 : f32 to vector<8x1xf32>
    %cst_118 = arith.constant 0.000000e+00 : f32
    %363 = vector.broadcast %cst_118 : f32 to vector<8x8xf32>
    %364 = arith.mulf %356, %356 : vector<8x8xf32>
    %cst_119 = arith.constant dense<0.000000e+00> : vector<8xf32>
    %365 = vector.multi_reduction <add>, %364, %cst_119 [1] : vector<8x8xf32> to vector<8xf32>
    %366 = vector.shape_cast %365 : vector<8xf32> to vector<8x1xf32>
    %367 = tpu.transpose %356, [1, 0] : vector<8x8xf32> -> vector<8x8xf32>
    %cst_120 = arith.constant dense<0.000000e+00> : vector<8x8xf32>
    %368 = tpu.matmul %355, %367, %cst_120 {dimension_numbers = #tpu.dot_dimension_numbers<[1], [0], [0], [1], [0, 0, 1, 1], [], []>} : vector<8x8xf32>, vector<8x8xf32>, vector<8x8xf32> -> vector<8x8xf32>
    %369 = tpu.transpose %366, [1, 0] : vector<8x1xf32> -> vector<1x8xf32>
    %370 = vector.broadcast %360 : vector<8x1xf32> to vector<8x8xf32>
    %371 = vector.broadcast %369 : vector<1x8xf32> to vector<8x8xf32>
    %372 = arith.addf %370, %371 : vector<8x8xf32>
    %cst_121 = arith.constant 2.000000e+00 : f32
    %373 = vector.broadcast %cst_121 : f32 to vector<8x8xf32>
    %374 = arith.mulf %373, %368 : vector<8x8xf32>
    %375 = arith.subf %372, %374 : vector<8x8xf32>
    %cst_122 = arith.constant 0.000000e+00 : f32
    %376 = vector.broadcast %cst_122 : f32 to vector<8x8xf32>
    %377 = arith.maximumf %375, %376 : vector<8x8xf32>
    %378 = math.sqrt %377 : vector<8x8xf32>
    %cst_123 = arith.constant dense<0x7F800000> : vector<8xf32>
    %379 = vector.multi_reduction <minimumf>, %378, %cst_123 [1] : vector<8x8xf32> to vector<8xf32>
    %380 = vector.shape_cast %379 : vector<8xf32> to vector<8x1xf32>
    %381 = arith.minimumf %361, %380 : vector<8x1xf32>
    %382 = arith.subf %381, %361 : vector<8x1xf32>
    %383 = math.exp %382 : vector<8x1xf32>
    %384 = vector.broadcast %381 : vector<8x1xf32> to vector<8x8xf32>
    %385 = arith.subf %384, %378 : vector<8x8xf32>
    %386 = math.exp %385 : vector<8x8xf32>
    %387 = arith.mulf %362, %383 : vector<8x1xf32>
    %cst_124 = arith.constant dense<0.000000e+00> : vector<8xf32>
    %388 = vector.multi_reduction <add>, %386, %cst_124 [1] : vector<8x8xf32> to vector<8xf32>
    %389 = vector.shape_cast %388 : vector<8xf32> to vector<8x1xf32>
    %390 = arith.addf %387, %389 : vector<8x1xf32>
    %391 = vector.broadcast %383 : vector<8x1xf32> to vector<8x8xf32>
    %392 = arith.mulf %363, %391 : vector<8x8xf32>
    %cst_125 = arith.constant dense<0.000000e+00> : vector<8x8xf32>
    %393 = tpu.matmul %386, %357, %cst_125 {dimension_numbers = #tpu.dot_dimension_numbers<[1], [0], [0], [1], [0, 0, 1, 1], [], []>} : vector<8x8xf32>, vector<8x8xf32>, vector<8x8xf32> -> vector<8x8xf32>
    %394 = arith.addf %392, %393 : vector<8x8xf32>
    %395 = vector.broadcast %390 : vector<8x1xf32> to vector<8x8xf32>
    %396 = arith.divf %394, %395 : vector<8x8xf32>
    %397 = arith.truncf %396 : vector<8x8xf32> to vector<8x8xbf16>
    %398 = vector.extract_strided_slice %24 {offsets = [24, 0], sizes = [8, 32], strides = [1, 1]} : vector<32x32xbf16> to vector<8x32xbf16>
    %cst_126 = arith.constant dense<0.000000e+00> : vector<8x32xf32>
    %399 = tpu.matmul %397, %398, %cst_126 {dimension_numbers = #tpu.dot_dimension_numbers<[1], [0], [0], [1], [0, 0, 1, 1], [], []>} : vector<8x8xbf16>, vector<8x32xbf16>, vector<8x32xf32> -> vector<8x32xf32>
    %400 = arith.addf %354, %399 : vector<8x32xf32>
    %401 = vector.broadcast %25 : vector<1x32xf32> to vector<8x32xf32>
    %402 = arith.addf %400, %401 : vector<8x32xf32>
    %c1 = arith.constant 1 : index
    %c0_127 = arith.constant 0 : index
    %c0_128 = arith.constant 0 : index
    %403 = vector.load %arg12[%c1, %c0_127, %c0_128] : memref<2x8x32xf32, #tpu.memory_space<vmem>>, vector<1x8x32xf32>
    %404 = vector.shape_cast %403 : vector<1x8x32xf32> to vector<8x32xf32>
    %405 = vector.shape_cast %402 : vector<8x32xf32> to vector<1x8x32xf32>
    tpu.vector_store %arg12[%c1, %c0_127, %c0_128], %405 {strides = array<i32>} : memref<2x8x32xf32, #tpu.memory_space<vmem>>, vector<1x8x32xf32>,
    return
  }
  func.func @transform_0(%arg0: i32) -> (i32, i32, i32) {
    %c0_i32 = arith.constant 0 : i32
    %c0_i32_0 = arith.constant 0 : i32
    %c0_i32_1 = arith.constant 0 : i32
    return %arg0, %c0_i32, %c0_i32_0 : i32, i32, i32
  }
  func.func @transform_1(%arg0: i32) -> (i32, i32, i32) {
    %c0_i32 = arith.constant 0 : i32
    %c0_i32_0 = arith.constant 0 : i32
    %c0_i32_1 = arith.constant 0 : i32
    return %arg0, %c0_i32, %c0_i32_0 : i32, i32, i32
  }
  func.func @transform_2(%arg0: i32) -> (i32, i32, i32) {
    %c0_i32 = arith.constant 0 : i32
    %c0_i32_0 = arith.constant 0 : i32
    %c0_i32_1 = arith.constant 0 : i32
    return %arg0, %c0_i32, %c0_i32_0 : i32, i32, i32
  }
  func.func @transform_3(%arg0: i32) -> (i32, i32) {
    %c0_i32 = arith.constant 0 : i32
    %c0_i32_0 = arith.constant 0 : i32
    %c0_i32_1 = arith.constant 0 : i32
    return %c0_i32, %c0_i32_0 : i32, i32
  }
  func.func @transform_4(%arg0: i32) -> (i32, i32) {
    %c0_i32 = arith.constant 0 : i32
    %c0_i32_0 = arith.constant 0 : i32
    %c0_i32_1 = arith.constant 0 : i32
    return %c0_i32, %c0_i32_0 : i32, i32
  }
  func.func @transform_5(%arg0: i32) -> (i32, i32) {
    %c0_i32 = arith.constant 0 : i32
    %c0_i32_0 = arith.constant 0 : i32
    %c0_i32_1 = arith.constant 0 : i32
    return %c0_i32, %c0_i32_0 : i32, i32
  }
  func.func @transform_6(%arg0: i32) -> (i32, i32) {
    %c0_i32 = arith.constant 0 : i32
    %c0_i32_0 = arith.constant 0 : i32
    %c0_i32_1 = arith.constant 0 : i32
    return %c0_i32, %c0_i32_0 : i32, i32
  }
  func.func @transform_7(%arg0: i32) -> (i32, i32) {
    %c0_i32 = arith.constant 0 : i32
    %c0_i32_0 = arith.constant 0 : i32
    %c0_i32_1 = arith.constant 0 : i32
    return %c0_i32, %c0_i32_0 : i32, i32
  }
  func.func @transform_8(%arg0: i32) -> (i32, i32) {
    %c0_i32 = arith.constant 0 : i32
    %c0_i32_0 = arith.constant 0 : i32
    %c0_i32_1 = arith.constant 0 : i32
    return %c0_i32, %c0_i32_0 : i32, i32
  }
  func.func @transform_9(%arg0: i32) -> (i32, i32) {
    %c0_i32 = arith.constant 0 : i32
    %c0_i32_0 = arith.constant 0 : i32
    %c0_i32_1 = arith.constant 0 : i32
    return %c0_i32, %c0_i32_0 : i32, i32
  }
  func.func @transform_10(%arg0: i32) -> (i32, i32) {
    %c0_i32 = arith.constant 0 : i32
    %c0_i32_0 = arith.constant 0 : i32
    %c0_i32_1 = arith.constant 0 : i32
    return %c0_i32, %c0_i32_0 : i32, i32
  }
  func.func @transform_11(%arg0: i32) -> (i32, i32, i32) {
    %c0_i32 = arith.constant 0 : i32
    %c0_i32_0 = arith.constant 0 : i32
    %c0_i32_1 = arith.constant 0 : i32
    return %arg0, %c0_i32, %c0_i32_0 : i32, i32, i32
  }
}

</mosaic_0001>

<llo_original>
// kernel: tpu_custom_call.1
$region0: #{tpu_custom_call.1}
  #allocation0 [shape = 'u32[]', space=smem, size = 0x4, offset = 0x4, fixed_abs, tag = 'smem constant byte address 0x4 - core index']
  #allocation1 [shape = 'u32[144,128]{1,0:T(1,128)}', space=vmem, size = 0x12000, scoped, tag = 'internal scratch']
  %s0 = inlined_call_operand.hbm [shape: f32[2,8,32], index: 0, kind: input, shape index: {}]
  %s1 = inlined_call_operand.hbm [shape: f32[2,8,32], index: 1, kind: input, shape index: {}]
  %s2 = inlined_call_operand.hbm [shape: f32[2,8,32], index: 2, kind: input, shape index: {}]
  %s3 = inlined_call_operand.hbm [shape: bf16[32,32], index: 3, kind: input, shape index: {}]
  %s4 = inlined_call_operand.hbm [shape: bf16[32,32], index: 4, kind: input, shape index: {}]
  %s5 = inlined_call_operand.vmem [shape: bf16[32,32], index: 5, kind: input, shape index: {}]
  %s6 = inlined_call_operand.hbm [shape: bf16[32,32], index: 6, kind: input, shape index: {}]
  %s7 = inlined_call_operand.vmem [shape: f32[1,32], index: 7, kind: input, shape index: {}]
  %s8 = inlined_call_operand.vmem [shape: f32[1,32], index: 8, kind: input, shape index: {}]
  %s9 = inlined_call_operand.vmem [shape: f32[1,32], index: 9, kind: input, shape index: {}]
  %s10 = inlined_call_operand.vmem [shape: f32[1,32], index: 10, kind: input, shape index: {}]
  %s11 = inlined_call_operand.hbm [shape: f32[2,8,32], index: 11, kind: output, shape index: {}]
  %s12 = sld [smem:[#allocation0]]
  $region78: #{tpu_custom_call.1} parent=0
    _
  %s14 = ssub.s32 1, %s12
  %s15 = scalar_select 0, %s14, %s12
  $region1: #{tpu_custom_call.1} parent=0
    #allocation2 [shape = 'u8[8192]{0}', space=vmem, size = 0x2000, scoped, tag = 'input window, operand 0, single buffered']
    #allocation3 [shape = 's32[1]{0}', space=sflag, size = 0x4, scoped, tag = 'scoped memory for tpu_custom_call.1']
    #allocation4 [shape = 's32[1]{0}', space=sflag, size = 0x4, scoped, tag = 'scoped memory for tpu_custom_call.1']
    #allocation5 [shape = 'u8[8192]{0}', space=vmem, size = 0x2000, scoped, tag = 'input window, operand 1, single buffered']
    #allocation6 [shape = 's32[1]{0}', space=sflag, size = 0x4, scoped, tag = 'scoped memory for tpu_custom_call.1']
    #allocation7 [shape = 'u8[8192]{0}', space=vmem, size = 0x2000, scoped, tag = 'input window, operand 2, single buffered']
    #allocation8 [shape = 'u8[8192]{0}', space=vmem, size = 0x2000, scoped, tag = 'input window, operand 3, single buffered']
    #allocation9 [shape = 's32[1]{0}', space=sflag, size = 0x4, scoped, tag = 'scoped memory for tpu_custom_call.1']
    #allocation10 [shape = 'u8[8192]{0}', space=vmem, size = 0x2000, scoped, tag = 'input window, operand 4, single buffered']
    #allocation11 [shape = 'u8[8192]{0}', space=vmem, size = 0x2000, scoped, tag = 'input window, operand 6, single buffered']
    #allocation12 [shape = 's32[1]{0}', space=sflag, size = 0x4, scoped, tag = 'scoped memory for tpu_custom_call.1']
    #allocation13 [shape = 'u8[8192]{0}', space=vmem, size = 0x2000, scoped, tag = 'output window, operand 0, single buffered']
    %16 = vsyncpa [#allocation3], 0
    %17 = vsyncpa [#allocation6], 0
    %18 = vsyncpa [#allocation9], 0
    %19 = vsyncpa [#allocation12], 0
    %20 = vsyncpa [#allocation4], 0
    // Predicated region
    $region2: #{tpu_custom_call.1} parent=1 // pred_check
      _
    $region3: #{tpu_custom_call.1} parent=1 // pred_check_branch
      %22 = sbr.rel (0) target = $region5
    $region4: #{tpu_custom_call.1} parent=1 // pred_region
      %s24 = ssub.s32 256, 256
      %25 = vsyncadd [#allocation3], %s24
      %s26 = sshll.u32 [#allocation2], 4
      %s27 = int_to_ptr.vmem [resolvable:$true] %s26
      %32 = dma.hbm_to_vmem [thread:$0]  %s0, 256, %s27, [#allocation3], 128, 128, 8
    $region5: #{tpu_custom_call.1} parent=1 // pred_fallthru
      _
    // Predicated region
    $region6: #{tpu_custom_call.1} parent=1 // pred_check
      _
    $region7: #{tpu_custom_call.1} parent=1 // pred_check_branch
      %34 = sbr.rel (0) target = $region9
    $region8: #{tpu_custom_call.1} parent=1 // pred_region
      %s36 = ssub.s32 256, 256
      %37 = vsyncadd [#allocation6], %s36
      %s38 = sshll.u32 [#allocation5], 4
      %s39 = int_to_ptr.vmem [resolvable:$true] %s38
      %44 = dma.hbm_to_vmem [thread:$0]  %s1, 256, %s39, [#allocation6], 128, 128, 8
    $region9: #{tpu_custom_call.1} parent=1 // pred_fallthru
      _
    // Predicated region
    $region10: #{tpu_custom_call.1} parent=1 // pred_check
      _
    $region11: #{tpu_custom_call.1} parent=1 // pred_check_branch
      %46 = sbr.rel (0) target = $region13
    $region12: #{tpu_custom_call.1} parent=1 // pred_region
      %s48 = ssub.s32 256, 256
      %49 = vsyncadd [#allocation6], %s48
      %s50 = sshll.u32 [#allocation7], 4
      %s51 = int_to_ptr.vmem [resolvable:$true] %s50
      %56 = dma.hbm_to_vmem [thread:$0]  %s2, 256, %s51, [#allocation6], 128, 128, 8
    $region13: #{tpu_custom_call.1} parent=1 // pred_fallthru
      _
    // Predicated region
    $region14: #{tpu_custom_call.1} parent=1 // pred_check
      _
    $region15: #{tpu_custom_call.1} parent=1 // pred_check_branch
      %58 = sbr.rel (0) target = $region17
    $region16: #{tpu_custom_call.1} parent=1 // pred_region
      %s60 = ssub.s32 256, 256
      %61 = vsyncadd [#allocation9], %s60
      %s62 = sshll.u32 [#allocation8], 4
      %s63 = int_to_ptr.vmem [resolvable:$true] %s62
      %68 = dma.hbm_to_vmem [thread:$0]  %s3, 256, %s63, [#allocation9], 64, 64, 4
    $region17: #{tpu_custom_call.1} parent=1 // pred_fallthru
      _
    // Predicated region
    $region18: #{tpu_custom_call.1} parent=1 // pred_check
      _
    $region19: #{tpu_custom_call.1} parent=1 // pred_check_branch
      %70 = sbr.rel (0) target = $region21
    $region20: #{tpu_custom_call.1} parent=1 // pred_region
      %s72 = ssub.s32 256, 256
      %73 = vsyncadd [#allocation9], %s72
      %s74 = sshll.u32 [#allocation10], 4
      %s75 = int_to_ptr.vmem [resolvable:$true] %s74
      %80 = dma.hbm_to_vmem [thread:$0]  %s4, 256, %s75, [#allocation9], 64, 64, 4
    $region21: #{tpu_custom_call.1} parent=1 // pred_fallthru
      _
    // Predicated region
    $region22: #{tpu_custom_call.1} parent=1 // pred_check
      _
    $region23: #{tpu_custom_call.1} parent=1 // pred_check_branch
      %82 = sbr.rel (0) target = $region25
    $region24: #{tpu_custom_call.1} parent=1 // pred_region
      _
    $region25: #{tpu_custom_call.1} parent=1 // pred_fallthru
      _
    // Predicated region
    $region26: #{tpu_custom_call.1} parent=1 // pred_check
      _
    $region27: #{tpu_custom_call.1} parent=1 // pred_check_branch
      %84 = sbr.rel (0) target = $region29
    $region28: #{tpu_custom_call.1} parent=1 // pred_region
      %s86 = ssub.s32 256, 256
      %87 = vsyncadd [#allocation12], %s86
      %s88 = sshll.u32 [#allocation11], 4
      %s89 = int_to_ptr.vmem [resolvable:$true] %s88
      %94 = dma.hbm_to_vmem [thread:$0]  %s6, 256, %s89, [#allocation12], 64, 64, 4
    $region29: #{tpu_custom_call.1} parent=1 // pred_fallthru
      _
    // Predicated region
    $region30: #{tpu_custom_call.1} parent=1 // pred_check
      _
    $region31: #{tpu_custom_call.1} parent=1 // pred_check_branch
      %96 = sbr.rel (0) target = $region33
    $region32: #{tpu_custom_call.1} parent=1 // pred_region
      _
    $region33: #{tpu_custom_call.1} parent=1 // pred_fallthru
      _
    // Predicated region
    $region34: #{tpu_custom_call.1} parent=1 // pred_check
      _
    $region35: #{tpu_custom_call.1} parent=1 // pred_check_branch
      %98 = sbr.rel (0) target = $region37
    $region36: #{tpu_custom_call.1} parent=1 // pred_region
      _
    $region37: #{tpu_custom_call.1} parent=1 // pred_fallthru
      _
    // Predicated region
    $region38: #{tpu_custom_call.1} parent=1 // pred_check
      _
    $region39: #{tpu_custom_call.1} parent=1 // pred_check_branch
      %100 = sbr.rel (0) target = $region41
    $region40: #{tpu_custom_call.1} parent=1 // pred_region
      _
    $region41: #{tpu_custom_call.1} parent=1 // pred_fallthru
      _
    // Predicated region
    $region42: #{tpu_custom_call.1} parent=1 // pred_check
      _
    $region43: #{tpu_custom_call.1} parent=1 // pred_check_branch
      %102 = sbr.rel (0) target = $region45
    $region44: #{tpu_custom_call.1} parent=1 // pred_region
      _
    $region45: #{tpu_custom_call.1} parent=1 // pred_fallthru
      _
    // Predicated region
    $region46: #{tpu_custom_call.1} parent=1 // pred_check
      _
    $region47: #{tpu_custom_call.1} parent=1 // pred_check_branch
      %104 = sbr.rel (0) target = $region49
    $region48: #{tpu_custom_call.1} parent=1 // pred_region
      %105 = dma.done [#allocation3], 256
    $region49: #{tpu_custom_call.1} parent=1 // pred_fallthru
      _
    // Predicated region
    $region50: #{tpu_custom_call.1} parent=1 // pred_check
      _
    $region51: #{tpu_custom_call.1} parent=1 // pred_check_branch
      %107 = sbr.rel (0) target = $region53
    $region52: #{tpu_custom_call.1} parent=1 // pred_region
      %108 = dma.done [#allocation6], 256
    $region53: #{tpu_custom_call.1} parent=1 // pred_fallthru
      _
    // Predicated region
    $region54: #{tpu_custom_call.1} parent=1 // pred_check
      _
    $region55: #{tpu_custom_call.1} parent=1 // pred_check_branch
      %110 = sbr.rel (0) target = $region57
    $region56: #{tpu_custom_call.1} parent=1 // pred_region
      %111 = dma.done [#allocation6], 256
    $region57: #{tpu_custom_call.1} parent=1 // pred_fallthru
      _
    // Predicated region
    $region58: #{tpu_custom_call.1} parent=1 // pred_check
      _
    $region59: #{tpu_custom_call.1} parent=1 // pred_check_branch
      %113 = sbr.rel (0) target = $region61
    $region60: #{tpu_custom_call.1} parent=1 // pred_region
      %114 = dma.done [#allocation9], 256
    $region61: #{tpu_custom_call.1} parent=1 // pred_fallthru
      _
    // Predicated region
    $region62: #{tpu_custom_call.1} parent=1 // pred_check
      _
    $region63: #{tpu_custom_call.1} parent=1 // pred_check_branch
      %116 = sbr.rel (0) target = $region65
    $region64: #{tpu_custom_call.1} parent=1 // pred_region
      %117 = dma.done [#allocation9], 256
    $region65: #{tpu_custom_call.1} parent=1 // pred_fallthru
      _
    // Predicated region
    $region66: #{tpu_custom_call.1} parent=1 // pred_check
      _
    $region67: #{tpu_custom_call.1} parent=1 // pred_check_branch
      %119 = sbr.rel (0) target = $region69
    $region68: #{tpu_custom_call.1} parent=1 // pred_region
      %120 = dma.done [#allocation12], 256
    $region69: #{tpu_custom_call.1} parent=1 // pred_fallthru
      _
    %v122 = vld [vmem:[#allocation2] sm:$0xff]
    %v123 = vld [vmem:[#allocation2 + $0x8] sm:$0xff]
    %v124 = vpack.c.bf16 %v123, %v122
    %v125 = vld [vmem:[#allocation5] sm:$0xff]
    %v126 = vld [vmem:[#allocation5 + $0x8] sm:$0xff]
    %v127 = vpack.c.bf16 %v126, %v125
    %v128 = vld [vmem:[#allocation7] sm:$0xff]
    %v129 = vld [vmem:[#allocation7 + $0x8] sm:$0xff]
    %v130 = vpack.c.bf16 %v129, %v128
    %v131 = vld [vmem:[#allocation8] sm:$0xf]
    %v132 = vld [vmem:[#allocation8 + $0x4] sm:$0xf]
    %v133 = vld [vmem:[#allocation8 + $0x8] sm:$0xf]
    %v134 = vld [vmem:[#allocation8 + $0xc] sm:$0xf]
    %v135 = vld [vmem:[%s7] sm:$0x1]
    %v137 = vlaneseq
    %v138 = vshrl.u32 %v137, 7
    %v139 = vsub.s32 0, %v138
    %v140 = vrot.slane %v135, %v139
    %v146 = vunpack.c.l.b16 %v131
    %v147 = vunpack.c.l.b16 %v132
    %v148 = vunpack.c.l.b16 %v133
    %v149 = vunpack.c.l.b16 %v134
    %v150 = vpack.c.b16 %v147, %v146
    %v151 = vpack.c.b16 %v149, %v148
    %vm154 = vcmask 261120
    %v156 = vsel %vm154, %v124, 0
    %158 = vmatprep.subr.bf16.mxu0 0
    %159 = vmatpush1.bf16.msra.mxu0 %v150
    %160 = vmatprep.subr.bf16.mxu0 0
    %161 = vmatpush1.bf16.msra.mxu0 %v151
    %162 = vmatprep.subr.bf16.mxu0 0
    %163 = vmatpush1.bf16.msra.mxu0 0
    %164 = vmatprep.subr.bf16.mxu0 0
    %165 = vmatpush1.bf16.msra.mxu0 0
    %166 = vmatprep.subr.bf16.mxu0 0
    %167 = vmatpush1.bf16.msra.mxu0 0
    %168 = vmatprep.subr.bf16.mxu0 0
    %169 = vmatpush1.bf16.msra.mxu0 0
    %170 = vmatprep.subr.bf16.mxu0 0
    %171 = vmatpush1.bf16.msra.mxu0 0
    %172 = vmatprep.subr.bf16.mxu0 0
    %173 = vmatpush1.bf16.msra.mxu0 0
    %174 = vmatprep.subr.bf16.mxu0 0
    %175 = vmatpush1.bf16.msra.mxu0 0
    %176 = vmatprep.subr.bf16.mxu0 0
    %177 = vmatpush1.bf16.msra.mxu0 0
    %178 = vmatprep.subr.bf16.mxu0 0
    %179 = vmatpush1.bf16.msra.mxu0 0
    %180 = vmatprep.subr.bf16.mxu0 0
    %181 = vmatpush1.bf16.msra.mxu0 0
    %182 = vmatprep.subr.bf16.mxu0 0
    %183 = vmatpush1.bf16.msra.mxu0 0
    %184 = vmatprep.subr.bf16.mxu0 0
    %185 = vmatpush1.bf16.msra.mxu0 0
    %186 = vmatprep.subr.bf16.mxu0 0
    %187 = vmatpush1.bf16.msra.mxu0 0
    %188 = vmatprep.subr.bf16.mxu0 0
    %189 = vmatpush1.bf16.msra.mxu0 0
    %190 = vmatprep.mubr.bf16.mxu0 0
    %191 = vmatmul.mubr.bf16.gmra.mrb[0].mxu0 %v156
    %v192 = vpop.f32.mrb[0].mxu0
    %v193 = vadd.f32 %v140, %v192
    %v194 = vpop.f32.mrb[0].mxu0
    %v195 = vpop.f32.mrb[0].mxu0
    %v196 = vadd.f32 %v140, %v195
    %v197 = vpop.f32.mrb[0].mxu0
    %198 = vdwg.mxu0
    %v199 = vld [vmem:[#allocation10] sm:$0xf]
    %v200 = vld [vmem:[#allocation10 + $0x4] sm:$0xf]
    %v201 = vld [vmem:[#allocation10 + $0x8] sm:$0xf]
    %v202 = vld [vmem:[#allocation10 + $0xc] sm:$0xf]
    %v203 = vld [vmem:[%s8] sm:$0x1]
    %v205 = vlaneseq
    %v206 = vshrl.u32 %v205, 7
    %v207 = vsub.s32 0, %v206
    %v208 = vrot.slane %v203, %v207
    %v214 = vunpack.c.l.b16 %v199
    %v215 = vunpack.c.l.b16 %v200
    %v216 = vunpack.c.l.b16 %v201
    %v217 = vunpack.c.l.b16 %v202
    %v218 = vpack.c.b16 %v215, %v214
    %v219 = vpack.c.b16 %v217, %v216
    %v223 = vsel %vm154, %v127, 0
    %225 = vmatprep.subr.bf16.mxu0 0
    %226 = vmatpush1.bf16.msra.mxu0 %v218
    %227 = vmatprep.subr.bf16.mxu0 0
    %228 = vmatpush1.bf16.msra.mxu0 %v219
    %229 = vmatprep.subr.bf16.mxu0 0
    %230 = vmatpush1.bf16.msra.mxu0 0
    %231 = vmatprep.subr.bf16.mxu0 0
    %232 = vmatpush1.bf16.msra.mxu0 0
    %233 = vmatprep.subr.bf16.mxu0 0
    %234 = vmatpush1.bf16.msra.mxu0 0
    %235 = vmatprep.subr.bf16.mxu0 0
    %236 = vmatpush1.bf16.msra.mxu0 0
    %237 = vmatprep.subr.bf16.mxu0 0
    %238 = vmatpush1.bf16.msra.mxu0 0
    %239 = vmatprep.subr.bf16.mxu0 0
    %240 = vmatpush1.bf16.msra.mxu0 0
    %241 = vmatprep.subr.bf16.mxu0 0
    %242 = vmatpush1.bf16.msra.mxu0 0
    %243 = vmatprep.subr.bf16.mxu0 0
    %244 = vmatpush1.bf16.msra.mxu0 0
    %245 = vmatprep.subr.bf16.mxu0 0
    %246 = vmatpush1.bf16.msra.mxu0 0
    %247 = vmatprep.subr.bf16.mxu0 0
    %248 = vmatpush1.bf16.msra.mxu0 0
    %249 = vmatprep.subr.bf16.mxu0 0
    %250 = vmatpush1.bf16.msra.mxu0 0
    %251 = vmatprep.subr.bf16.mxu0 0
    %252 = vmatpush1.bf16.msra.mxu0 0
    %253 = vmatprep.subr.bf16.mxu0 0
    %254 = vmatpush1.bf16.msra.mxu0 0
    %255 = vmatprep.subr.bf16.mxu0 0
    %256 = vmatpush1.bf16.msra.mxu0 0
    %257 = vmatprep.mubr.bf16.mxu0 0
    %258 = vmatmul.mubr.bf16.gmra.mrb[0].mxu0 %v223
    %v259 = vpop.f32.mrb[0].mxu0
    %v260 = vadd.f32 %v208, %v259
    %v261 = vpop.f32.mrb[0].mxu0
    %v262 = vpop.f32.mrb[0].mxu0
    %v263 = vadd.f32 %v208, %v262
    %v264 = vpop.f32.mrb[0].mxu0
    %265 = vdwg.mxu0
    %v266 = vld [vmem:[%s5] sm:$0xf]
    %v267 = vld [vmem:[%s5 + $0x4] sm:$0xf]
    %v268 = vld [vmem:[%s5 + $0x8] sm:$0xf]
    %v269 = vld [vmem:[%s5 + $0xc] sm:$0xf]
    %v270 = vld [vmem:[%s9] sm:$0x1]
    %v272 = vlaneseq
    %v273 = vshrl.u32 %v272, 7
    %v274 = vsub.s32 0, %v273
    %v275 = vrot.slane %v270, %v274
    %v281 = vunpack.c.l.b16 %v266
    %v282 = vunpack.c.l.b16 %v267
    %v283 = vunpack.c.l.b16 %v268
    %v284 = vunpack.c.l.b16 %v269
    %v285 = vpack.c.b16 %v282, %v281
    %v286 = vpack.c.b16 %v284, %v283
    %v290 = vsel %vm154, %v130, 0
    %292 = vmatprep.subr.bf16.mxu0 0
    %293 = vmatpush1.bf16.msra.mxu0 %v285
    %294 = vmatprep.subr.bf16.mxu0 0
    %295 = vmatpush1.bf16.msra.mxu0 %v286
    %296 = vmatprep.subr.bf16.mxu0 0
    %297 = vmatpush1.bf16.msra.mxu0 0
    %298 = vmatprep.subr.bf16.mxu0 0
    %299 = vmatpush1.bf16.msra.mxu0 0
    %300 = vmatprep.subr.bf16.mxu0 0
    %301 = vmatpush1.bf16.msra.mxu0 0
    %302 = vmatprep.subr.bf16.mxu0 0
    %303 = vmatpush1.bf16.msra.mxu0 0
    %304 = vmatprep.subr.bf16.mxu0 0
    %305 = vmatpush1.bf16.msra.mxu0 0
    %306 = vmatprep.subr.bf16.mxu0 0
    %307 = vmatpush1.bf16.msra.mxu0 0
    %308 = vmatprep.subr.bf16.mxu0 0
    %309 = vmatpush1.bf16.msra.mxu0 0
    %310 = vmatprep.subr.bf16.mxu0 0
    %311 = vmatpush1.bf16.msra.mxu0 0
    %312 = vmatprep.subr.bf16.mxu0 0
    %313 = vmatpush1.bf16.msra.mxu0 0
    %314 = vmatprep.subr.bf16.mxu0 0
    %315 = vmatpush1.bf16.msra.mxu0 0
    %316 = vmatprep.subr.bf16.mxu0 0
    %317 = vmatpush1.bf16.msra.mxu0 0
    %318 = vmatprep.subr.bf16.mxu0 0
    %319 = vmatpush1.bf16.msra.mxu0 0
    %320 = vmatprep.subr.bf16.mxu0 0
    %321 = vmatpush1.bf16.msra.mxu0 0
    %322 = vmatprep.subr.bf16.mxu0 0
    %323 = vmatpush1.bf16.msra.mxu0 0
    %324 = vmatprep.mubr.bf16.mxu0 0
    %325 = vmatmul.mubr.bf16.gmra.mrb[0].mxu0 %v290
    %v326 = vpop.f32.mrb[0].mxu0
    %v327 = vadd.f32 %v275, %v326
    %v328 = vpop.f32.mrb[0].mxu0
    %v329 = vpop.f32.mrb[0].mxu0
    %v330 = vadd.f32 %v275, %v329
    %v331 = vpop.f32.mrb[0].mxu0
    %332 = vdwg.mxu0
    %v333 = vld [vmem:[#allocation11] sm:$0xf]
    %v334 = vld [vmem:[#allocation11 + $0x4] sm:$0xf]
    %v335 = vld [vmem:[#allocation11 + $0x8] sm:$0xf]
    %v336 = vld [vmem:[#allocation11 + $0xc] sm:$0xf]
    %v337 = vld [vmem:[%s10] sm:$0x1]
    %v338 = vmul.f32 %v193, %v193
    %vm339 = vcmask 64512
    %v340 = vsel %vm339, %v338, 0.0
    %341 = vadd.xlane.f32.xlu0 %v340
    %v342 = vpop.xlane.xlu0 %341
    %v343 = vmul.f32 %v260, %v260
    %v344 = vsel %vm339, %v343, 0.0
    %345 = vadd.xlane.f32.xlu0 %v344
    %v346 = vpop.xlane.xlu0 %345
    %v348 = vsel %vm339, %v193, 0
    %v351 = vsel %vm339, %v260, 0
    %353 = vmatprep.subr.mxu0 0.0
    %354 = vmatpush1.xpose.msra.mxu0 %v351
    %355 = vmatprep.subr.mxu0 0.0
    %356 = vmatpush1.xpose.msra.mxu0 0.0
    %357 = vmatprep.subr.mxu0 0.0
    %358 = vmatpush1.xpose.msra.mxu0 0.0
    %359 = vmatprep.subr.mxu0 0.0
    %360 = vmatpush1.xpose.msra.mxu0 0.0
    %361 = vmatprep.subr.mxu0 0.0
    %362 = vmatpush1.xpose.msra.mxu0 0.0
    %363 = vmatprep.subr.mxu0 0.0
    %364 = vmatpush1.xpose.msra.mxu0 0.0
    %365 = vmatprep.subr.mxu0 0.0
    %366 = vmatpush1.xpose.msra.mxu0 0.0
    %367 = vmatprep.subr.mxu0 0.0
    %368 = vmatpush1.xpose.msra.mxu0 0.0
    %369 = vmatprep.subr.mxu0 0.0
    %370 = vmatpush1.xpose.msra.mxu0 0.0
    %371 = vmatprep.subr.mxu0 0.0
    %372 = vmatpush1.xpose.msra.mxu0 0.0
    %373 = vmatprep.subr.mxu0 0.0
    %374 = vmatpush1.xpose.msra.mxu0 0.0
    %375 = vmatprep.subr.mxu0 0.0
    %376 = vmatpush1.xpose.msra.mxu0 0.0
    %377 = vmatprep.subr.mxu0 0.0
    %378 = vmatpush1.xpose.msra.mxu0 0.0
    %379 = vmatprep.subr.mxu0 0.0
    %380 = vmatpush1.xpose.msra.mxu0 0.0
    %381 = vmatprep.subr.mxu0 0.0
    %382 = vmatpush1.xpose.msra.mxu0 0.0
    %383 = vmatprep.subr.mxu0 0.0
    %384 = vmatpush1.xpose.msra.mxu0 0.0
    %385 = vmatprep.subr.mxu0 0.0
    %386 = vmatpush1.xpose.msra.mxu0 0.0
    %387 = vmatprep.subr.mxu0 0.0
    %388 = vmatpush1.xpose.msra.mxu0 0.0
    %389 = vmatprep.subr.mxu0 0.0
    %390 = vmatpush1.xpose.msra.mxu0 0.0
    %391 = vmatprep.subr.mxu0 0.0
    %392 = vmatpush1.xpose.msra.mxu0 0.0
    %393 = vmatprep.subr.mxu0 0.0
    %394 = vmatpush1.xpose.msra.mxu0 0.0
    %395 = vmatprep.subr.mxu0 0.0
    %396 = vmatpush1.xpose.msra.mxu0 0.0
    %397 = vmatprep.subr.mxu0 0.0
    %398 = vmatpush1.xpose.msra.mxu0 0.0
    %399 = vmatprep.subr.mxu0 0.0
    %400 = vmatpush1.xpose.msra.mxu0 0.0
    %401 = vmatprep.subr.mxu0 0.0
    %402 = vmatpush1.xpose.msra.mxu0 0.0
    %403 = vmatprep.subr.mxu0 0.0
    %404 = vmatpush1.xpose.msra.mxu0 0.0
    %405 = vmatprep.subr.mxu0 0.0
    %406 = vmatpush1.xpose.msra.mxu0 0.0
    %407 = vmatprep.subr.mxu0 0.0
    %408 = vmatpush1.xpose.msra.mxu0 0.0
    %409 = vmatprep.subr.mxu0 0.0
    %410 = vmatpush1.xpose.msra.mxu0 0.0
    %411 = vmatprep.subr.mxu0 0.0
    %412 = vmatpush1.xpose.msra.mxu0 0.0
    %413 = vmatprep.subr.mxu0 0.0
    %414 = vmatpush1.xpose.msra.mxu0 0.0
    %415 = vmatprep.subr.mxu0 0.0
    %416 = vmatpush1.xpose.msra.mxu0 0.0
    %417 = vmatprep.mubr.f32.mxu0 0.0
    %418 = vmatmul.mubr.f32.gmra.mrb[0].mxu0 %v348
    %v419 = vpop.f32.mrb[0].mxu0
    %v420 = vadd.f32 0.0, %v419
    %v421 = vpop.f32.mrb[0].mxu0
    %422 = vdwg.mxu0
    %423 = vxpose.xlu0.b32.start [1/16] %v346, 128
    %424 = vxpose.xlu0.b32.cont [2/16] 0.0, 128
    %425 = vxpose.xlu0.b32.cont [3/16] 0.0, 128
    %426 = vxpose.xlu0.b32.cont [4/16] 0.0, 128
    %427 = vxpose.xlu0.b32.cont [5/16] 0.0, 128
    %428 = vxpose.xlu0.b32.cont [6/16] 0.0, 128
    %429 = vxpose.xlu0.b32.cont [7/16] 0.0, 128
    %430 = vxpose.xlu0.b32.cont [8/16] 0.0, 128
    %431 = vxpose.xlu0.b32.cont [9/16] 0.0, 128
    %432 = vxpose.xlu0.b32.cont [10/16] 0.0, 128
    %433 = vxpose.xlu0.b32.cont [11/16] 0.0, 128
    %434 = vxpose.xlu0.b32.cont [12/16] 0.0, 128
    %435 = vxpose.xlu0.b32.cont [13/16] 0.0, 128
    %436 = vxpose.xlu0.b32.cont [14/16] 0.0, 128
    %437 = vxpose.xlu0.b32.cont [15/16] 0.0, 128
    %438 = vxpose.xlu0.b32.end [16/16] 0.0, 128
    %v439 = vpop.trf.xlu0
    %v440 = vpop.trf.xlu0
    %v441 = vpop.trf.xlu0
    %v442 = vpop.trf.xlu0
    %v443 = vpop.trf.xlu0
    %v444 = vpop.trf.xlu0
    %v445 = vpop.trf.xlu0
    %v446 = vpop.trf.xlu0
    %v447 = vpop.trf.xlu0
    %v448 = vpop.trf.xlu0
    %v449 = vpop.trf.xlu0
    %v450 = vpop.trf.xlu0
    %v451 = vpop.trf.xlu0
    %v452 = vpop.trf.xlu0
    %v453 = vpop.trf.xlu0
    %v454 = vpop.trf.xlu0
    %v455 = vlaneseq
    %v456 = vshrl.u32 %v455, 7
    %v457 = vsub.s32 0, %v456
    %v458 = vrot.slane %v439, %v457
    %v459 = vadd.f32 %v342, %v458
    %v460 = vmul.f32 %v420, 2.0
    %v461 = vsub.f32 %v459, %v460
    %v462 = vmax.f32 %v461, 0.0
    %v463 = vrsqrt.pop %v462
    %v464 = vmul.f32 %v462, %v463
    %vm465 = vcmp.eq.f32.partialorder %v462, inf
    %v466 = vsel %vm465, %v462, %v464
    %vm467 = vcmp.eq.f32.partialorder %v462, 0.0
    %v468 = vand.u32 %v462, 2147483648
    %v469 = vsel %vm467, %v468, %v466
    %v470 = vsel %vm339, %v469, inf
    %471 = vmin.xlane.f32.xlu0 %v470
    %v472 = vpop.xlane.xlu0 %471
    %v473 = vsub.f32 %v472, inf
    %v474 = vmul.f32 %v473, 1.442695
    %v475 = vpow.pop %v474
    %v476 = vsub.f32 %v472, %v469
    %v477 = vmul.f32 %v476, 1.442695
    %v478 = vpow.pop %v477
    %v479 = vmul.f32 %v475, 0.0
    %v480 = vsel %vm339, %v478, 0.0
    %481 = vadd.xlane.f32.xlu0 %v480
    %v482 = vpop.xlane.xlu0 %481
    %v483 = vadd.f32 %v479, %v482
    %v485 = vsel %vm339, %v478, 0
    %487 = vmatprep.subr.mxu0 0.0
    %488 = vmatpush1.msra.mxu0 %v327
    %489 = vmatprep.subr.mxu0 0.0
    %490 = vmatpush1.msra.mxu0 0.0
    %491 = vmatprep.subr.mxu0 0.0
    %492 = vmatpush1.msra.mxu0 0.0
    %493 = vmatprep.subr.mxu0 0.0
    %494 = vmatpush1.msra.mxu0 0.0
    %495 = vmatprep.subr.mxu0 0.0
    %496 = vmatpush1.msra.mxu0 0.0
    %497 = vmatprep.subr.mxu0 0.0
    %498 = vmatpush1.msra.mxu0 0.0
    %499 = vmatprep.subr.mxu0 0.0
    %500 = vmatpush1.msra.mxu0 0.0
    %501 = vmatprep.subr.mxu0 0.0
    %502 = vmatpush1.msra.mxu0 0.0
    %503 = vmatprep.subr.mxu0 0.0
    %504 = vmatpush1.msra.mxu0 0.0
    %505 = vmatprep.subr.mxu0 0.0
    %506 = vmatpush1.msra.mxu0 0.0
    %507 = vmatprep.subr.mxu0 0.0
    %508 = vmatpush1.msra.mxu0 0.0
    %509 = vmatprep.subr.mxu0 0.0
    %510 = vmatpush1.msra.mxu0 0.0
    %511 = vmatprep.subr.mxu0 0.0
    %512 = vmatpush1.msra.mxu0 0.0
    %513 = vmatprep.subr.mxu0 0.0
    %514 = vmatpush1.msra.mxu0 0.0
    %515 = vmatprep.subr.mxu0 0.0
    %516 = vmatpush1.msra.mxu0 0.0
    %517 = vmatprep.subr.mxu0 0.0
    %518 = vmatpush1.msra.mxu0 0.0
    %519 = vmatprep.subr.mxu0 0.0
    %520 = vmatpush1.msra.mxu0 0.0
    %521 = vmatprep.subr.mxu0 0.0
    %522 = vmatpush1.msra.mxu0 0.0
    %523 = vmatprep.subr.mxu0 0.0
    %524 = vmatpush1.msra.mxu0 0.0
    %525 = vmatprep.subr.mxu0 0.0
    %526 = vmatpush1.msra.mxu0 0.0
    %527 = vmatprep.subr.mxu0 0.0
    %528 = vmatpush1.msra.mxu0 0.0
    %529 = vmatprep.subr.mxu0 0.0
    %530 = vmatpush1.msra.mxu0 0.0
    %531 = vmatprep.subr.mxu0 0.0
    %532 = vmatpush1.msra.mxu0 0.0
    %533 = vmatprep.subr.mxu0 0.0
    %534 = vmatpush1.msra.mxu0 0.0
    %535 = vmatprep.subr.mxu0 0.0
    %536 = vmatpush1.msra.mxu0 0.0
    %537 = vmatprep.subr.mxu0 0.0
    %538 = vmatpush1.msra.mxu0 0.0
    %539 = vmatprep.subr.mxu0 0.0
    %540 = vmatpush1.msra.mxu0 0.0
    %541 = vmatprep.subr.mxu0 0.0
    %542 = vmatpush1.msra.mxu0 0.0
    %543 = vmatprep.subr.mxu0 0.0
    %544 = vmatpush1.msra.mxu0 0.0
    %545 = vmatprep.subr.mxu0 0.0
    %546 = vmatpush1.msra.mxu0 0.0
    %547 = vmatprep.subr.mxu0 0.0
    %548 = vmatpush1.msra.mxu0 0.0
    %549 = vmatprep.subr.mxu0 0.0
    %550 = vmatpush1.msra.mxu0 0.0
    %551 = vmatprep.mubr.f32.mxu0 0.0
    %552 = vmatmul.mubr.f32.gmra.mrb[0].mxu0 %v485
    %v553 = vpop.f32.mrb[0].mxu0
    %v554 = vadd.f32 0.0, %v553
    %v555 = vpop.f32.mrb[0].mxu0
    %556 = vdwg.mxu0
    %v557 = vadd.f32 %v479, %v554
    %v558 = vrcp.pop %v483
    %v559 = vmul.f32 %v557, %v558
    %v560 = vpack.c.bf16 %v559, %v559
    %562 = vrot.lane.b32.xlu0 %v338, 120
    %v563 = vpop.permute.xlu0 %562
    %v565 = vsel %vm339, %v563, 0.0
    %566 = vadd.xlane.f32.xlu0 %v565
    %v567 = vpop.xlane.xlu0 %566
    %569 = vrot.lane.b32.xlu0 %v343, 120
    %v570 = vpop.permute.xlu0 %569
    %v572 = vsel %vm339, %v570, 0.0
    %573 = vadd.xlane.f32.xlu0 %v572
    %v574 = vpop.xlane.xlu0 %573
    %575 = vrot.lane.b32.xlu0 %v193, 120
    %v576 = vpop.permute.xlu0 %575
    %577 = vrot.lane.b32.xlu0 %v260, 120
    %v578 = vpop.permute.xlu0 %577
    %v579 = vsel %vm339, %v576, 0
    %v581 = vsel %vm339, %v578, 0
    %583 = vmatprep.subr.mxu0 0.0
    %584 = vmatpush1.xpose.msra.mxu0 %v581
    %585 = vmatprep.subr.mxu0 0.0
    %586 = vmatpush1.xpose.msra.mxu0 0.0
    %587 = vmatprep.subr.mxu0 0.0
    %588 = vmatpush1.xpose.msra.mxu0 0.0
    %589 = vmatprep.subr.mxu0 0.0
    %590 = vmatpush1.xpose.msra.mxu0 0.0
    %591 = vmatprep.subr.mxu0 0.0
    %592 = vmatpush1.xpose.msra.mxu0 0.0
    %593 = vmatprep.subr.mxu0 0.0
    %594 = vmatpush1.xpose.msra.mxu0 0.0
    %595 = vmatprep.subr.mxu0 0.0
    %596 = vmatpush1.xpose.msra.mxu0 0.0
    %597 = vmatprep.subr.mxu0 0.0
    %598 = vmatpush1.xpose.msra.mxu0 0.0
    %599 = vmatprep.subr.mxu0 0.0
    %600 = vmatpush1.xpose.msra.mxu0 0.0
    %601 = vmatprep.subr.mxu0 0.0
    %602 = vmatpush1.xpose.msra.mxu0 0.0
    %603 = vmatprep.subr.mxu0 0.0
    %604 = vmatpush1.xpose.msra.mxu0 0.0
    %605 = vmatprep.subr.mxu0 0.0
    %606 = vmatpush1.xpose.msra.mxu0 0.0
    %607 = vmatprep.subr.mxu0 0.0
    %608 = vmatpush1.xpose.msra.mxu0 0.0
    %609 = vmatprep.subr.mxu0 0.0
    %610 = vmatpush1.xpose.msra.mxu0 0.0
    %611 = vmatprep.subr.mxu0 0.0
    %612 = vmatpush1.xpose.msra.mxu0 0.0
    %613 = vmatprep.subr.mxu0 0.0
    %614 = vmatpush1.xpose.msra.mxu0 0.0
    %615 = vmatprep.subr.mxu0 0.0
    %616 = vmatpush1.xpose.msra.mxu0 0.0
    %617 = vmatprep.subr.mxu0 0.0
    %618 = vmatpush1.xpose.msra.mxu0 0.0
    %619 = vmatprep.subr.mxu0 0.0
    %620 = vmatpush1.xpose.msra.mxu0 0.0
    %621 = vmatprep.subr.mxu0 0.0
    %622 = vmatpush1.xpose.msra.mxu0 0.0
    %623 = vmatprep.subr.mxu0 0.0
    %624 = vmatpush1.xpose.msra.mxu0 0.0
    %625 = vmatprep.subr.mxu0 0.0
    %626 = vmatpush1.xpose.msra.mxu0 0.0
    %627 = vmatprep.subr.mxu0 0.0
    %628 = vmatpush1.xpose.msra.mxu0 0.0
    %629 = vmatprep.subr.mxu0 0.0
    %630 = vmatpush1.xpose.msra.mxu0 0.0
    %631 = vmatprep.subr.mxu0 0.0
    %632 = vmatpush1.xpose.msra.mxu0 0.0
    %633 = vmatprep.subr.mxu0 0.0
    %634 = vmatpush1.xpose.msra.mxu0 0.0
    %635 = vmatprep.subr.mxu0 0.0
    %636 = vmatpush1.xpose.msra.mxu0 0.0
    %637 = vmatprep.subr.mxu0 0.0
    %638 = vmatpush1.xpose.msra.mxu0 0.0
    %639 = vmatprep.subr.mxu0 0.0
    %640 = vmatpush1.xpose.msra.mxu0 0.0
    %641 = vmatprep.subr.mxu0 0.0
    %642 = vmatpush1.xpose.msra.mxu0 0.0
    %643 = vmatprep.subr.mxu0 0.0
    %644 = vmatpush1.xpose.msra.mxu0 0.0
    %645 = vmatprep.subr.mxu0 0.0
    %646 = vmatpush1.xpose.msra.mxu0 0.0
    %647 = vmatprep.mubr.f32.mxu0 0.0
    %648 = vmatmul.mubr.f32.gmra.mrb[0].mxu0 %v579
    %v649 = vpop.f32.mrb[0].mxu0
    %v650 = vadd.f32 0.0, %v649
    %v651 = vpop.f32.mrb[0].mxu0
    %652 = vdwg.mxu0
    %653 = vxpose.xlu0.b32.start [1/16] %v574, 128
    %654 = vxpose.xlu0.b32.cont [2/16] 0.0, 128
    %655 = vxpose.xlu0.b32.cont [3/16] 0.0, 128
    %656 = vxpose.xlu0.b32.cont [4/16] 0.0, 128
    %657 = vxpose.xlu0.b32.cont [5/16] 0.0, 128
    %658 = vxpose.xlu0.b32.cont [6/16] 0.0, 128
    %659 = vxpose.xlu0.b32.cont [7/16] 0.0, 128
    %660 = vxpose.xlu0.b32.cont [8/16] 0.0, 128
    %661 = vxpose.xlu0.b32.cont [9/16] 0.0, 128
    %662 = vxpose.xlu0.b32.cont [10/16] 0.0, 128
    %663 = vxpose.xlu0.b32.cont [11/16] 0.0, 128
    %664 = vxpose.xlu0.b32.cont [12/16] 0.0, 128
    %665 = vxpose.xlu0.b32.cont [13/16] 0.0, 128
    %666 = vxpose.xlu0.b32.cont [14/16] 0.0, 128
    %667 = vxpose.xlu0.b32.cont [15/16] 0.0, 128
    %668 = vxpose.xlu0.b32.end [16/16] 0.0, 128
    %v669 = vpop.trf.xlu0
    %v670 = vpop.trf.xlu0
    %v671 = vpop.trf.xlu0
    %v672 = vpop.trf.xlu0
    %v673 = vpop.trf.xlu0
    %v674 = vpop.trf.xlu0
    %v675 = vpop.trf.xlu0
    %v676 = vpop.trf.xlu0
    %v677 = vpop.trf.xlu0
    %v678 = vpop.trf.xlu0
    %v679 = vpop.trf.xlu0
    %v680 = vpop.trf.xlu0
    %v681 = vpop.trf.xlu0
    %v682 = vpop.trf.xlu0
    %v683 = vpop.trf.xlu0
    %v684 = vpop.trf.xlu0
    %v685 = vlaneseq
    %v686 = vshrl.u32 %v685, 7
    %v687 = vsub.s32 0, %v686
    %v688 = vrot.slane %v669, %v687
    %v689 = vadd.f32 %v567, %v688
    %v690 = vmul.f32 %v650, 2.0
    %v691 = vsub.f32 %v689, %v690
    %v692 = vmax.f32 %v691, 0.0
    %v693 = vrsqrt.pop %v692
    %v694 = vmul.f32 %v692, %v693
    %vm695 = vcmp.eq.f32.partialorder %v692, inf
    %v696 = vsel %vm695, %v692, %v694
    %vm697 = vcmp.eq.f32.partialorder %v692, 0.0
    %v698 = vand.u32 %v692, 2147483648
    %v699 = vsel %vm697, %v698, %v696
    %v700 = vsel %vm339, %v699, inf
    %701 = vmin.xlane.f32.xlu0 %v700
    %v702 = vpop.xlane.xlu0 %701
    %v703 = vsub.f32 %v702, inf
    %v704 = vmul.f32 %v703, 1.442695
    %v705 = vpow.pop %v704
    %v706 = vsub.f32 %v702, %v699
    %v707 = vmul.f32 %v706, 1.442695
    %v708 = vpow.pop %v707
    %v709 = vmul.f32 %v705, 0.0
    %v710 = vsel %vm339, %v708, 0.0
    %711 = vadd.xlane.f32.xlu0 %v710
    %v712 = vpop.xlane.xlu0 %711
    %v713 = vadd.f32 %v709, %v712
    %715 = vrot.lane.b32.xlu0 %v327, 120
    %v716 = vpop.permute.xlu0 %715
    %v719 = vsel %vm339, %v708, 0
    %721 = vmatprep.subr.mxu0 0.0
    %722 = vmatpush1.msra.mxu0 %v716
    %723 = vmatprep.subr.mxu0 0.0
    %724 = vmatpush1.msra.mxu0 0.0
    %725 = vmatprep.subr.mxu0 0.0
    %726 = vmatpush1.msra.mxu0 0.0
    %727 = vmatprep.subr.mxu0 0.0
    %728 = vmatpush1.msra.mxu0 0.0
    %729 = vmatprep.subr.mxu0 0.0
    %730 = vmatpush1.msra.mxu0 0.0
    %731 = vmatprep.subr.mxu0 0.0
    %732 = vmatpush1.msra.mxu0 0.0
    %733 = vmatprep.subr.mxu0 0.0
    %734 = vmatpush1.msra.mxu0 0.0
    %735 = vmatprep.subr.mxu0 0.0
    %736 = vmatpush1.msra.mxu0 0.0
    %737 = vmatprep.subr.mxu0 0.0
    %738 = vmatpush1.msra.mxu0 0.0
    %739 = vmatprep.subr.mxu0 0.0
    %740 = vmatpush1.msra.mxu0 0.0
    %741 = vmatprep.subr.mxu0 0.0
    %742 = vmatpush1.msra.mxu0 0.0
    %743 = vmatprep.subr.mxu0 0.0
    %744 = vmatpush1.msra.mxu0 0.0
    %745 = vmatprep.subr.mxu0 0.0
    %746 = vmatpush1.msra.mxu0 0.0
    %747 = vmatprep.subr.mxu0 0.0
    %748 = vmatpush1.msra.mxu0 0.0
    %749 = vmatprep.subr.mxu0 0.0
    %750 = vmatpush1.msra.mxu0 0.0
    %751 = vmatprep.subr.mxu0 0.0
    %752 = vmatpush1.msra.mxu0 0.0
    %753 = vmatprep.subr.mxu0 0.0
    %754 = vmatpush1.msra.mxu0 0.0
    %755 = vmatprep.subr.mxu0 0.0
    %756 = vmatpush1.msra.mxu0 0.0
    %757 = vmatprep.subr.mxu0 0.0
    %758 = vmatpush1.msra.mxu0 0.0
    %759 = vmatprep.subr.mxu0 0.0
    %760 = vmatpush1.msra.mxu0 0.0
    %761 = vmatprep.subr.mxu0 0.0
    %762 = vmatpush1.msra.mxu0 0.0
    %763 = vmatprep.subr.mxu0 0.0
    %764 = vmatpush1.msra.mxu0 0.0
    %765 = vmatprep.subr.mxu0 0.0
    %766 = vmatpush1.msra.mxu0 0.0
    %767 = vmatprep.subr.mxu0 0.0
    %768 = vmatpush1.msra.mxu0 0.0
    %769 = vmatprep.subr.mxu0 0.0
    %770 = vmatpush1.msra.mxu0 0.0
    %771 = vmatprep.subr.mxu0 0.0
    %772 = vmatpush1.msra.mxu0 0.0
    %773 = vmatprep.subr.mxu0 0.0
    %774 = vmatpush1.msra.mxu0 0.0
    %775 = vmatprep.subr.mxu0 0.0
    %776 = vmatpush1.msra.mxu0 0.0
    %777 = vmatprep.subr.mxu0 0.0
    %778 = vmatpush1.msra.mxu0 0.0
    %779 = vmatprep.subr.mxu0 0.0
    %780 = vmatpush1.msra.mxu0 0.0
    %781 = vmatprep.subr.mxu0 0.0
    %782 = vmatpush1.msra.mxu0 0.0
    %783 = vmatprep.subr.mxu0 0.0
    %784 = vmatpush1.msra.mxu0 0.0
    %785 = vmatprep.mubr.f32.mxu0 0.0
    %786 = vmatmul.mubr.f32.gmra.mrb[0].mxu0 %v719
    %v787 = vpop.f32.mrb[0].mxu0
    %v788 = vadd.f32 0.0, %v787
    %v789 = vpop.f32.mrb[0].mxu0
    %790 = vdwg.mxu0
    %v791 = vadd.f32 %v709, %v788
    %v792 = vrcp.pop %v713
    %v793 = vmul.f32 %v791, %v792
    %v794 = vpack.c.bf16 %v793, %v793
    %v796 = vsel %vm339, %v794, 0
    %vm798 = vcmask 1043456
    %v800 = vsel %vm798, %v334, 0
    %802 = vmatprep.subr.bf16.mxu0 0
    %803 = vmatpush1.bf16.msra.mxu0 %v800
    %804 = vmatprep.subr.bf16.mxu0 0
    %805 = vmatpush1.bf16.msra.mxu0 0
    %806 = vmatprep.subr.bf16.mxu0 0
    %807 = vmatpush1.bf16.msra.mxu0 0
    %808 = vmatprep.subr.bf16.mxu0 0
    %809 = vmatpush1.bf16.msra.mxu0 0
    %810 = vmatprep.subr.bf16.mxu0 0
    %811 = vmatpush1.bf16.msra.mxu0 0
    %812 = vmatprep.subr.bf16.mxu0 0
    %813 = vmatpush1.bf16.msra.mxu0 0
    %814 = vmatprep.subr.bf16.mxu0 0
    %815 = vmatpush1.bf16.msra.mxu0 0
    %816 = vmatprep.subr.bf16.mxu0 0
    %817 = vmatpush1.bf16.msra.mxu0 0
    %818 = vmatprep.subr.bf16.mxu0 0
    %819 = vmatpush1.bf16.msra.mxu0 0
    %820 = vmatprep.subr.bf16.mxu0 0
    %821 = vmatpush1.bf16.msra.mxu0 0
    %822 = vmatprep.subr.bf16.mxu0 0
    %823 = vmatpush1.bf16.msra.mxu0 0
    %824 = vmatprep.subr.bf16.mxu0 0
    %825 = vmatpush1.bf16.msra.mxu0 0
    %826 = vmatprep.subr.bf16.mxu0 0
    %827 = vmatpush1.bf16.msra.mxu0 0
    %828 = vmatprep.subr.bf16.mxu0 0
    %829 = vmatpush1.bf16.msra.mxu0 0
    %830 = vmatprep.subr.bf16.mxu0 0
    %831 = vmatpush1.bf16.msra.mxu0 0
    %832 = vmatprep.subr.bf16.mxu0 0
    %833 = vmatpush1.bf16.msra.mxu0 0
    %834 = vmatprep.mubr.bf16.mxu0 0
    %835 = vmatmul.mubr.bf16.gmra.mrb[0].mxu0 %v796
    %v836 = vpop.f32.mrb[0].mxu0
    %v837 = vadd.f32 0.0, %v836
    %v838 = vpop.f32.mrb[0].mxu0
    %v839 = vpop.f32.mrb[0].mxu0
    %v840 = vpop.f32.mrb[0].mxu0
    %841 = vdwg.mxu0
    %v843 = vsel %vm339, %v560, 0
    %v846 = vsel %vm798, %v333, 0
    %848 = vmatprep.subr.bf16.mxu0 0
    %849 = vmatpush1.bf16.msra.mxu0 %v846
    %850 = vmatprep.subr.bf16.mxu0 0
    %851 = vmatpush1.bf16.msra.mxu0 0
    %852 = vmatprep.subr.bf16.mxu0 0
    %853 = vmatpush1.bf16.msra.mxu0 0
    %854 = vmatprep.subr.bf16.mxu0 0
    %855 = vmatpush1.bf16.msra.mxu0 0
    %856 = vmatprep.subr.bf16.mxu0 0
    %857 = vmatpush1.bf16.msra.mxu0 0
    %858 = vmatprep.subr.bf16.mxu0 0
    %859 = vmatpush1.bf16.msra.mxu0 0
    %860 = vmatprep.subr.bf16.mxu0 0
    %861 = vmatpush1.bf16.msra.mxu0 0
    %862 = vmatprep.subr.bf16.mxu0 0
    %863 = vmatpush1.bf16.msra.mxu0 0
    %864 = vmatprep.subr.bf16.mxu0 0
    %865 = vmatpush1.bf16.msra.mxu0 0
    %866 = vmatprep.subr.bf16.mxu0 0
    %867 = vmatpush1.bf16.msra.mxu0 0
    %868 = vmatprep.subr.bf16.mxu0 0
    %869 = vmatpush1.bf16.msra.mxu0 0
    %870 = vmatprep.subr.bf16.mxu0 0
    %871 = vmatpush1.bf16.msra.mxu0 0
    %872 = vmatprep.subr.bf16.mxu0 0
    %873 = vmatpush1.bf16.msra.mxu0 0
    %874 = vmatprep.subr.bf16.mxu0 0
    %875 = vmatpush1.bf16.msra.mxu0 0
    %876 = vmatprep.subr.bf16.mxu0 0
    %877 = vmatpush1.bf16.msra.mxu0 0
    %878 = vmatprep.subr.bf16.mxu0 0
    %879 = vmatpush1.bf16.msra.mxu0 0
    %880 = vmatprep.mubr.bf16.mxu0 0
    %881 = vmatmul.mubr.bf16.gmra.mrb[0].mxu0 %v843
    %v882 = vpop.f32.mrb[0].mxu0
    %v883 = vadd.f32 %v837, %v882
    %v884 = vpop.f32.mrb[0].mxu0
    %v885 = vpop.f32.mrb[0].mxu0
    %v886 = vpop.f32.mrb[0].mxu0
    %887 = vdwg.mxu0
    %888 = vrot.lane.b32.xlu0 %v338, 112
    %v889 = vpop.permute.xlu0 %888
    %v891 = vsel %vm339, %v889, 0.0
    %892 = vadd.xlane.f32.xlu0 %v891
    %v893 = vpop.xlane.xlu0 %892
    %894 = vrot.lane.b32.xlu0 %v343, 112
    %v895 = vpop.permute.xlu0 %894
    %v897 = vsel %vm339, %v895, 0.0
    %898 = vadd.xlane.f32.xlu0 %v897
    %v899 = vpop.xlane.xlu0 %898
    %900 = vrot.lane.b32.xlu0 %v193, 112
    %v901 = vpop.permute.xlu0 %900
    %902 = vrot.lane.b32.xlu0 %v260, 112
    %v903 = vpop.permute.xlu0 %902
    %v904 = vsel %vm339, %v901, 0
    %v906 = vsel %vm339, %v903, 0
    %908 = vmatprep.subr.mxu0 0.0
    %909 = vmatpush1.xpose.msra.mxu0 %v906
    %910 = vmatprep.subr.mxu0 0.0
    %911 = vmatpush1.xpose.msra.mxu0 0.0
    %912 = vmatprep.subr.mxu0 0.0
    %913 = vmatpush1.xpose.msra.mxu0 0.0
    %914 = vmatprep.subr.mxu0 0.0
    %915 = vmatpush1.xpose.msra.mxu0 0.0
    %916 = vmatprep.subr.mxu0 0.0
    %917 = vmatpush1.xpose.msra.mxu0 0.0
    %918 = vmatprep.subr.mxu0 0.0
    %919 = vmatpush1.xpose.msra.mxu0 0.0
    %920 = vmatprep.subr.mxu0 0.0
    %921 = vmatpush1.xpose.msra.mxu0 0.0
    %922 = vmatprep.subr.mxu0 0.0
    %923 = vmatpush1.xpose.msra.mxu0 0.0
    %924 = vmatprep.subr.mxu0 0.0
    %925 = vmatpush1.xpose.msra.mxu0 0.0
    %926 = vmatprep.subr.mxu0 0.0
    %927 = vmatpush1.xpose.msra.mxu0 0.0
    %928 = vmatprep.subr.mxu0 0.0
    %929 = vmatpush1.xpose.msra.mxu0 0.0
    %930 = vmatprep.subr.mxu0 0.0
    %931 = vmatpush1.xpose.msra.mxu0 0.0
    %932 = vmatprep.subr.mxu0 0.0
    %933 = vmatpush1.xpose.msra.mxu0 0.0
    %934 = vmatprep.subr.mxu0 0.0
    %935 = vmatpush1.xpose.msra.mxu0 0.0
    %936 = vmatprep.subr.mxu0 0.0
    %937 = vmatpush1.xpose.msra.mxu0 0.0
    %938 = vmatprep.subr.mxu0 0.0
    %939 = vmatpush1.xpose.msra.mxu0 0.0
    %940 = vmatprep.subr.mxu0 0.0
    %941 = vmatpush1.xpose.msra.mxu0 0.0
    %942 = vmatprep.subr.mxu0 0.0
    %943 = vmatpush1.xpose.msra.mxu0 0.0
    %944 = vmatprep.subr.mxu0 0.0
    %945 = vmatpush1.xpose.msra.mxu0 0.0
    %946 = vmatprep.subr.mxu0 0.0
    %947 = vmatpush1.xpose.msra.mxu0 0.0
    %948 = vmatprep.subr.mxu0 0.0
    %949 = vmatpush1.xpose.msra.mxu0 0.0
    %950 = vmatprep.subr.mxu0 0.0
    %951 = vmatpush1.xpose.msra.mxu0 0.0
    %952 = vmatprep.subr.mxu0 0.0
    %953 = vmatpush1.xpose.msra.mxu0 0.0
    %954 = vmatprep.subr.mxu0 0.0
    %955 = vmatpush1.xpose.msra.mxu0 0.0
    %956 = vmatprep.subr.mxu0 0.0
    %957 = vmatpush1.xpose.msra.mxu0 0.0
    %958 = vmatprep.subr.mxu0 0.0
    %959 = vmatpush1.xpose.msra.mxu0 0.0
    %960 = vmatprep.subr.mxu0 0.0
    %961 = vmatpush1.xpose.msra.mxu0 0.0
    %962 = vmatprep.subr.mxu0 0.0
    %963 = vmatpush1.xpose.msra.mxu0 0.0
    %964 = vmatprep.subr.mxu0 0.0
    %965 = vmatpush1.xpose.msra.mxu0 0.0
    %966 = vmatprep.subr.mxu0 0.0
    %967 = vmatpush1.xpose.msra.mxu0 0.0
    %968 = vmatprep.subr.mxu0 0.0
    %969 = vmatpush1.xpose.msra.mxu0 0.0
    %970 = vmatprep.subr.mxu0 0.0
    %971 = vmatpush1.xpose.msra.mxu0 0.0
    %972 = vmatprep.mubr.f32.mxu0 0.0
    %973 = vmatmul.mubr.f32.gmra.mrb[0].mxu0 %v904
    %v974 = vpop.f32.mrb[0].mxu0
    %v975 = vadd.f32 0.0, %v974
    %v976 = vpop.f32.mrb[0].mxu0
    %977 = vdwg.mxu0
    %978 = vxpose.xlu0.b32.start [1/16] %v899, 128
    %979 = vxpose.xlu0.b32.cont [2/16] 0.0, 128
    %980 = vxpose.xlu0.b32.cont [3/16] 0.0, 128
    %981 = vxpose.xlu0.b32.cont [4/16] 0.0, 128
    %982 = vxpose.xlu0.b32.cont [5/16] 0.0, 128
    %983 = vxpose.xlu0.b32.cont [6/16] 0.0, 128
    %984 = vxpose.xlu0.b32.cont [7/16] 0.0, 128
    %985 = vxpose.xlu0.b32.cont [8/16] 0.0, 128
    %986 = vxpose.xlu0.b32.cont [9/16] 0.0, 128
    %987 = vxpose.xlu0.b32.cont [10/16] 0.0, 128
    %988 = vxpose.xlu0.b32.cont [11/16] 0.0, 128
    %989 = vxpose.xlu0.b32.cont [12/16] 0.0, 128
    %990 = vxpose.xlu0.b32.cont [13/16] 0.0, 128
    %991 = vxpose.xlu0.b32.cont [14/16] 0.0, 128
    %992 = vxpose.xlu0.b32.cont [15/16] 0.0, 128
    %993 = vxpose.xlu0.b32.end [16/16] 0.0, 128
    %v994 = vpop.trf.xlu0
    %v995 = vpop.trf.xlu0
    %v996 = vpop.trf.xlu0
    %v997 = vpop.trf.xlu0
    %v998 = vpop.trf.xlu0
    %v999 = vpop.trf.xlu0
    %v1000 = vpop.trf.xlu0
    %v1001 = vpop.trf.xlu0
    %v1002 = vpop.trf.xlu0
    %v1003 = vpop.trf.xlu0
    %v1004 = vpop.trf.xlu0
    %v1005 = vpop.trf.xlu0
    %v1006 = vpop.trf.xlu0
    %v1007 = vpop.trf.xlu0
    %v1008 = vpop.trf.xlu0
    %v1009 = vpop.trf.xlu0
    %v1010 = vlaneseq
    %v1011 = vshrl.u32 %v1010, 7
    %v1012 = vsub.s32 0, %v1011
    %v1013 = vrot.slane %v994, %v1012
    %v1014 = vadd.f32 %v893, %v1013
    %v1015 = vmul.f32 %v975, 2.0
    %v1016 = vsub.f32 %v1014, %v1015
    %v1017 = vmax.f32 %v1016, 0.0
    %v1018 = vrsqrt.pop %v1017
    %v1019 = vmul.f32 %v1017, %v1018
    %vm1020 = vcmp.eq.f32.partialorder %v1017, inf
    %v1021 = vsel %vm1020, %v1017, %v1019
    %vm1022 = vcmp.eq.f32.partialorder %v1017, 0.0
    %v1023 = vand.u32 %v1017, 2147483648
    %v1024 = vsel %vm1022, %v1023, %v1021
    %v1025 = vsel %vm339, %v1024, inf
    %1026 = vmin.xlane.f32.xlu0 %v1025
    %v1027 = vpop.xlane.xlu0 %1026
    %v1028 = vsub.f32 %v1027, inf
    %v1029 = vmul.f32 %v1028, 1.442695
    %v1030 = vpow.pop %v1029
    %v1031 = vsub.f32 %v1027, %v1024
    %v1032 = vmul.f32 %v1031, 1.442695
    %v1033 = vpow.pop %v1032
    %v1034 = vmul.f32 %v1030, 0.0
    %v1035 = vsel %vm339, %v1033, 0.0
    %1036 = vadd.xlane.f32.xlu0 %v1035
    %v1037 = vpop.xlane.xlu0 %1036
    %v1038 = vadd.f32 %v1034, %v1037
    %1039 = vrot.lane.b32.xlu0 %v327, 112
    %v1040 = vpop.permute.xlu0 %1039
    %v1043 = vsel %vm339, %v1033, 0
    %1045 = vmatprep.subr.mxu0 0.0
    %1046 = vmatpush1.msra.mxu0 %v1040
    %1047 = vmatprep.subr.mxu0 0.0
    %1048 = vmatpush1.msra.mxu0 0.0
    %1049 = vmatprep.subr.mxu0 0.0
    %1050 = vmatpush1.msra.mxu0 0.0
    %1051 = vmatprep.subr.mxu0 0.0
    %1052 = vmatpush1.msra.mxu0 0.0
    %1053 = vmatprep.subr.mxu0 0.0
    %1054 = vmatpush1.msra.mxu0 0.0
    %1055 = vmatprep.subr.mxu0 0.0
    %1056 = vmatpush1.msra.mxu0 0.0
    %1057 = vmatprep.subr.mxu0 0.0
    %1058 = vmatpush1.msra.mxu0 0.0
    %1059 = vmatprep.subr.mxu0 0.0
    %1060 = vmatpush1.msra.mxu0 0.0
    %1061 = vmatprep.subr.mxu0 0.0
    %1062 = vmatpush1.msra.mxu0 0.0
    %1063 = vmatprep.subr.mxu0 0.0
    %1064 = vmatpush1.msra.mxu0 0.0
    %1065 = vmatprep.subr.mxu0 0.0
    %1066 = vmatpush1.msra.mxu0 0.0
    %1067 = vmatprep.subr.mxu0 0.0
    %1068 = vmatpush1.msra.mxu0 0.0
    %1069 = vmatprep.subr.mxu0 0.0
    %1070 = vmatpush1.msra.mxu0 0.0
    %1071 = vmatprep.subr.mxu0 0.0
    %1072 = vmatpush1.msra.mxu0 0.0
    %1073 = vmatprep.subr.mxu0 0.0
    %1074 = vmatpush1.msra.mxu0 0.0
    %1075 = vmatprep.subr.mxu0 0.0
    %1076 = vmatpush1.msra.mxu0 0.0
    %1077 = vmatprep.subr.mxu0 0.0
    %1078 = vmatpush1.msra.mxu0 0.0
    %1079 = vmatprep.subr.mxu0 0.0
    %1080 = vmatpush1.msra.mxu0 0.0
    %1081 = vmatprep.subr.mxu0 0.0
    %1082 = vmatpush1.msra.mxu0 0.0
    %1083 = vmatprep.subr.mxu0 0.0
    %1084 = vmatpush1.msra.mxu0 0.0
    %1085 = vmatprep.subr.mxu0 0.0
    %1086 = vmatpush1.msra.mxu0 0.0
    %1087 = vmatprep.subr.mxu0 0.0
    %1088 = vmatpush1.msra.mxu0 0.0
    %1089 = vmatprep.subr.mxu0 0.0
    %1090 = vmatpush1.msra.mxu0 0.0
    %1091 = vmatprep.subr.mxu0 0.0
    %1092 = vmatpush1.msra.mxu0 0.0
    %1093 = vmatprep.subr.mxu0 0.0
    %1094 = vmatpush1.msra.mxu0 0.0
    %1095 = vmatprep.subr.mxu0 0.0
    %1096 = vmatpush1.msra.mxu0 0.0
    %1097 = vmatprep.subr.mxu0 0.0
    %1098 = vmatpush1.msra.mxu0 0.0
    %1099 = vmatprep.subr.mxu0 0.0
    %1100 = vmatpush1.msra.mxu0 0.0
    %1101 = vmatprep.subr.mxu0 0.0
    %1102 = vmatpush1.msra.mxu0 0.0
    %1103 = vmatprep.subr.mxu0 0.0
    %1104 = vmatpush1.msra.mxu0 0.0
    %1105 = vmatprep.subr.mxu0 0.0
    %1106 = vmatpush1.msra.mxu0 0.0
    %1107 = vmatprep.subr.mxu0 0.0
    %1108 = vmatpush1.msra.mxu0 0.0
    %1109 = vmatprep.mubr.f32.mxu0 0.0
    %1110 = vmatmul.mubr.f32.gmra.mrb[0].mxu0 %v1043
    %v1111 = vpop.f32.mrb[0].mxu0
    %v1112 = vadd.f32 0.0, %v1111
    %v1113 = vpop.f32.mrb[0].mxu0
    %1114 = vdwg.mxu0
    %v1115 = vadd.f32 %v1034, %v1112
    %v1116 = vrcp.pop %v1038
    %v1117 = vmul.f32 %v1115, %v1116
    %v1118 = vpack.c.bf16 %v1117, %v1117
    %v1120 = vsel %vm339, %v1118, 0
    %v1123 = vsel %vm798, %v335, 0
    %1125 = vmatprep.subr.bf16.mxu0 0
    %1126 = vmatpush1.bf16.msra.mxu0 %v1123
    %1127 = vmatprep.subr.bf16.mxu0 0
    %1128 = vmatpush1.bf16.msra.mxu0 0
    %1129 = vmatprep.subr.bf16.mxu0 0
    %1130 = vmatpush1.bf16.msra.mxu0 0
    %1131 = vmatprep.subr.bf16.mxu0 0
    %1132 = vmatpush1.bf16.msra.mxu0 0
    %1133 = vmatprep.subr.bf16.mxu0 0
    %1134 = vmatpush1.bf16.msra.mxu0 0
    %1135 = vmatprep.subr.bf16.mxu0 0
    %1136 = vmatpush1.bf16.msra.mxu0 0
    %1137 = vmatprep.subr.bf16.mxu0 0
    %1138 = vmatpush1.bf16.msra.mxu0 0
    %1139 = vmatprep.subr.bf16.mxu0 0
    %1140 = vmatpush1.bf16.msra.mxu0 0
    %1141 = vmatprep.subr.bf16.mxu0 0
    %1142 = vmatpush1.bf16.msra.mxu0 0
    %1143 = vmatprep.subr.bf16.mxu0 0
    %1144 = vmatpush1.bf16.msra.mxu0 0
    %1145 = vmatprep.subr.bf16.mxu0 0
    %1146 = vmatpush1.bf16.msra.mxu0 0
    %1147 = vmatprep.subr.bf16.mxu0 0
    %1148 = vmatpush1.bf16.msra.mxu0 0
    %1149 = vmatprep.subr.bf16.mxu0 0
    %1150 = vmatpush1.bf16.msra.mxu0 0
    %1151 = vmatprep.subr.bf16.mxu0 0
    %1152 = vmatpush1.bf16.msra.mxu0 0
    %1153 = vmatprep.subr.bf16.mxu0 0
    %1154 = vmatpush1.bf16.msra.mxu0 0
    %1155 = vmatprep.subr.bf16.mxu0 0
    %1156 = vmatpush1.bf16.msra.mxu0 0
    %1157 = vmatprep.mubr.bf16.mxu0 0
    %1158 = vmatmul.mubr.bf16.gmra.mrb[0].mxu0 %v1120
    %v1159 = vpop.f32.mrb[0].mxu0
    %v1160 = vadd.f32 0.0, %v1159
    %v1161 = vpop.f32.mrb[0].mxu0
    %v1162 = vpop.f32.mrb[0].mxu0
    %v1163 = vpop.f32.mrb[0].mxu0
    %1164 = vdwg.mxu0
    %v1165 = vadd.f32 %v883, %v1160
    %1166 = vrot.lane.b32.xlu0 %v338, 104
    %v1167 = vpop.permute.xlu0 %1166
    %v1169 = vsel %vm339, %v1167, 0.0
    %1170 = vadd.xlane.f32.xlu0 %v1169
    %v1171 = vpop.xlane.xlu0 %1170
    %1172 = vrot.lane.b32.xlu0 %v343, 104
    %v1173 = vpop.permute.xlu0 %1172
    %v1175 = vsel %vm339, %v1173, 0.0
    %1176 = vadd.xlane.f32.xlu0 %v1175
    %v1177 = vpop.xlane.xlu0 %1176
    %1178 = vrot.lane.b32.xlu0 %v193, 104
    %v1179 = vpop.permute.xlu0 %1178
    %1180 = vrot.lane.b32.xlu0 %v260, 104
    %v1181 = vpop.permute.xlu0 %1180
    %v1182 = vsel %vm339, %v1179, 0
    %v1184 = vsel %vm339, %v1181, 0
    %1186 = vmatprep.subr.mxu0 0.0
    %1187 = vmatpush1.xpose.msra.mxu0 %v1184
    %1188 = vmatprep.subr.mxu0 0.0
    %1189 = vmatpush1.xpose.msra.mxu0 0.0
    %1190 = vmatprep.subr.mxu0 0.0
    %1191 = vmatpush1.xpose.msra.mxu0 0.0
    %1192 = vmatprep.subr.mxu0 0.0
    %1193 = vmatpush1.xpose.msra.mxu0 0.0
    %1194 = vmatprep.subr.mxu0 0.0
    %1195 = vmatpush1.xpose.msra.mxu0 0.0
    %1196 = vmatprep.subr.mxu0 0.0
    %1197 = vmatpush1.xpose.msra.mxu0 0.0
    %1198 = vmatprep.subr.mxu0 0.0
    %1199 = vmatpush1.xpose.msra.mxu0 0.0
    %1200 = vmatprep.subr.mxu0 0.0
    %1201 = vmatpush1.xpose.msra.mxu0 0.0
    %1202 = vmatprep.subr.mxu0 0.0
    %1203 = vmatpush1.xpose.msra.mxu0 0.0
    %1204 = vmatprep.subr.mxu0 0.0
    %1205 = vmatpush1.xpose.msra.mxu0 0.0
    %1206 = vmatprep.subr.mxu0 0.0
    %1207 = vmatpush1.xpose.msra.mxu0 0.0
    %1208 = vmatprep.subr.mxu0 0.0
    %1209 = vmatpush1.xpose.msra.mxu0 0.0
    %1210 = vmatprep.subr.mxu0 0.0
    %1211 = vmatpush1.xpose.msra.mxu0 0.0
    %1212 = vmatprep.subr.mxu0 0.0
    %1213 = vmatpush1.xpose.msra.mxu0 0.0
    %1214 = vmatprep.subr.mxu0 0.0
    %1215 = vmatpush1.xpose.msra.mxu0 0.0
    %1216 = vmatprep.subr.mxu0 0.0
    %1217 = vmatpush1.xpose.msra.mxu0 0.0
    %1218 = vmatprep.subr.mxu0 0.0
    %1219 = vmatpush1.xpose.msra.mxu0 0.0
    %1220 = vmatprep.subr.mxu0 0.0
    %1221 = vmatpush1.xpose.msra.mxu0 0.0
    %1222 = vmatprep.subr.mxu0 0.0
    %1223 = vmatpush1.xpose.msra.mxu0 0.0
    %1224 = vmatprep.subr.mxu0 0.0
    %1225 = vmatpush1.xpose.msra.mxu0 0.0
    %1226 = vmatprep.subr.mxu0 0.0
    %1227 = vmatpush1.xpose.msra.mxu0 0.0
    %1228 = vmatprep.subr.mxu0 0.0
    %1229 = vmatpush1.xpose.msra.mxu0 0.0
    %1230 = vmatprep.subr.mxu0 0.0
    %1231 = vmatpush1.xpose.msra.mxu0 0.0
    %1232 = vmatprep.subr.mxu0 0.0
    %1233 = vmatpush1.xpose.msra.mxu0 0.0
    %1234 = vmatprep.subr.mxu0 0.0
    %1235 = vmatpush1.xpose.msra.mxu0 0.0
    %1236 = vmatprep.subr.mxu0 0.0
    %1237 = vmatpush1.xpose.msra.mxu0 0.0
    %1238 = vmatprep.subr.mxu0 0.0
    %1239 = vmatpush1.xpose.msra.mxu0 0.0
    %1240 = vmatprep.subr.mxu0 0.0
    %1241 = vmatpush1.xpose.msra.mxu0 0.0
    %1242 = vmatprep.subr.mxu0 0.0
    %1243 = vmatpush1.xpose.msra.mxu0 0.0
    %1244 = vmatprep.subr.mxu0 0.0
    %1245 = vmatpush1.xpose.msra.mxu0 0.0
    %1246 = vmatprep.subr.mxu0 0.0
    %1247 = vmatpush1.xpose.msra.mxu0 0.0
    %1248 = vmatprep.subr.mxu0 0.0
    %1249 = vmatpush1.xpose.msra.mxu0 0.0
    %1250 = vmatprep.mubr.f32.mxu0 0.0
    %1251 = vmatmul.mubr.f32.gmra.mrb[0].mxu0 %v1182
    %v1252 = vpop.f32.mrb[0].mxu0
    %v1253 = vadd.f32 0.0, %v1252
    %v1254 = vpop.f32.mrb[0].mxu0
    %1255 = vdwg.mxu0
    %1256 = vxpose.xlu0.b32.start [1/16] %v1177, 128
    %1257 = vxpose.xlu0.b32.cont [2/16] 0.0, 128
    %1258 = vxpose.xlu0.b32.cont [3/16] 0.0, 128
    %1259 = vxpose.xlu0.b32.cont [4/16] 0.0, 128
    %1260 = vxpose.xlu0.b32.cont [5/16] 0.0, 128
    %1261 = vxpose.xlu0.b32.cont [6/16] 0.0, 128
    %1262 = vxpose.xlu0.b32.cont [7/16] 0.0, 128
    %1263 = vxpose.xlu0.b32.cont [8/16] 0.0, 128
    %1264 = vxpose.xlu0.b32.cont [9/16] 0.0, 128
    %1265 = vxpose.xlu0.b32.cont [10/16] 0.0, 128
    %1266 = vxpose.xlu0.b32.cont [11/16] 0.0, 128
    %1267 = vxpose.xlu0.b32.cont [12/16] 0.0, 128
    %1268 = vxpose.xlu0.b32.cont [13/16] 0.0, 128
    %1269 = vxpose.xlu0.b32.cont [14/16] 0.0, 128
    %1270 = vxpose.xlu0.b32.cont [15/16] 0.0, 128
    %1271 = vxpose.xlu0.b32.end [16/16] 0.0, 128
    %v1272 = vpop.trf.xlu0
    %v1273 = vpop.trf.xlu0
    %v1274 = vpop.trf.xlu0
    %v1275 = vpop.trf.xlu0
    %v1276 = vpop.trf.xlu0
    %v1277 = vpop.trf.xlu0
    %v1278 = vpop.trf.xlu0
    %v1279 = vpop.trf.xlu0
    %v1280 = vpop.trf.xlu0
    %v1281 = vpop.trf.xlu0
    %v1282 = vpop.trf.xlu0
    %v1283 = vpop.trf.xlu0
    %v1284 = vpop.trf.xlu0
    %v1285 = vpop.trf.xlu0
    %v1286 = vpop.trf.xlu0
    %v1287 = vpop.trf.xlu0
    %v1288 = vlaneseq
    %v1289 = vshrl.u32 %v1288, 7
    %v1290 = vsub.s32 0, %v1289
    %v1291 = vrot.slane %v1272, %v1290
    %v1292 = vadd.f32 %v1171, %v1291
    %v1293 = vmul.f32 %v1253, 2.0
    %v1294 = vsub.f32 %v1292, %v1293
    %v1295 = vmax.f32 %v1294, 0.0
    %v1296 = vrsqrt.pop %v1295
    %v1297 = vmul.f32 %v1295, %v1296
    %vm1298 = vcmp.eq.f32.partialorder %v1295, inf
    %v1299 = vsel %vm1298, %v1295, %v1297
    %vm1300 = vcmp.eq.f32.partialorder %v1295, 0.0
    %v1301 = vand.u32 %v1295, 2147483648
    %v1302 = vsel %vm1300, %v1301, %v1299
    %v1303 = vsel %vm339, %v1302, inf
    %1304 = vmin.xlane.f32.xlu0 %v1303
    %v1305 = vpop.xlane.xlu0 %1304
    %v1306 = vsub.f32 %v1305, inf
    %v1307 = vmul.f32 %v1306, 1.442695
    %v1308 = vpow.pop %v1307
    %v1309 = vsub.f32 %v1305, %v1302
    %v1310 = vmul.f32 %v1309, 1.442695
    %v1311 = vpow.pop %v1310
    %v1312 = vmul.f32 %v1308, 0.0
    %v1313 = vsel %vm339, %v1311, 0.0
    %1314 = vadd.xlane.f32.xlu0 %v1313
    %v1315 = vpop.xlane.xlu0 %1314
    %v1316 = vadd.f32 %v1312, %v1315
    %1317 = vrot.lane.b32.xlu0 %v327, 104
    %v1318 = vpop.permute.xlu0 %1317
    %v1321 = vsel %vm339, %v1311, 0
    %1323 = vmatprep.subr.mxu0 0.0
    %1324 = vmatpush1.msra.mxu0 %v1318
    %1325 = vmatprep.subr.mxu0 0.0
    %1326 = vmatpush1.msra.mxu0 0.0
    %1327 = vmatprep.subr.mxu0 0.0
    %1328 = vmatpush1.msra.mxu0 0.0
    %1329 = vmatprep.subr.mxu0 0.0
    %1330 = vmatpush1.msra.mxu0 0.0
    %1331 = vmatprep.subr.mxu0 0.0
    %1332 = vmatpush1.msra.mxu0 0.0
    %1333 = vmatprep.subr.mxu0 0.0
    %1334 = vmatpush1.msra.mxu0 0.0
    %1335 = vmatprep.subr.mxu0 0.0
    %1336 = vmatpush1.msra.mxu0 0.0
    %1337 = vmatprep.subr.mxu0 0.0
    %1338 = vmatpush1.msra.mxu0 0.0
    %1339 = vmatprep.subr.mxu0 0.0
    %1340 = vmatpush1.msra.mxu0 0.0
    %1341 = vmatprep.subr.mxu0 0.0
    %1342 = vmatpush1.msra.mxu0 0.0
    %1343 = vmatprep.subr.mxu0 0.0
    %1344 = vmatpush1.msra.mxu0 0.0
    %1345 = vmatprep.subr.mxu0 0.0
    %1346 = vmatpush1.msra.mxu0 0.0
    %1347 = vmatprep.subr.mxu0 0.0
    %1348 = vmatpush1.msra.mxu0 0.0
    %1349 = vmatprep.subr.mxu0 0.0
    %1350 = vmatpush1.msra.mxu0 0.0
    %1351 = vmatprep.subr.mxu0 0.0
    %1352 = vmatpush1.msra.mxu0 0.0
    %1353 = vmatprep.subr.mxu0 0.0
    %1354 = vmatpush1.msra.mxu0 0.0
    %1355 = vmatprep.subr.mxu0 0.0
    %1356 = vmatpush1.msra.mxu0 0.0
    %1357 = vmatprep.subr.mxu0 0.0
    %1358 = vmatpush1.msra.mxu0 0.0
    %1359 = vmatprep.subr.mxu0 0.0
    %1360 = vmatpush1.msra.mxu0 0.0
    %1361 = vmatprep.subr.mxu0 0.0
    %1362 = vmatpush1.msra.mxu0 0.0
    %1363 = vmatprep.subr.mxu0 0.0
    %1364 = vmatpush1.msra.mxu0 0.0
    %1365 = vmatprep.subr.mxu0 0.0
    %1366 = vmatpush1.msra.mxu0 0.0
    %1367 = vmatprep.subr.mxu0 0.0
    %1368 = vmatpush1.msra.mxu0 0.0
    %1369 = vmatprep.subr.mxu0 0.0
    %1370 = vmatpush1.msra.mxu0 0.0
    %1371 = vmatprep.subr.mxu0 0.0
    %1372 = vmatpush1.msra.mxu0 0.0
    %1373 = vmatprep.subr.mxu0 0.0
    %1374 = vmatpush1.msra.mxu0 0.0
    %1375 = vmatprep.subr.mxu0 0.0
    %1376 = vmatpush1.msra.mxu0 0.0
    %1377 = vmatprep.subr.mxu0 0.0
    %1378 = vmatpush1.msra.mxu0 0.0
    %1379 = vmatprep.subr.mxu0 0.0
    %1380 = vmatpush1.msra.mxu0 0.0
    %1381 = vmatprep.subr.mxu0 0.0
    %1382 = vmatpush1.msra.mxu0 0.0
    %1383 = vmatprep.subr.mxu0 0.0
    %1384 = vmatpush1.msra.mxu0 0.0
    %1385 = vmatprep.subr.mxu0 0.0
    %1386 = vmatpush1.msra.mxu0 0.0
    %1387 = vmatprep.mubr.f32.mxu0 0.0
    %1388 = vmatmul.mubr.f32.gmra.mrb[0].mxu0 %v1321
    %v1389 = vpop.f32.mrb[0].mxu0
    %v1390 = vadd.f32 0.0, %v1389
    %v1391 = vpop.f32.mrb[0].mxu0
    %1392 = vdwg.mxu0
    %v1393 = vadd.f32 %v1312, %v1390
    %v1394 = vrcp.pop %v1316
    %v1395 = vmul.f32 %v1393, %v1394
    %v1396 = vpack.c.bf16 %v1395, %v1395
    %v1398 = vsel %vm339, %v1396, 0
    %v1401 = vsel %vm798, %v336, 0
    %1403 = vmatprep.subr.bf16.mxu0 0
    %1404 = vmatpush1.bf16.msra.mxu0 %v1401
    %1405 = vmatprep.subr.bf16.mxu0 0
    %1406 = vmatpush1.bf16.msra.mxu0 0
    %1407 = vmatprep.subr.bf16.mxu0 0
    %1408 = vmatpush1.bf16.msra.mxu0 0
    %1409 = vmatprep.subr.bf16.mxu0 0
    %1410 = vmatpush1.bf16.msra.mxu0 0
    %1411 = vmatprep.subr.bf16.mxu0 0
    %1412 = vmatpush1.bf16.msra.mxu0 0
    %1413 = vmatprep.subr.bf16.mxu0 0
    %1414 = vmatpush1.bf16.msra.mxu0 0
    %1415 = vmatprep.subr.bf16.mxu0 0
    %1416 = vmatpush1.bf16.msra.mxu0 0
    %1417 = vmatprep.subr.bf16.mxu0 0
    %1418 = vmatpush1.bf16.msra.mxu0 0
    %1419 = vmatprep.subr.bf16.mxu0 0
    %1420 = vmatpush1.bf16.msra.mxu0 0
    %1421 = vmatprep.subr.bf16.mxu0 0
    %1422 = vmatpush1.bf16.msra.mxu0 0
    %1423 = vmatprep.subr.bf16.mxu0 0
    %1424 = vmatpush1.bf16.msra.mxu0 0
    %1425 = vmatprep.subr.bf16.mxu0 0
    %1426 = vmatpush1.bf16.msra.mxu0 0
    %1427 = vmatprep.subr.bf16.mxu0 0
    %1428 = vmatpush1.bf16.msra.mxu0 0
    %1429 = vmatprep.subr.bf16.mxu0 0
    %1430 = vmatpush1.bf16.msra.mxu0 0
    %1431 = vmatprep.subr.bf16.mxu0 0
    %1432 = vmatpush1.bf16.msra.mxu0 0
    %1433 = vmatprep.subr.bf16.mxu0 0
    %1434 = vmatpush1.bf16.msra.mxu0 0
    %1435 = vmatprep.mubr.bf16.mxu0 0
    %1436 = vmatmul.mubr.bf16.gmra.mrb[0].mxu0 %v1398
    %v1437 = vpop.f32.mrb[0].mxu0
    %v1438 = vadd.f32 0.0, %v1437
    %v1439 = vpop.f32.mrb[0].mxu0
    %v1440 = vpop.f32.mrb[0].mxu0
    %v1441 = vpop.f32.mrb[0].mxu0
    %1442 = vdwg.mxu0
    %v1443 = vadd.f32 %v1165, %v1438
    %v1445 = vlaneseq
    %v1446 = vshrl.u32 %v1445, 7
    %v1447 = vsub.s32 0, %v1446
    %v1448 = vrot.slane %v337, %v1447
    %v1450 = vadd.f32 %v1443, %v1448
    %1451 = vst.msk [vmem:[#allocation13] sm:$0xff] %vm154, %v1450
    %v1452 = vmul.f32 %v196, %v196
    %v1453 = vsel %vm339, %v1452, 0.0
    %1454 = vadd.xlane.f32.xlu0 %v1453
    %v1455 = vpop.xlane.xlu0 %1454
    %v1456 = vmul.f32 %v263, %v263
    %v1457 = vsel %vm339, %v1456, 0.0
    %1458 = vadd.xlane.f32.xlu0 %v1457
    %v1459 = vpop.xlane.xlu0 %1458
    %v1461 = vsel %vm339, %v196, 0
    %v1464 = vsel %vm339, %v263, 0
    %1466 = vmatprep.subr.mxu0 0.0
    %1467 = vmatpush1.xpose.msra.mxu0 %v1464
    %1468 = vmatprep.subr.mxu0 0.0
    %1469 = vmatpush1.xpose.msra.mxu0 0.0
    %1470 = vmatprep.subr.mxu0 0.0
    %1471 = vmatpush1.xpose.msra.mxu0 0.0
    %1472 = vmatprep.subr.mxu0 0.0
    %1473 = vmatpush1.xpose.msra.mxu0 0.0
    %1474 = vmatprep.subr.mxu0 0.0
    %1475 = vmatpush1.xpose.msra.mxu0 0.0
    %1476 = vmatprep.subr.mxu0 0.0
    %1477 = vmatpush1.xpose.msra.mxu0 0.0
    %1478 = vmatprep.subr.mxu0 0.0
    %1479 = vmatpush1.xpose.msra.mxu0 0.0
    %1480 = vmatprep.subr.mxu0 0.0
    %1481 = vmatpush1.xpose.msra.mxu0 0.0
    %1482 = vmatprep.subr.mxu0 0.0
    %1483 = vmatpush1.xpose.msra.mxu0 0.0
    %1484 = vmatprep.subr.mxu0 0.0
    %1485 = vmatpush1.xpose.msra.mxu0 0.0
    %1486 = vmatprep.subr.mxu0 0.0
    %1487 = vmatpush1.xpose.msra.mxu0 0.0
    %1488 = vmatprep.subr.mxu0 0.0
    %1489 = vmatpush1.xpose.msra.mxu0 0.0
    %1490 = vmatprep.subr.mxu0 0.0
    %1491 = vmatpush1.xpose.msra.mxu0 0.0
    %1492 = vmatprep.subr.mxu0 0.0
    %1493 = vmatpush1.xpose.msra.mxu0 0.0
    %1494 = vmatprep.subr.mxu0 0.0
    %1495 = vmatpush1.xpose.msra.mxu0 0.0
    %1496 = vmatprep.subr.mxu0 0.0
    %1497 = vmatpush1.xpose.msra.mxu0 0.0
    %1498 = vmatprep.subr.mxu0 0.0
    %1499 = vmatpush1.xpose.msra.mxu0 0.0
    %1500 = vmatprep.subr.mxu0 0.0
    %1501 = vmatpush1.xpose.msra.mxu0 0.0
    %1502 = vmatprep.subr.mxu0 0.0
    %1503 = vmatpush1.xpose.msra.mxu0 0.0
    %1504 = vmatprep.subr.mxu0 0.0
    %1505 = vmatpush1.xpose.msra.mxu0 0.0
    %1506 = vmatprep.subr.mxu0 0.0
    %1507 = vmatpush1.xpose.msra.mxu0 0.0
    %1508 = vmatprep.subr.mxu0 0.0
    %1509 = vmatpush1.xpose.msra.mxu0 0.0
    %1510 = vmatprep.subr.mxu0 0.0
    %1511 = vmatpush1.xpose.msra.mxu0 0.0
    %1512 = vmatprep.subr.mxu0 0.0
    %1513 = vmatpush1.xpose.msra.mxu0 0.0
    %1514 = vmatprep.subr.mxu0 0.0
    %1515 = vmatpush1.xpose.msra.mxu0 0.0
    %1516 = vmatprep.subr.mxu0 0.0
    %1517 = vmatpush1.xpose.msra.mxu0 0.0
    %1518 = vmatprep.subr.mxu0 0.0
    %1519 = vmatpush1.xpose.msra.mxu0 0.0
    %1520 = vmatprep.subr.mxu0 0.0
    %1521 = vmatpush1.xpose.msra.mxu0 0.0
    %1522 = vmatprep.subr.mxu0 0.0
    %1523 = vmatpush1.xpose.msra.mxu0 0.0
    %1524 = vmatprep.subr.mxu0 0.0
    %1525 = vmatpush1.xpose.msra.mxu0 0.0
    %1526 = vmatprep.subr.mxu0 0.0
    %1527 = vmatpush1.xpose.msra.mxu0 0.0
    %1528 = vmatprep.subr.mxu0 0.0
    %1529 = vmatpush1.xpose.msra.mxu0 0.0
    %1530 = vmatprep.mubr.f32.mxu0 0.0
    %1531 = vmatmul.mubr.f32.gmra.mrb[0].mxu0 %v1461
    %v1532 = vpop.f32.mrb[0].mxu0
    %v1533 = vadd.f32 0.0, %v1532
    %v1534 = vpop.f32.mrb[0].mxu0
    %1535 = vdwg.mxu0
    %1536 = vxpose.xlu0.b32.start [1/16] %v1459, 128
    %1537 = vxpose.xlu0.b32.cont [2/16] 0.0, 128
    %1538 = vxpose.xlu0.b32.cont [3/16] 0.0, 128
    %1539 = vxpose.xlu0.b32.cont [4/16] 0.0, 128
    %1540 = vxpose.xlu0.b32.cont [5/16] 0.0, 128
    %1541 = vxpose.xlu0.b32.cont [6/16] 0.0, 128
    %1542 = vxpose.xlu0.b32.cont [7/16] 0.0, 128
    %1543 = vxpose.xlu0.b32.cont [8/16] 0.0, 128
    %1544 = vxpose.xlu0.b32.cont [9/16] 0.0, 128
    %1545 = vxpose.xlu0.b32.cont [10/16] 0.0, 128
    %1546 = vxpose.xlu0.b32.cont [11/16] 0.0, 128
    %1547 = vxpose.xlu0.b32.cont [12/16] 0.0, 128
    %1548 = vxpose.xlu0.b32.cont [13/16] 0.0, 128
    %1549 = vxpose.xlu0.b32.cont [14/16] 0.0, 128
    %1550 = vxpose.xlu0.b32.cont [15/16] 0.0, 128
    %1551 = vxpose.xlu0.b32.end [16/16] 0.0, 128
    %v1552 = vpop.trf.xlu0
    %v1553 = vpop.trf.xlu0
    %v1554 = vpop.trf.xlu0
    %v1555 = vpop.trf.xlu0
    %v1556 = vpop.trf.xlu0
    %v1557 = vpop.trf.xlu0
    %v1558 = vpop.trf.xlu0
    %v1559 = vpop.trf.xlu0
    %v1560 = vpop.trf.xlu0
    %v1561 = vpop.trf.xlu0
    %v1562 = vpop.trf.xlu0
    %v1563 = vpop.trf.xlu0
    %v1564 = vpop.trf.xlu0
    %v1565 = vpop.trf.xlu0
    %v1566 = vpop.trf.xlu0
    %v1567 = vpop.trf.xlu0
    %v1568 = vlaneseq
    %v1569 = vshrl.u32 %v1568, 7
    %v1570 = vsub.s32 0, %v1569
    %v1571 = vrot.slane %v1552, %v1570
    %v1572 = vadd.f32 %v1455, %v1571
    %v1573 = vmul.f32 %v1533, 2.0
    %v1574 = vsub.f32 %v1572, %v1573
    %v1575 = vmax.f32 %v1574, 0.0
    %v1576 = vrsqrt.pop %v1575
    %v1577 = vmul.f32 %v1575, %v1576
    %vm1578 = vcmp.eq.f32.partialorder %v1575, inf
    %v1579 = vsel %vm1578, %v1575, %v1577
    %vm1580 = vcmp.eq.f32.partialorder %v1575, 0.0
    %v1581 = vand.u32 %v1575, 2147483648
    %v1582 = vsel %vm1580, %v1581, %v1579
    %v1583 = vsel %vm339, %v1582, inf
    %1584 = vmin.xlane.f32.xlu0 %v1583
    %v1585 = vpop.xlane.xlu0 %1584
    %v1586 = vsub.f32 %v1585, inf
    %v1587 = vmul.f32 %v1586, 1.442695
    %v1588 = vpow.pop %v1587
    %v1589 = vsub.f32 %v1585, %v1582
    %v1590 = vmul.f32 %v1589, 1.442695
    %v1591 = vpow.pop %v1590
    %v1592 = vmul.f32 %v1588, 0.0
    %v1593 = vsel %vm339, %v1591, 0.0
    %1594 = vadd.xlane.f32.xlu0 %v1593
    %v1595 = vpop.xlane.xlu0 %1594
    %v1596 = vadd.f32 %v1592, %v1595
    %v1598 = vsel %vm339, %v1591, 0
    %1600 = vmatprep.subr.mxu0 0.0
    %1601 = vmatpush1.msra.mxu0 %v330
    %1602 = vmatprep.subr.mxu0 0.0
    %1603 = vmatpush1.msra.mxu0 0.0
    %1604 = vmatprep.subr.mxu0 0.0
    %1605 = vmatpush1.msra.mxu0 0.0
    %1606 = vmatprep.subr.mxu0 0.0
    %1607 = vmatpush1.msra.mxu0 0.0
    %1608 = vmatprep.subr.mxu0 0.0
    %1609 = vmatpush1.msra.mxu0 0.0
    %1610 = vmatprep.subr.mxu0 0.0
    %1611 = vmatpush1.msra.mxu0 0.0
    %1612 = vmatprep.subr.mxu0 0.0
    %1613 = vmatpush1.msra.mxu0 0.0
    %1614 = vmatprep.subr.mxu0 0.0
    %1615 = vmatpush1.msra.mxu0 0.0
    %1616 = vmatprep.subr.mxu0 0.0
    %1617 = vmatpush1.msra.mxu0 0.0
    %1618 = vmatprep.subr.mxu0 0.0
    %1619 = vmatpush1.msra.mxu0 0.0
    %1620 = vmatprep.subr.mxu0 0.0
    %1621 = vmatpush1.msra.mxu0 0.0
    %1622 = vmatprep.subr.mxu0 0.0
    %1623 = vmatpush1.msra.mxu0 0.0
    %1624 = vmatprep.subr.mxu0 0.0
    %1625 = vmatpush1.msra.mxu0 0.0
    %1626 = vmatprep.subr.mxu0 0.0
    %1627 = vmatpush1.msra.mxu0 0.0
    %1628 = vmatprep.subr.mxu0 0.0
    %1629 = vmatpush1.msra.mxu0 0.0
    %1630 = vmatprep.subr.mxu0 0.0
    %1631 = vmatpush1.msra.mxu0 0.0
    %1632 = vmatprep.subr.mxu0 0.0
    %1633 = vmatpush1.msra.mxu0 0.0
    %1634 = vmatprep.subr.mxu0 0.0
    %1635 = vmatpush1.msra.mxu0 0.0
    %1636 = vmatprep.subr.mxu0 0.0
    %1637 = vmatpush1.msra.mxu0 0.0
    %1638 = vmatprep.subr.mxu0 0.0
    %1639 = vmatpush1.msra.mxu0 0.0
    %1640 = vmatprep.subr.mxu0 0.0
    %1641 = vmatpush1.msra.mxu0 0.0
    %1642 = vmatprep.subr.mxu0 0.0
    %1643 = vmatpush1.msra.mxu0 0.0
    %1644 = vmatprep.subr.mxu0 0.0
    %1645 = vmatpush1.msra.mxu0 0.0
    %1646 = vmatprep.subr.mxu0 0.0
    %1647 = vmatpush1.msra.mxu0 0.0
    %1648 = vmatprep.subr.mxu0 0.0
    %1649 = vmatpush1.msra.mxu0 0.0
    %1650 = vmatprep.subr.mxu0 0.0
    %1651 = vmatpush1.msra.mxu0 0.0
    %1652 = vmatprep.subr.mxu0 0.0
    %1653 = vmatpush1.msra.mxu0 0.0
    %1654 = vmatprep.subr.mxu0 0.0
    %1655 = vmatpush1.msra.mxu0 0.0
    %1656 = vmatprep.subr.mxu0 0.0
    %1657 = vmatpush1.msra.mxu0 0.0
    %1658 = vmatprep.subr.mxu0 0.0
    %1659 = vmatpush1.msra.mxu0 0.0
    %1660 = vmatprep.subr.mxu0 0.0
    %1661 = vmatpush1.msra.mxu0 0.0
    %1662 = vmatprep.subr.mxu0 0.0
    %1663 = vmatpush1.msra.mxu0 0.0
    %1664 = vmatprep.mubr.f32.mxu0 0.0
    %1665 = vmatmul.mubr.f32.gmra.mrb[0].mxu0 %v1598
    %v1666 = vpop.f32.mrb[0].mxu0
    %v1667 = vadd.f32 0.0, %v1666
    %v1668 = vpop.f32.mrb[0].mxu0
    %1669 = vdwg.mxu0
    %v1670 = vadd.f32 %v1592, %v1667
    %v1671 = vrcp.pop %v1596
    %v1672 = vmul.f32 %v1670, %v1671
    %v1673 = vpack.c.bf16 %v1672, %v1672
    %1675 = vrot.lane.b32.xlu0 %v1452, 120
    %v1676 = vpop.permute.xlu0 %1675
    %v1678 = vsel %vm339, %v1676, 0.0
    %1679 = vadd.xlane.f32.xlu0 %v1678
    %v1680 = vpop.xlane.xlu0 %1679
    %1682 = vrot.lane.b32.xlu0 %v1456, 120
    %v1683 = vpop.permute.xlu0 %1682
    %v1685 = vsel %vm339, %v1683, 0.0
    %1686 = vadd.xlane.f32.xlu0 %v1685
    %v1687 = vpop.xlane.xlu0 %1686
    %1688 = vrot.lane.b32.xlu0 %v196, 120
    %v1689 = vpop.permute.xlu0 %1688
    %1690 = vrot.lane.b32.xlu0 %v263, 120
    %v1691 = vpop.permute.xlu0 %1690
    %v1692 = vsel %vm339, %v1689, 0
    %v1694 = vsel %vm339, %v1691, 0
    %1696 = vmatprep.subr.mxu0 0.0
    %1697 = vmatpush1.xpose.msra.mxu0 %v1694
    %1698 = vmatprep.subr.mxu0 0.0
    %1699 = vmatpush1.xpose.msra.mxu0 0.0
    %1700 = vmatprep.subr.mxu0 0.0
    %1701 = vmatpush1.xpose.msra.mxu0 0.0
    %1702 = vmatprep.subr.mxu0 0.0
    %1703 = vmatpush1.xpose.msra.mxu0 0.0
    %1704 = vmatprep.subr.mxu0 0.0
    %1705 = vmatpush1.xpose.msra.mxu0 0.0
    %1706 = vmatprep.subr.mxu0 0.0
    %1707 = vmatpush1.xpose.msra.mxu0 0.0
    %1708 = vmatprep.subr.mxu0 0.0
    %1709 = vmatpush1.xpose.msra.mxu0 0.0
    %1710 = vmatprep.subr.mxu0 0.0
    %1711 = vmatpush1.xpose.msra.mxu0 0.0
    %1712 = vmatprep.subr.mxu0 0.0
    %1713 = vmatpush1.xpose.msra.mxu0 0.0
    %1714 = vmatprep.subr.mxu0 0.0
    %1715 = vmatpush1.xpose.msra.mxu0 0.0
    %1716 = vmatprep.subr.mxu0 0.0
    %1717 = vmatpush1.xpose.msra.mxu0 0.0
    %1718 = vmatprep.subr.mxu0 0.0
    %1719 = vmatpush1.xpose.msra.mxu0 0.0
    %1720 = vmatprep.subr.mxu0 0.0
    %1721 = vmatpush1.xpose.msra.mxu0 0.0
    %1722 = vmatprep.subr.mxu0 0.0
    %1723 = vmatpush1.xpose.msra.mxu0 0.0
    %1724 = vmatprep.subr.mxu0 0.0
    %1725 = vmatpush1.xpose.msra.mxu0 0.0
    %1726 = vmatprep.subr.mxu0 0.0
    %1727 = vmatpush1.xpose.msra.mxu0 0.0
    %1728 = vmatprep.subr.mxu0 0.0
    %1729 = vmatpush1.xpose.msra.mxu0 0.0
    %1730 = vmatprep.subr.mxu0 0.0
    %1731 = vmatpush1.xpose.msra.mxu0 0.0
    %1732 = vmatprep.subr.mxu0 0.0
    %1733 = vmatpush1.xpose.msra.mxu0 0.0
    %1734 = vmatprep.subr.mxu0 0.0
    %1735 = vmatpush1.xpose.msra.mxu0 0.0
    %1736 = vmatprep.subr.mxu0 0.0
    %1737 = vmatpush1.xpose.msra.mxu0 0.0
    %1738 = vmatprep.subr.mxu0 0.0
    %1739 = vmatpush1.xpose.msra.mxu0 0.0
    %1740 = vmatprep.subr.mxu0 0.0
    %1741 = vmatpush1.xpose.msra.mxu0 0.0
    %1742 = vmatprep.subr.mxu0 0.0
    %1743 = vmatpush1.xpose.msra.mxu0 0.0
    %1744 = vmatprep.subr.mxu0 0.0
    %1745 = vmatpush1.xpose.msra.mxu0 0.0
    %1746 = vmatprep.subr.mxu0 0.0
    %1747 = vmatpush1.xpose.msra.mxu0 0.0
    %1748 = vmatprep.subr.mxu0 0.0
    %1749 = vmatpush1.xpose.msra.mxu0 0.0
    %1750 = vmatprep.subr.mxu0 0.0
    %1751 = vmatpush1.xpose.msra.mxu0 0.0
    %1752 = vmatprep.subr.mxu0 0.0
    %1753 = vmatpush1.xpose.msra.mxu0 0.0
    %1754 = vmatprep.subr.mxu0 0.0
    %1755 = vmatpush1.xpose.msra.mxu0 0.0
    %1756 = vmatprep.subr.mxu0 0.0
    %1757 = vmatpush1.xpose.msra.mxu0 0.0
    %1758 = vmatprep.subr.mxu0 0.0
    %1759 = vmatpush1.xpose.msra.mxu0 0.0
    %1760 = vmatprep.mubr.f32.mxu0 0.0
    %1761 = vmatmul.mubr.f32.gmra.mrb[0].mxu0 %v1692
    %v1762 = vpop.f32.mrb[0].mxu0
    %v1763 = vadd.f32 0.0, %v1762
    %v1764 = vpop.f32.mrb[0].mxu0
    %1765 = vdwg.mxu0
    %1766 = vxpose.xlu0.b32.start [1/16] %v1687, 128
    %1767 = vxpose.xlu0.b32.cont [2/16] 0.0, 128
    %1768 = vxpose.xlu0.b32.cont [3/16] 0.0, 128
    %1769 = vxpose.xlu0.b32.cont [4/16] 0.0, 128
    %1770 = vxpose.xlu0.b32.cont [5/16] 0.0, 128
    %1771 = vxpose.xlu0.b32.cont [6/16] 0.0, 128
    %1772 = vxpose.xlu0.b32.cont [7/16] 0.0, 128
    %1773 = vxpose.xlu0.b32.cont [8/16] 0.0, 128
    %1774 = vxpose.xlu0.b32.cont [9/16] 0.0, 128
    %1775 = vxpose.xlu0.b32.cont [10/16] 0.0, 128
    %1776 = vxpose.xlu0.b32.cont [11/16] 0.0, 128
    %1777 = vxpose.xlu0.b32.cont [12/16] 0.0, 128
    %1778 = vxpose.xlu0.b32.cont [13/16] 0.0, 128
    %1779 = vxpose.xlu0.b32.cont [14/16] 0.0, 128
    %1780 = vxpose.xlu0.b32.cont [15/16] 0.0, 128
    %1781 = vxpose.xlu0.b32.end [16/16] 0.0, 128
    %v1782 = vpop.trf.xlu0
    %v1783 = vpop.trf.xlu0
    %v1784 = vpop.trf.xlu0
    %v1785 = vpop.trf.xlu0
    %v1786 = vpop.trf.xlu0
    %v1787 = vpop.trf.xlu0
    %v1788 = vpop.trf.xlu0
    %v1789 = vpop.trf.xlu0
    %v1790 = vpop.trf.xlu0
    %v1791 = vpop.trf.xlu0
    %v1792 = vpop.trf.xlu0
    %v1793 = vpop.trf.xlu0
    %v1794 = vpop.trf.xlu0
    %v1795 = vpop.trf.xlu0
    %v1796 = vpop.trf.xlu0
    %v1797 = vpop.trf.xlu0
    %v1798 = vlaneseq
    %v1799 = vshrl.u32 %v1798, 7
    %v1800 = vsub.s32 0, %v1799
    %v1801 = vrot.slane %v1782, %v1800
    %v1802 = vadd.f32 %v1680, %v1801
    %v1803 = vmul.f32 %v1763, 2.0
    %v1804 = vsub.f32 %v1802, %v1803
    %v1805 = vmax.f32 %v1804, 0.0
    %v1806 = vrsqrt.pop %v1805
    %v1807 = vmul.f32 %v1805, %v1806
    %vm1808 = vcmp.eq.f32.partialorder %v1805, inf
    %v1809 = vsel %vm1808, %v1805, %v1807
    %vm1810 = vcmp.eq.f32.partialorder %v1805, 0.0
    %v1811 = vand.u32 %v1805, 2147483648
    %v1812 = vsel %vm1810, %v1811, %v1809
    %v1813 = vsel %vm339, %v1812, inf
    %1814 = vmin.xlane.f32.xlu0 %v1813
    %v1815 = vpop.xlane.xlu0 %1814
    %v1816 = vsub.f32 %v1815, inf
    %v1817 = vmul.f32 %v1816, 1.442695
    %v1818 = vpow.pop %v1817
    %v1819 = vsub.f32 %v1815, %v1812
    %v1820 = vmul.f32 %v1819, 1.442695
    %v1821 = vpow.pop %v1820
    %v1822 = vmul.f32 %v1818, 0.0
    %v1823 = vsel %vm339, %v1821, 0.0
    %1824 = vadd.xlane.f32.xlu0 %v1823
    %v1825 = vpop.xlane.xlu0 %1824
    %v1826 = vadd.f32 %v1822, %v1825
    %1828 = vrot.lane.b32.xlu0 %v330, 120
    %v1829 = vpop.permute.xlu0 %1828
    %v1832 = vsel %vm339, %v1821, 0
    %1834 = vmatprep.subr.mxu0 0.0
    %1835 = vmatpush1.msra.mxu0 %v1829
    %1836 = vmatprep.subr.mxu0 0.0
    %1837 = vmatpush1.msra.mxu0 0.0
    %1838 = vmatprep.subr.mxu0 0.0
    %1839 = vmatpush1.msra.mxu0 0.0
    %1840 = vmatprep.subr.mxu0 0.0
    %1841 = vmatpush1.msra.mxu0 0.0
    %1842 = vmatprep.subr.mxu0 0.0
    %1843 = vmatpush1.msra.mxu0 0.0
    %1844 = vmatprep.subr.mxu0 0.0
    %1845 = vmatpush1.msra.mxu0 0.0
    %1846 = vmatprep.subr.mxu0 0.0
    %1847 = vmatpush1.msra.mxu0 0.0
    %1848 = vmatprep.subr.mxu0 0.0
    %1849 = vmatpush1.msra.mxu0 0.0
    %1850 = vmatprep.subr.mxu0 0.0
    %1851 = vmatpush1.msra.mxu0 0.0
    %1852 = vmatprep.subr.mxu0 0.0
    %1853 = vmatpush1.msra.mxu0 0.0
    %1854 = vmatprep.subr.mxu0 0.0
    %1855 = vmatpush1.msra.mxu0 0.0
    %1856 = vmatprep.subr.mxu0 0.0
    %1857 = vmatpush1.msra.mxu0 0.0
    %1858 = vmatprep.subr.mxu0 0.0
    %1859 = vmatpush1.msra.mxu0 0.0
    %1860 = vmatprep.subr.mxu0 0.0
    %1861 = vmatpush1.msra.mxu0 0.0
    %1862 = vmatprep.subr.mxu0 0.0
    %1863 = vmatpush1.msra.mxu0 0.0
    %1864 = vmatprep.subr.mxu0 0.0
    %1865 = vmatpush1.msra.mxu0 0.0
    %1866 = vmatprep.subr.mxu0 0.0
    %1867 = vmatpush1.msra.mxu0 0.0
    %1868 = vmatprep.subr.mxu0 0.0
    %1869 = vmatpush1.msra.mxu0 0.0
    %1870 = vmatprep.subr.mxu0 0.0
    %1871 = vmatpush1.msra.mxu0 0.0
    %1872 = vmatprep.subr.mxu0 0.0
    %1873 = vmatpush1.msra.mxu0 0.0
    %1874 = vmatprep.subr.mxu0 0.0
    %1875 = vmatpush1.msra.mxu0 0.0
    %1876 = vmatprep.subr.mxu0 0.0
    %1877 = vmatpush1.msra.mxu0 0.0
    %1878 = vmatprep.subr.mxu0 0.0
    %1879 = vmatpush1.msra.mxu0 0.0
    %1880 = vmatprep.subr.mxu0 0.0
    %1881 = vmatpush1.msra.mxu0 0.0
    %1882 = vmatprep.subr.mxu0 0.0
    %1883 = vmatpush1.msra.mxu0 0.0
    %1884 = vmatprep.subr.mxu0 0.0
    %1885 = vmatpush1.msra.mxu0 0.0
    %1886 = vmatprep.subr.mxu0 0.0
    %1887 = vmatpush1.msra.mxu0 0.0
    %1888 = vmatprep.subr.mxu0 0.0
    %1889 = vmatpush1.msra.mxu0 0.0
    %1890 = vmatprep.subr.mxu0 0.0
    %1891 = vmatpush1.msra.mxu0 0.0
    %1892 = vmatprep.subr.mxu0 0.0
    %1893 = vmatpush1.msra.mxu0 0.0
    %1894 = vmatprep.subr.mxu0 0.0
    %1895 = vmatpush1.msra.mxu0 0.0
    %1896 = vmatprep.subr.mxu0 0.0
    %1897 = vmatpush1.msra.mxu0 0.0
    %1898 = vmatprep.mubr.f32.mxu0 0.0
    %1899 = vmatmul.mubr.f32.gmra.mrb[0].mxu0 %v1832
    %v1900 = vpop.f32.mrb[0].mxu0
    %v1901 = vadd.f32 0.0, %v1900
    %v1902 = vpop.f32.mrb[0].mxu0
    %1903 = vdwg.mxu0
    %v1904 = vadd.f32 %v1822, %v1901
    %v1905 = vrcp.pop %v1826
    %v1906 = vmul.f32 %v1904, %v1905
    %v1907 = vpack.c.bf16 %v1906, %v1906
    %v1909 = vsel %vm339, %v1907, 0
    %1911 = vmatprep.subr.bf16.mxu0 0
    %1912 = vmatpush1.bf16.msra.mxu0 %v800
    %1913 = vmatprep.subr.bf16.mxu0 0
    %1914 = vmatpush1.bf16.msra.mxu0 0
    %1915 = vmatprep.subr.bf16.mxu0 0
    %1916 = vmatpush1.bf16.msra.mxu0 0
    %1917 = vmatprep.subr.bf16.mxu0 0
    %1918 = vmatpush1.bf16.msra.mxu0 0
    %1919 = vmatprep.subr.bf16.mxu0 0
    %1920 = vmatpush1.bf16.msra.mxu0 0
    %1921 = vmatprep.subr.bf16.mxu0 0
    %1922 = vmatpush1.bf16.msra.mxu0 0
    %1923 = vmatprep.subr.bf16.mxu0 0
    %1924 = vmatpush1.bf16.msra.mxu0 0
    %1925 = vmatprep.subr.bf16.mxu0 0
    %1926 = vmatpush1.bf16.msra.mxu0 0
    %1927 = vmatprep.subr.bf16.mxu0 0
    %1928 = vmatpush1.bf16.msra.mxu0 0
    %1929 = vmatprep.subr.bf16.mxu0 0
    %1930 = vmatpush1.bf16.msra.mxu0 0
    %1931 = vmatprep.subr.bf16.mxu0 0
    %1932 = vmatpush1.bf16.msra.mxu0 0
    %1933 = vmatprep.subr.bf16.mxu0 0
    %1934 = vmatpush1.bf16.msra.mxu0 0
    %1935 = vmatprep.subr.bf16.mxu0 0
    %1936 = vmatpush1.bf16.msra.mxu0 0
    %1937 = vmatprep.subr.bf16.mxu0 0
    %1938 = vmatpush1.bf16.msra.mxu0 0
    %1939 = vmatprep.subr.bf16.mxu0 0
    %1940 = vmatpush1.bf16.msra.mxu0 0
    %1941 = vmatprep.subr.bf16.mxu0 0
    %1942 = vmatpush1.bf16.msra.mxu0 0
    %1943 = vmatprep.mubr.bf16.mxu0 0
    %1944 = vmatmul.mubr.bf16.gmra.mrb[0].mxu0 %v1909
    %v1945 = vpop.f32.mrb[0].mxu0
    %v1946 = vadd.f32 0.0, %v1945
    %v1947 = vpop.f32.mrb[0].mxu0
    %v1948 = vpop.f32.mrb[0].mxu0
    %v1949 = vpop.f32.mrb[0].mxu0
    %1950 = vdwg.mxu0
    %v1952 = vsel %vm339, %v1673, 0
    %1954 = vmatprep.subr.bf16.mxu0 0
    %1955 = vmatpush1.bf16.msra.mxu0 %v846
    %1956 = vmatprep.subr.bf16.mxu0 0
    %1957 = vmatpush1.bf16.msra.mxu0 0
    %1958 = vmatprep.subr.bf16.mxu0 0
    %1959 = vmatpush1.bf16.msra.mxu0 0
    %1960 = vmatprep.subr.bf16.mxu0 0
    %1961 = vmatpush1.bf16.msra.mxu0 0
    %1962 = vmatprep.subr.bf16.mxu0 0
    %1963 = vmatpush1.bf16.msra.mxu0 0
    %1964 = vmatprep.subr.bf16.mxu0 0
    %1965 = vmatpush1.bf16.msra.mxu0 0
    %1966 = vmatprep.subr.bf16.mxu0 0
    %1967 = vmatpush1.bf16.msra.mxu0 0
    %1968 = vmatprep.subr.bf16.mxu0 0
    %1969 = vmatpush1.bf16.msra.mxu0 0
    %1970 = vmatprep.subr.bf16.mxu0 0
    %1971 = vmatpush1.bf16.msra.mxu0 0
    %1972 = vmatprep.subr.bf16.mxu0 0
    %1973 = vmatpush1.bf16.msra.mxu0 0
    %1974 = vmatprep.subr.bf16.mxu0 0
    %1975 = vmatpush1.bf16.msra.mxu0 0
    %1976 = vmatprep.subr.bf16.mxu0 0
    %1977 = vmatpush1.bf16.msra.mxu0 0
    %1978 = vmatprep.subr.bf16.mxu0 0
    %1979 = vmatpush1.bf16.msra.mxu0 0
    %1980 = vmatprep.subr.bf16.mxu0 0
    %1981 = vmatpush1.bf16.msra.mxu0 0
    %1982 = vmatprep.subr.bf16.mxu0 0
    %1983 = vmatpush1.bf16.msra.mxu0 0
    %1984 = vmatprep.subr.bf16.mxu0 0
    %1985 = vmatpush1.bf16.msra.mxu0 0
    %1986 = vmatprep.mubr.bf16.mxu0 0
    %1987 = vmatmul.mubr.bf16.gmra.mrb[0].mxu0 %v1952
    %v1988 = vpop.f32.mrb[0].mxu0
    %v1989 = vadd.f32 %v1946, %v1988
    %v1990 = vpop.f32.mrb[0].mxu0
    %v1991 = vpop.f32.mrb[0].mxu0
    %v1992 = vpop.f32.mrb[0].mxu0
    %1993 = vdwg.mxu0
    %1994 = vrot.lane.b32.xlu0 %v1452, 112
    %v1995 = vpop.permute.xlu0 %1994
    %v1997 = vsel %vm339, %v1995, 0.0
    %1998 = vadd.xlane.f32.xlu0 %v1997
    %v1999 = vpop.xlane.xlu0 %1998
    %2000 = vrot.lane.b32.xlu0 %v1456, 112
    %v2001 = vpop.permute.xlu0 %2000
    %v2003 = vsel %vm339, %v2001, 0.0
    %2004 = vadd.xlane.f32.xlu0 %v2003
    %v2005 = vpop.xlane.xlu0 %2004
    %2006 = vrot.lane.b32.xlu0 %v196, 112
    %v2007 = vpop.permute.xlu0 %2006
    %2008 = vrot.lane.b32.xlu0 %v263, 112
    %v2009 = vpop.permute.xlu0 %2008
    %v2010 = vsel %vm339, %v2007, 0
    %v2012 = vsel %vm339, %v2009, 0
    %2014 = vmatprep.subr.mxu0 0.0
    %2015 = vmatpush1.xpose.msra.mxu0 %v2012
    %2016 = vmatprep.subr.mxu0 0.0
    %2017 = vmatpush1.xpose.msra.mxu0 0.0
    %2018 = vmatprep.subr.mxu0 0.0
    %2019 = vmatpush1.xpose.msra.mxu0 0.0
    %2020 = vmatprep.subr.mxu0 0.0
    %2021 = vmatpush1.xpose.msra.mxu0 0.0
    %2022 = vmatprep.subr.mxu0 0.0
    %2023 = vmatpush1.xpose.msra.mxu0 0.0
    %2024 = vmatprep.subr.mxu0 0.0
    %2025 = vmatpush1.xpose.msra.mxu0 0.0
    %2026 = vmatprep.subr.mxu0 0.0
    %2027 = vmatpush1.xpose.msra.mxu0 0.0
    %2028 = vmatprep.subr.mxu0 0.0
    %2029 = vmatpush1.xpose.msra.mxu0 0.0
    %2030 = vmatprep.subr.mxu0 0.0
    %2031 = vmatpush1.xpose.msra.mxu0 0.0
    %2032 = vmatprep.subr.mxu0 0.0
    %2033 = vmatpush1.xpose.msra.mxu0 0.0
    %2034 = vmatprep.subr.mxu0 0.0
    %2035 = vmatpush1.xpose.msra.mxu0 0.0
    %2036 = vmatprep.subr.mxu0 0.0
    %2037 = vmatpush1.xpose.msra.mxu0 0.0
    %2038 = vmatprep.subr.mxu0 0.0
    %2039 = vmatpush1.xpose.msra.mxu0 0.0
    %2040 = vmatprep.subr.mxu0 0.0
    %2041 = vmatpush1.xpose.msra.mxu0 0.0
    %2042 = vmatprep.subr.mxu0 0.0
    %2043 = vmatpush1.xpose.msra.mxu0 0.0
    %2044 = vmatprep.subr.mxu0 0.0
    %2045 = vmatpush1.xpose.msra.mxu0 0.0
    %2046 = vmatprep.subr.mxu0 0.0
    %2047 = vmatpush1.xpose.msra.mxu0 0.0
    %2048 = vmatprep.subr.mxu0 0.0
    %2049 = vmatpush1.xpose.msra.mxu0 0.0
    %2050 = vmatprep.subr.mxu0 0.0
    %2051 = vmatpush1.xpose.msra.mxu0 0.0
    %2052 = vmatprep.subr.mxu0 0.0
    %2053 = vmatpush1.xpose.msra.mxu0 0.0
    %2054 = vmatprep.subr.mxu0 0.0
    %2055 = vmatpush1.xpose.msra.mxu0 0.0
    %2056 = vmatprep.subr.mxu0 0.0
    %2057 = vmatpush1.xpose.msra.mxu0 0.0
    %2058 = vmatprep.subr.mxu0 0.0
    %2059 = vmatpush1.xpose.msra.mxu0 0.0
    %2060 = vmatprep.subr.mxu0 0.0
    %2061 = vmatpush1.xpose.msra.mxu0 0.0
    %2062 = vmatprep.subr.mxu0 0.0
    %2063 = vmatpush1.xpose.msra.mxu0 0.0
    %2064 = vmatprep.subr.mxu0 0.0
    %2065 = vmatpush1.xpose.msra.mxu0 0.0
    %2066 = vmatprep.subr.mxu0 0.0
    %2067 = vmatpush1.xpose.msra.mxu0 0.0
    %2068 = vmatprep.subr.mxu0 0.0
    %2069 = vmatpush1.xpose.msra.mxu0 0.0
    %2070 = vmatprep.subr.mxu0 0.0
    %2071 = vmatpush1.xpose.msra.mxu0 0.0
    %2072 = vmatprep.subr.mxu0 0.0
    %2073 = vmatpush1.xpose.msra.mxu0 0.0
    %2074 = vmatprep.subr.mxu0 0.0
    %2075 = vmatpush1.xpose.msra.mxu0 0.0
    %2076 = vmatprep.subr.mxu0 0.0
    %2077 = vmatpush1.xpose.msra.mxu0 0.0
    %2078 = vmatprep.mubr.f32.mxu0 0.0
    %2079 = vmatmul.mubr.f32.gmra.mrb[0].mxu0 %v2010
    %v2080 = vpop.f32.mrb[0].mxu0
    %v2081 = vadd.f32 0.0, %v2080
    %v2082 = vpop.f32.mrb[0].mxu0
    %2083 = vdwg.mxu0
    %2084 = vxpose.xlu0.b32.start [1/16] %v2005, 128
    %2085 = vxpose.xlu0.b32.cont [2/16] 0.0, 128
    %2086 = vxpose.xlu0.b32.cont [3/16] 0.0, 128
    %2087 = vxpose.xlu0.b32.cont [4/16] 0.0, 128
    %2088 = vxpose.xlu0.b32.cont [5/16] 0.0, 128
    %2089 = vxpose.xlu0.b32.cont [6/16] 0.0, 128
    %2090 = vxpose.xlu0.b32.cont [7/16] 0.0, 128
    %2091 = vxpose.xlu0.b32.cont [8/16] 0.0, 128
    %2092 = vxpose.xlu0.b32.cont [9/16] 0.0, 128
    %2093 = vxpose.xlu0.b32.cont [10/16] 0.0, 128
    %2094 = vxpose.xlu0.b32.cont [11/16] 0.0, 128
    %2095 = vxpose.xlu0.b32.cont [12/16] 0.0, 128
    %2096 = vxpose.xlu0.b32.cont [13/16] 0.0, 128
    %2097 = vxpose.xlu0.b32.cont [14/16] 0.0, 128
    %2098 = vxpose.xlu0.b32.cont [15/16] 0.0, 128
    %2099 = vxpose.xlu0.b32.end [16/16] 0.0, 128
    %v2100 = vpop.trf.xlu0
    %v2101 = vpop.trf.xlu0
    %v2102 = vpop.trf.xlu0
    %v2103 = vpop.trf.xlu0
    %v2104 = vpop.trf.xlu0
    %v2105 = vpop.trf.xlu0
    %v2106 = vpop.trf.xlu0
    %v2107 = vpop.trf.xlu0
    %v2108 = vpop.trf.xlu0
    %v2109 = vpop.trf.xlu0
    %v2110 = vpop.trf.xlu0
    %v2111 = vpop.trf.xlu0
    %v2112 = vpop.trf.xlu0
    %v2113 = vpop.trf.xlu0
    %v2114 = vpop.trf.xlu0
    %v2115 = vpop.trf.xlu0
    %v2116 = vlaneseq
    %v2117 = vshrl.u32 %v2116, 7
    %v2118 = vsub.s32 0, %v2117
    %v2119 = vrot.slane %v2100, %v2118
    %v2120 = vadd.f32 %v1999, %v2119
    %v2121 = vmul.f32 %v2081, 2.0
    %v2122 = vsub.f32 %v2120, %v2121
    %v2123 = vmax.f32 %v2122, 0.0
    %v2124 = vrsqrt.pop %v2123
    %v2125 = vmul.f32 %v2123, %v2124
    %vm2126 = vcmp.eq.f32.partialorder %v2123, inf
    %v2127 = vsel %vm2126, %v2123, %v2125
    %vm2128 = vcmp.eq.f32.partialorder %v2123, 0.0
    %v2129 = vand.u32 %v2123, 2147483648
    %v2130 = vsel %vm2128, %v2129, %v2127
    %v2131 = vsel %vm339, %v2130, inf
    %2132 = vmin.xlane.f32.xlu0 %v2131
    %v2133 = vpop.xlane.xlu0 %2132
    %v2134 = vsub.f32 %v2133, inf
    %v2135 = vmul.f32 %v2134, 1.442695
    %v2136 = vpow.pop %v2135
    %v2137 = vsub.f32 %v2133, %v2130
    %v2138 = vmul.f32 %v2137, 1.442695
    %v2139 = vpow.pop %v2138
    %v2140 = vmul.f32 %v2136, 0.0
    %v2141 = vsel %vm339, %v2139, 0.0
    %2142 = vadd.xlane.f32.xlu0 %v2141
    %v2143 = vpop.xlane.xlu0 %2142
    %v2144 = vadd.f32 %v2140, %v2143
    %2145 = vrot.lane.b32.xlu0 %v330, 112
    %v2146 = vpop.permute.xlu0 %2145
    %v2149 = vsel %vm339, %v2139, 0
    %2151 = vmatprep.subr.mxu0 0.0
    %2152 = vmatpush1.msra.mxu0 %v2146
    %2153 = vmatprep.subr.mxu0 0.0
    %2154 = vmatpush1.msra.mxu0 0.0
    %2155 = vmatprep.subr.mxu0 0.0
    %2156 = vmatpush1.msra.mxu0 0.0
    %2157 = vmatprep.subr.mxu0 0.0
    %2158 = vmatpush1.msra.mxu0 0.0
    %2159 = vmatprep.subr.mxu0 0.0
    %2160 = vmatpush1.msra.mxu0 0.0
    %2161 = vmatprep.subr.mxu0 0.0
    %2162 = vmatpush1.msra.mxu0 0.0
    %2163 = vmatprep.subr.mxu0 0.0
    %2164 = vmatpush1.msra.mxu0 0.0
    %2165 = vmatprep.subr.mxu0 0.0
    %2166 = vmatpush1.msra.mxu0 0.0
    %2167 = vmatprep.subr.mxu0 0.0
    %2168 = vmatpush1.msra.mxu0 0.0
    %2169 = vmatprep.subr.mxu0 0.0
    %2170 = vmatpush1.msra.mxu0 0.0
    %2171 = vmatprep.subr.mxu0 0.0
    %2172 = vmatpush1.msra.mxu0 0.0
    %2173 = vmatprep.subr.mxu0 0.0
    %2174 = vmatpush1.msra.mxu0 0.0
    %2175 = vmatprep.subr.mxu0 0.0
    %2176 = vmatpush1.msra.mxu0 0.0
    %2177 = vmatprep.subr.mxu0 0.0
    %2178 = vmatpush1.msra.mxu0 0.0
    %2179 = vmatprep.subr.mxu0 0.0
    %2180 = vmatpush1.msra.mxu0 0.0
    %2181 = vmatprep.subr.mxu0 0.0
    %2182 = vmatpush1.msra.mxu0 0.0
    %2183 = vmatprep.subr.mxu0 0.0
    %2184 = vmatpush1.msra.mxu0 0.0
    %2185 = vmatprep.subr.mxu0 0.0
    %2186 = vmatpush1.msra.mxu0 0.0
    %2187 = vmatprep.subr.mxu0 0.0
    %2188 = vmatpush1.msra.mxu0 0.0
    %2189 = vmatprep.subr.mxu0 0.0
    %2190 = vmatpush1.msra.mxu0 0.0
    %2191 = vmatprep.subr.mxu0 0.0
    %2192 = vmatpush1.msra.mxu0 0.0
    %2193 = vmatprep.subr.mxu0 0.0
    %2194 = vmatpush1.msra.mxu0 0.0
    %2195 = vmatprep.subr.mxu0 0.0
    %2196 = vmatpush1.msra.mxu0 0.0
    %2197 = vmatprep.subr.mxu0 0.0
    %2198 = vmatpush1.msra.mxu0 0.0
    %2199 = vmatprep.subr.mxu0 0.0
    %2200 = vmatpush1.msra.mxu0 0.0
    %2201 = vmatprep.subr.mxu0 0.0
    %2202 = vmatpush1.msra.mxu0 0.0
    %2203 = vmatprep.subr.mxu0 0.0
    %2204 = vmatpush1.msra.mxu0 0.0
    %2205 = vmatprep.subr.mxu0 0.0
    %2206 = vmatpush1.msra.mxu0 0.0
    %2207 = vmatprep.subr.mxu0 0.0
    %2208 = vmatpush1.msra.mxu0 0.0
    %2209 = vmatprep.subr.mxu0 0.0
    %2210 = vmatpush1.msra.mxu0 0.0
    %2211 = vmatprep.subr.mxu0 0.0
    %2212 = vmatpush1.msra.mxu0 0.0
    %2213 = vmatprep.subr.mxu0 0.0
    %2214 = vmatpush1.msra.mxu0 0.0
    %2215 = vmatprep.mubr.f32.mxu0 0.0
    %2216 = vmatmul.mubr.f32.gmra.mrb[0].mxu0 %v2149
    %v2217 = vpop.f32.mrb[0].mxu0
    %v2218 = vadd.f32 0.0, %v2217
    %v2219 = vpop.f32.mrb[0].mxu0
    %2220 = vdwg.mxu0
    %v2221 = vadd.f32 %v2140, %v2218
    %v2222 = vrcp.pop %v2144
    %v2223 = vmul.f32 %v2221, %v2222
    %v2224 = vpack.c.bf16 %v2223, %v2223
    %v2226 = vsel %vm339, %v2224, 0
    %2228 = vmatprep.subr.bf16.mxu0 0
    %2229 = vmatpush1.bf16.msra.mxu0 %v1123
    %2230 = vmatprep.subr.bf16.mxu0 0
    %2231 = vmatpush1.bf16.msra.mxu0 0
    %2232 = vmatprep.subr.bf16.mxu0 0
    %2233 = vmatpush1.bf16.msra.mxu0 0
    %2234 = vmatprep.subr.bf16.mxu0 0
    %2235 = vmatpush1.bf16.msra.mxu0 0
    %2236 = vmatprep.subr.bf16.mxu0 0
    %2237 = vmatpush1.bf16.msra.mxu0 0
    %2238 = vmatprep.subr.bf16.mxu0 0
    %2239 = vmatpush1.bf16.msra.mxu0 0
    %2240 = vmatprep.subr.bf16.mxu0 0
    %2241 = vmatpush1.bf16.msra.mxu0 0
    %2242 = vmatprep.subr.bf16.mxu0 0
    %2243 = vmatpush1.bf16.msra.mxu0 0
    %2244 = vmatprep.subr.bf16.mxu0 0
    %2245 = vmatpush1.bf16.msra.mxu0 0
    %2246 = vmatprep.subr.bf16.mxu0 0
    %2247 = vmatpush1.bf16.msra.mxu0 0
    %2248 = vmatprep.subr.bf16.mxu0 0
    %2249 = vmatpush1.bf16.msra.mxu0 0
    %2250 = vmatprep.subr.bf16.mxu0 0
    %2251 = vmatpush1.bf16.msra.mxu0 0
    %2252 = vmatprep.subr.bf16.mxu0 0
    %2253 = vmatpush1.bf16.msra.mxu0 0
    %2254 = vmatprep.subr.bf16.mxu0 0
    %2255 = vmatpush1.bf16.msra.mxu0 0
    %2256 = vmatprep.subr.bf16.mxu0 0
    %2257 = vmatpush1.bf16.msra.mxu0 0
    %2258 = vmatprep.subr.bf16.mxu0 0
    %2259 = vmatpush1.bf16.msra.mxu0 0
    %2260 = vmatprep.mubr.bf16.mxu0 0
    %2261 = vmatmul.mubr.bf16.gmra.mrb[0].mxu0 %v2226
    %v2262 = vpop.f32.mrb[0].mxu0
    %v2263 = vadd.f32 0.0, %v2262
    %v2264 = vpop.f32.mrb[0].mxu0
    %v2265 = vpop.f32.mrb[0].mxu0
    %v2266 = vpop.f32.mrb[0].mxu0
    %2267 = vdwg.mxu0
    %v2268 = vadd.f32 %v1989, %v2263
    %2269 = vrot.lane.b32.xlu0 %v1452, 104
    %v2270 = vpop.permute.xlu0 %2269
    %v2272 = vsel %vm339, %v2270, 0.0
    %2273 = vadd.xlane.f32.xlu0 %v2272
    %v2274 = vpop.xlane.xlu0 %2273
    %2275 = vrot.lane.b32.xlu0 %v1456, 104
    %v2276 = vpop.permute.xlu0 %2275
    %v2278 = vsel %vm339, %v2276, 0.0
    %2279 = vadd.xlane.f32.xlu0 %v2278
    %v2280 = vpop.xlane.xlu0 %2279
    %2281 = vrot.lane.b32.xlu0 %v196, 104
    %v2282 = vpop.permute.xlu0 %2281
    %2283 = vrot.lane.b32.xlu0 %v263, 104
    %v2284 = vpop.permute.xlu0 %2283
    %v2285 = vsel %vm339, %v2282, 0
    %v2287 = vsel %vm339, %v2284, 0
    %2289 = vmatprep.subr.mxu0 0.0
    %2290 = vmatpush1.xpose.msra.mxu0 %v2287
    %2291 = vmatprep.subr.mxu0 0.0
    %2292 = vmatpush1.xpose.msra.mxu0 0.0
    %2293 = vmatprep.subr.mxu0 0.0
    %2294 = vmatpush1.xpose.msra.mxu0 0.0
    %2295 = vmatprep.subr.mxu0 0.0
    %2296 = vmatpush1.xpose.msra.mxu0 0.0
    %2297 = vmatprep.subr.mxu0 0.0
    %2298 = vmatpush1.xpose.msra.mxu0 0.0
    %2299 = vmatprep.subr.mxu0 0.0
    %2300 = vmatpush1.xpose.msra.mxu0 0.0
    %2301 = vmatprep.subr.mxu0 0.0
    %2302 = vmatpush1.xpose.msra.mxu0 0.0
    %2303 = vmatprep.subr.mxu0 0.0
    %2304 = vmatpush1.xpose.msra.mxu0 0.0
    %2305 = vmatprep.subr.mxu0 0.0
    %2306 = vmatpush1.xpose.msra.mxu0 0.0
    %2307 = vmatprep.subr.mxu0 0.0
    %2308 = vmatpush1.xpose.msra.mxu0 0.0
    %2309 = vmatprep.subr.mxu0 0.0
    %2310 = vmatpush1.xpose.msra.mxu0 0.0
    %2311 = vmatprep.subr.mxu0 0.0
    %2312 = vmatpush1.xpose.msra.mxu0 0.0
    %2313 = vmatprep.subr.mxu0 0.0
    %2314 = vmatpush1.xpose.msra.mxu0 0.0
    %2315 = vmatprep.subr.mxu0 0.0
    %2316 = vmatpush1.xpose.msra.mxu0 0.0
    %2317 = vmatprep.subr.mxu0 0.0
    %2318 = vmatpush1.xpose.msra.mxu0 0.0
    %2319 = vmatprep.subr.mxu0 0.0
    %2320 = vmatpush1.xpose.msra.mxu0 0.0
    %2321 = vmatprep.subr.mxu0 0.0
    %2322 = vmatpush1.xpose.msra.mxu0 0.0
    %2323 = vmatprep.subr.mxu0 0.0
    %2324 = vmatpush1.xpose.msra.mxu0 0.0
    %2325 = vmatprep.subr.mxu0 0.0
    %2326 = vmatpush1.xpose.msra.mxu0 0.0
    %2327 = vmatprep.subr.mxu0 0.0
    %2328 = vmatpush1.xpose.msra.mxu0 0.0
    %2329 = vmatprep.subr.mxu0 0.0
    %2330 = vmatpush1.xpose.msra.mxu0 0.0
    %2331 = vmatprep.subr.mxu0 0.0
    %2332 = vmatpush1.xpose.msra.mxu0 0.0
    %2333 = vmatprep.subr.mxu0 0.0
    %2334 = vmatpush1.xpose.msra.mxu0 0.0
    %2335 = vmatprep.subr.mxu0 0.0
    %2336 = vmatpush1.xpose.msra.mxu0 0.0
    %2337 = vmatprep.subr.mxu0 0.0
    %2338 = vmatpush1.xpose.msra.mxu0 0.0
    %2339 = vmatprep.subr.mxu0 0.0
    %2340 = vmatpush1.xpose.msra.mxu0 0.0
    %2341 = vmatprep.subr.mxu0 0.0
    %2342 = vmatpush1.xpose.msra.mxu0 0.0
    %2343 = vmatprep.subr.mxu0 0.0
    %2344 = vmatpush1.xpose.msra.mxu0 0.0
    %2345 = vmatprep.subr.mxu0 0.0
    %2346 = vmatpush1.xpose.msra.mxu0 0.0
    %2347 = vmatprep.subr.mxu0 0.0
    %2348 = vmatpush1.xpose.msra.mxu0 0.0
    %2349 = vmatprep.subr.mxu0 0.0
    %2350 = vmatpush1.xpose.msra.mxu0 0.0
    %2351 = vmatprep.subr.mxu0 0.0
    %2352 = vmatpush1.xpose.msra.mxu0 0.0
    %2353 = vmatprep.mubr.f32.mxu0 0.0
    %2354 = vmatmul.mubr.f32.gmra.mrb[0].mxu0 %v2285
    %v2355 = vpop.f32.mrb[0].mxu0
    %v2356 = vadd.f32 0.0, %v2355
    %v2357 = vpop.f32.mrb[0].mxu0
    %2358 = vdwg.mxu0
    %2359 = vxpose.xlu0.b32.start [1/16] %v2280, 128
    %2360 = vxpose.xlu0.b32.cont [2/16] 0.0, 128
    %2361 = vxpose.xlu0.b32.cont [3/16] 0.0, 128
    %2362 = vxpose.xlu0.b32.cont [4/16] 0.0, 128
    %2363 = vxpose.xlu0.b32.cont [5/16] 0.0, 128
    %2364 = vxpose.xlu0.b32.cont [6/16] 0.0, 128
    %2365 = vxpose.xlu0.b32.cont [7/16] 0.0, 128
    %2366 = vxpose.xlu0.b32.cont [8/16] 0.0, 128
    %2367 = vxpose.xlu0.b32.cont [9/16] 0.0, 128
    %2368 = vxpose.xlu0.b32.cont [10/16] 0.0, 128
    %2369 = vxpose.xlu0.b32.cont [11/16] 0.0, 128
    %2370 = vxpose.xlu0.b32.cont [12/16] 0.0, 128
    %2371 = vxpose.xlu0.b32.cont [13/16] 0.0, 128
    %2372 = vxpose.xlu0.b32.cont [14/16] 0.0, 128
    %2373 = vxpose.xlu0.b32.cont [15/16] 0.0, 128
    %2374 = vxpose.xlu0.b32.end [16/16] 0.0, 128
    %v2375 = vpop.trf.xlu0
    %v2376 = vpop.trf.xlu0
    %v2377 = vpop.trf.xlu0
    %v2378 = vpop.trf.xlu0
    %v2379 = vpop.trf.xlu0
    %v2380 = vpop.trf.xlu0
    %v2381 = vpop.trf.xlu0
    %v2382 = vpop.trf.xlu0
    %v2383 = vpop.trf.xlu0
    %v2384 = vpop.trf.xlu0
    %v2385 = vpop.trf.xlu0
    %v2386 = vpop.trf.xlu0
    %v2387 = vpop.trf.xlu0
    %v2388 = vpop.trf.xlu0
    %v2389 = vpop.trf.xlu0
    %v2390 = vpop.trf.xlu0
    %v2391 = vlaneseq
    %v2392 = vshrl.u32 %v2391, 7
    %v2393 = vsub.s32 0, %v2392
    %v2394 = vrot.slane %v2375, %v2393
    %v2395 = vadd.f32 %v2274, %v2394
    %v2396 = vmul.f32 %v2356, 2.0
    %v2397 = vsub.f32 %v2395, %v2396
    %v2398 = vmax.f32 %v2397, 0.0
    %v2399 = vrsqrt.pop %v2398
    %v2400 = vmul.f32 %v2398, %v2399
    %vm2401 = vcmp.eq.f32.partialorder %v2398, inf
    %v2402 = vsel %vm2401, %v2398, %v2400
    %vm2403 = vcmp.eq.f32.partialorder %v2398, 0.0
    %v2404 = vand.u32 %v2398, 2147483648
    %v2405 = vsel %vm2403, %v2404, %v2402
    %v2406 = vsel %vm339, %v2405, inf
    %2407 = vmin.xlane.f32.xlu0 %v2406
    %v2408 = vpop.xlane.xlu0 %2407
    %v2409 = vsub.f32 %v2408, inf
    %v2410 = vmul.f32 %v2409, 1.442695
    %v2411 = vpow.pop %v2410
    %v2412 = vsub.f32 %v2408, %v2405
    %v2413 = vmul.f32 %v2412, 1.442695
    %v2414 = vpow.pop %v2413
    %v2415 = vmul.f32 %v2411, 0.0
    %v2416 = vsel %vm339, %v2414, 0.0
    %2417 = vadd.xlane.f32.xlu0 %v2416
    %v2418 = vpop.xlane.xlu0 %2417
    %v2419 = vadd.f32 %v2415, %v2418
    %2420 = vrot.lane.b32.xlu0 %v330, 104
    %v2421 = vpop.permute.xlu0 %2420
    %v2424 = vsel %vm339, %v2414, 0
    %2426 = vmatprep.subr.mxu0 0.0
    %2427 = vmatpush1.msra.mxu0 %v2421
    %2428 = vmatprep.subr.mxu0 0.0
    %2429 = vmatpush1.msra.mxu0 0.0
    %2430 = vmatprep.subr.mxu0 0.0
    %2431 = vmatpush1.msra.mxu0 0.0
    %2432 = vmatprep.subr.mxu0 0.0
    %2433 = vmatpush1.msra.mxu0 0.0
    %2434 = vmatprep.subr.mxu0 0.0
    %2435 = vmatpush1.msra.mxu0 0.0
    %2436 = vmatprep.subr.mxu0 0.0
    %2437 = vmatpush1.msra.mxu0 0.0
    %2438 = vmatprep.subr.mxu0 0.0
    %2439 = vmatpush1.msra.mxu0 0.0
    %2440 = vmatprep.subr.mxu0 0.0
    %2441 = vmatpush1.msra.mxu0 0.0
    %2442 = vmatprep.subr.mxu0 0.0
    %2443 = vmatpush1.msra.mxu0 0.0
    %2444 = vmatprep.subr.mxu0 0.0
    %2445 = vmatpush1.msra.mxu0 0.0
    %2446 = vmatprep.subr.mxu0 0.0
    %2447 = vmatpush1.msra.mxu0 0.0
    %2448 = vmatprep.subr.mxu0 0.0
    %2449 = vmatpush1.msra.mxu0 0.0
    %2450 = vmatprep.subr.mxu0 0.0
    %2451 = vmatpush1.msra.mxu0 0.0
    %2452 = vmatprep.subr.mxu0 0.0
    %2453 = vmatpush1.msra.mxu0 0.0
    %2454 = vmatprep.subr.mxu0 0.0
    %2455 = vmatpush1.msra.mxu0 0.0
    %2456 = vmatprep.subr.mxu0 0.0
    %2457 = vmatpush1.msra.mxu0 0.0
    %2458 = vmatprep.subr.mxu0 0.0
    %2459 = vmatpush1.msra.mxu0 0.0
    %2460 = vmatprep.subr.mxu0 0.0
    %2461 = vmatpush1.msra.mxu0 0.0
    %2462 = vmatprep.subr.mxu0 0.0
    %2463 = vmatpush1.msra.mxu0 0.0
    %2464 = vmatprep.subr.mxu0 0.0
    %2465 = vmatpush1.msra.mxu0 0.0
    %2466 = vmatprep.subr.mxu0 0.0
    %2467 = vmatpush1.msra.mxu0 0.0
    %2468 = vmatprep.subr.mxu0 0.0
    %2469 = vmatpush1.msra.mxu0 0.0
    %2470 = vmatprep.subr.mxu0 0.0
    %2471 = vmatpush1.msra.mxu0 0.0
    %2472 = vmatprep.subr.mxu0 0.0
    %2473 = vmatpush1.msra.mxu0 0.0
    %2474 = vmatprep.subr.mxu0 0.0
    %2475 = vmatpush1.msra.mxu0 0.0
    %2476 = vmatprep.subr.mxu0 0.0
    %2477 = vmatpush1.msra.mxu0 0.0
    %2478 = vmatprep.subr.mxu0 0.0
    %2479 = vmatpush1.msra.mxu0 0.0
    %2480 = vmatprep.subr.mxu0 0.0
    %2481 = vmatpush1.msra.mxu0 0.0
    %2482 = vmatprep.subr.mxu0 0.0
    %2483 = vmatpush1.msra.mxu0 0.0
    %2484 = vmatprep.subr.mxu0 0.0
    %2485 = vmatpush1.msra.mxu0 0.0
    %2486 = vmatprep.subr.mxu0 0.0
    %2487 = vmatpush1.msra.mxu0 0.0
    %2488 = vmatprep.subr.mxu0 0.0
    %2489 = vmatpush1.msra.mxu0 0.0
    %2490 = vmatprep.mubr.f32.mxu0 0.0
    %2491 = vmatmul.mubr.f32.gmra.mrb[0].mxu0 %v2424
    %v2492 = vpop.f32.mrb[0].mxu0
    %v2493 = vadd.f32 0.0, %v2492
    %v2494 = vpop.f32.mrb[0].mxu0
    %2495 = vdwg.mxu0
    %v2496 = vadd.f32 %v2415, %v2493
    %v2497 = vrcp.pop %v2419
    %v2498 = vmul.f32 %v2496, %v2497
    %v2499 = vpack.c.bf16 %v2498, %v2498
    %v2501 = vsel %vm339, %v2499, 0
    %2503 = vmatprep.subr.bf16.mxu0 0
    %2504 = vmatpush1.bf16.msra.mxu0 %v1401
    %2505 = vmatprep.subr.bf16.mxu0 0
    %2506 = vmatpush1.bf16.msra.mxu0 0
    %2507 = vmatprep.subr.bf16.mxu0 0
    %2508 = vmatpush1.bf16.msra.mxu0 0
    %2509 = vmatprep.subr.bf16.mxu0 0
    %2510 = vmatpush1.bf16.msra.mxu0 0
    %2511 = vmatprep.subr.bf16.mxu0 0
    %2512 = vmatpush1.bf16.msra.mxu0 0
    %2513 = vmatprep.subr.bf16.mxu0 0
    %2514 = vmatpush1.bf16.msra.mxu0 0
    %2515 = vmatprep.subr.bf16.mxu0 0
    %2516 = vmatpush1.bf16.msra.mxu0 0
    %2517 = vmatprep.subr.bf16.mxu0 0
    %2518 = vmatpush1.bf16.msra.mxu0 0
    %2519 = vmatprep.subr.bf16.mxu0 0
    %2520 = vmatpush1.bf16.msra.mxu0 0
    %2521 = vmatprep.subr.bf16.mxu0 0
    %2522 = vmatpush1.bf16.msra.mxu0 0
    %2523 = vmatprep.subr.bf16.mxu0 0
    %2524 = vmatpush1.bf16.msra.mxu0 0
    %2525 = vmatprep.subr.bf16.mxu0 0
    %2526 = vmatpush1.bf16.msra.mxu0 0
    %2527 = vmatprep.subr.bf16.mxu0 0
    %2528 = vmatpush1.bf16.msra.mxu0 0
    %2529 = vmatprep.subr.bf16.mxu0 0
    %2530 = vmatpush1.bf16.msra.mxu0 0
    %2531 = vmatprep.subr.bf16.mxu0 0
    %2532 = vmatpush1.bf16.msra.mxu0 0
    %2533 = vmatprep.subr.bf16.mxu0 0
    %2534 = vmatpush1.bf16.msra.mxu0 0
    %2535 = vmatprep.mubr.bf16.mxu0 0
    %2536 = vmatmul.mubr.bf16.gmra.mrb[0].mxu0 %v2501
    %v2537 = vpop.f32.mrb[0].mxu0
    %v2538 = vadd.f32 0.0, %v2537
    %v2539 = vpop.f32.mrb[0].mxu0
    %v2540 = vpop.f32.mrb[0].mxu0
    %v2541 = vpop.f32.mrb[0].mxu0
    %2542 = vdwg.mxu0
    %v2543 = vadd.f32 %v2268, %v2538
    %v2544 = vadd.f32 %v2543, %v1448
    %s2545 = scalar_lea.vmem [#allocation13], 8
    %2546 = vst.msk [vmem:[%s2545] sm:$0xff] %vm154, %v2544
    // Predicated region
    $region70: #{tpu_custom_call.1} parent=1 // pred_check
      _
    $region71: #{tpu_custom_call.1} parent=1 // pred_check_branch
      %2548 = sbr.rel (0) target = $region73
    $region72: #{tpu_custom_call.1} parent=1 // pred_region
      %s2550 = ssub.s32 256, 256
      %2551 = vsyncadd [#allocation4], %s2550
      %s2552 = sshll.u32 [#allocation13], 4
      %s2553 = int_to_ptr.vmem [resolvable:$true] %s2552
      %2558 = dma.vmem_to_hbm [thread:$0]  %s2553, 256, %s11, [#allocation4], 128, 128, 8
    $region73: #{tpu_custom_call.1} parent=1 // pred_fallthru
      _
    // Predicated region
    $region74: #{tpu_custom_call.1} parent=1 // pred_check
      _
    $region75: #{tpu_custom_call.1} parent=1 // pred_check_branch
      %2560 = sbr.rel (0) target = $region77
    $region76: #{tpu_custom_call.1} parent=1 // pred_region
      %2561 = dma.done [#allocation4], 256
    $region77: #{tpu_custom_call.1} parent=1 // pred_fallthru
      _
    %2562 = vsyncpa [#allocation3], 1
    %2563 = vsyncpa [#allocation6], 1
    %2564 = vsyncpa [#allocation9], 1
    %2565 = vsyncpa [#allocation12], 1
    %2566 = vsyncpa [#allocation4], 1

</llo_original>
